<compile_context>
chip_gen: v5e
topology: v5e:2x2
jax: 0.10.0
libtpu: 0.0.40
codegen_flags: <defaults>
</compile_context>

<pallas_src>
import math

import jax
import jax.numpy as jnp
import numpy as np
from jax import lax
from jax.experimental import pallas as pl
from jax.experimental.pallas import tpu as pltpu

HEADS = 4
D_MODEL = 32
HIDDEN_HEAD = D_MODEL // HEADS          # 8
FFN_HIDDEN = 3 * D_MODEL                # CrossAtt builds CrossLayers(dims, heads, dims*3)
SEQ = 8
BATCH = 2
LAYERS = 2
GROUPS = BATCH * HEADS                  # 8 (g = b*HEADS + h)
ROWS = BATCH * SEQ                      # 16 token rows
ENT_ROWS = GROUPS * SEQ                 # 64 entmax rows
LN_EPS = 1e-5


# ----------------------------------------------------------------------------
# Helpers
# ----------------------------------------------------------------------------
def _fast_recip(x):
    """EUP approximate reciprocal + one Newton step (keeps divides off the VALU)."""
    r = pl.reciprocal(x, approx=True)
    return r * (2.0 - x * r)


def _sum_leading(t):
    """Sum over the (small, static) leading axis with unrolled tile adds."""
    acc = t[0]
    for i in range(1, t.shape[0]):
        acc = acc + t[i]
    return acc


def _entmax15_cols(xt):
    """Exact entmax-1.5 over axis 0 of xt [K, R] (keys on sublanes, rows on lanes).

    O(K^2) rank formulation (exact absent ties).  The comparison tensor keeps the
    key axis leading so every reduction is an unrolled dense-tile add.
    """
    x = (xt - jnp.max(xt, axis=0, keepdims=True)) * 0.5                 # [K, R]
    xk = x[:, None, :]                                                  # [K, 1, R]
    ge = (xk >= x[None, :, :]).astype(jnp.float32)                      # [K(key), K(cand), R]
    rho = _sum_leading(ge)                                              # [K(cand), R]
    s1 = _sum_leading(ge * xk)
    s2 = _sum_leading(ge * (xk * xk))
    inv_rho = _fast_recip(rho)
    mean = s1 * inv_rho
    mean_sq = s2 * inv_rho
    ss = rho * (mean_sq - mean * mean)
    delta = (1.0 - ss) * inv_rho
    tau = mean - jnp.sqrt(jnp.maximum(delta, 0.0))                      # [K, R]
    valid = tau <= x
    support = jnp.max(jnp.where(valid, rho, 0.0), axis=0, keepdims=True)
    sel = jnp.logical_and(valid, rho == support)
    cnt = jnp.sum(sel.astype(jnp.float32), axis=0, keepdims=True)
    tau_star = (jnp.sum(jnp.where(sel, tau, 0.0), axis=0, keepdims=True)
                * _fast_recip(cnt))
    w = jnp.maximum(x - tau_star, 0.0)
    return w * w                                                        # [K, R]


def _layer_norm(x, gamma, beta):
    mu = jnp.mean(x, axis=-1, keepdims=True)
    xc = x - mu
    var = jnp.mean(xc * xc, axis=-1, keepdims=True)
    inv = lax.rsqrt(var + LN_EPS)
    return xc * inv * gamma + beta


# ----------------------------------------------------------------------------
# Pallas kernel: one grid step == one CrossLayers layer (+ outer norm/residual)
# ----------------------------------------------------------------------------
def cross_att_kernel(pose_ref, velg_ref, eye_ref,
                     wq_ref, bq_ref, wk_ref, bk_ref, wv_ref, bv_ref,
                     wo_ref, bo_ref, ln_ref,
                     wup_ref, bup_ref, wdown_ref, bdown_ref,
                     out_ref):
    l = pl.program_id(0)

    @pl.when(l == 0)
    def _init():
        out_ref[...] = pose_ref[...]          # carried state lives in the resident output

    x = out_ref[...]                          # running pose [ROWS, D] (f32)
    memory = x                                # CrossAtt outer residual
    eye = eye_ref[...]                        # [SEQ, SEQ] identity (MXU relayout helper)
    velg = velg_ref[...]                      # [G, S, D] pre-grouped k/v activations

    # ---- MultiHeadAttention(x, vel, vel) with entmax-1.5 --------------------
    # Group-major projections straight off the MXU (no lane slices / stacks).
    xq_g = jnp.broadcast_to(
        x.reshape(BATCH, 1, SEQ, D_MODEL),
        (BATCH, HEADS, SEQ, D_MODEL)).reshape(GROUPS, SEQ, D_MODEL)

    qg = jnp.einsum('gtd,gdf->gtf', xq_g, wq_ref[0],
                    preferred_element_type=jnp.float32) + bq_ref[0]     # [G,S,hd]
    kg = jnp.einsum('gtd,gdf->gtf', velg, wk_ref[0],
                    preferred_element_type=jnp.float32) + bk_ref[0]
    vg = jnp.einsum('gtd,gdf->gtf', velg, wv_ref[0],
                    preferred_element_type=jnp.float32) + bv_ref[0]

    scale = 1.0 / math.sqrt(HIDDEN_HEAD)
    scores = jnp.einsum('gqd,gkd->gqk', qg, kg,
                        preferred_element_type=jnp.float32) * scale     # [G,S,S]

    # Lane-densify for entmax: [G,S,K] -> [G*S, K] -> [K, G*S] via the idle MXU.
    s_flat = scores.reshape(ENT_ROWS, SEQ)                              # [64, 8]
    xt = lax.dot_general(eye, s_flat, (((1,), (1,)), ((), ())),
                         preferred_element_type=jnp.float32)            # [8, 64]
    p = _entmax15_cols(xt)                                              # [8, 64]
    att = lax.dot_general(p, eye, (((0,), (0,)), ((), ())),
                          preferred_element_type=jnp.float32)           # [64, 8]
    att = att.reshape(GROUPS, SEQ, SEQ)

    ctx = jnp.einsum('gqk,gkd->gqd', att, vg,
                     preferred_element_type=jnp.float32)                # [G,S,hd]

    # Head merge folded into the output projection (pre-grouped Wo rows).
    blocks = jnp.einsum('gqd,gdo->gqo', ctx, wo_ref[0],
                        preferred_element_type=jnp.float32)             # [G,S,D]
    blocks = blocks.reshape(BATCH, HEADS, SEQ, D_MODEL)
    y = blocks[:, 0]
    for h in range(1, HEADS):
        y = y + blocks[:, h]                                            # [B,S,D]
    y = y.reshape(ROWS, D_MODEL) + bo_ref[0]
    # TODO(synk): nn.Dropout layers are identity here (eval mode only).

    # ---- CrossLayers: attention_norm + residual ------------------------------
    ln = ln_ref[0]                                                      # [6, 32]
    y = _layer_norm(y, ln[0:1, :], ln[1:2, :])
    x = x + y

    # ---- feedforward_norm + FeedForwardNet (Mish) + residual -----------------
    z = _layer_norm(x, ln[2:3, :], ln[3:4, :])
    u = jnp.dot(z, wup_ref[0], preferred_element_type=jnp.float32) + bup_ref[0]
    sp = jnp.maximum(u, 0.0) + jnp.log(1.0 + jnp.exp(-jnp.abs(u)))      # stable softplus
    u = u * jnp.tanh(sp)                                                # Mish
    z = jnp.dot(u, wdown_ref[0], preferred_element_type=jnp.float32) + bdown_ref[0]
    x = x + z

    # ---- CrossAtt: outer norm + residual with layer-input memory -------------
    x = _layer_norm(x, ln[4:5, :], ln[5:6, :]) + memory

    out_ref[...] = x


# ----------------------------------------------------------------------------
# Host-side packing (one-time, free) and wrapper
# ----------------------------------------------------------------------------
def pack_params(layer_params):
    """Stack per-layer weights [L, ...] and pre-group Q/K/V/O by (batch, head)."""
    H, hd = HEADS, HIDDEN_HEAD

    def group_w(w):      # [D, D] -> [G, D, hd], g = b*H + h
        whm = jnp.stack([w[:, h * hd:(h + 1) * hd] for h in range(H)], axis=0)
        return jnp.tile(whm, (BATCH, 1, 1))

    def group_b(b):      # [1, D] -> [G, 1, hd]
        return jnp.tile(b.reshape(H, 1, hd), (BATCH, 1, 1))

    def group_wo(w):     # [D, D] -> [G, hd, D]
        whm = jnp.stack([w[h * hd:(h + 1) * hd, :] for h in range(H)], axis=0)
        return jnp.tile(whm, (BATCH, 1, 1))

    def stack(fn):
        return jnp.stack([fn(p) for p in layer_params], axis=0)

    return {
        "wq_g": stack(lambda p: group_w(p["wq"])),
        "bq_g": stack(lambda p: group_b(p["bq"])),
        "wk_g": stack(lambda p: group_w(p["wk"])),
        "bk_g": stack(lambda p: group_b(p["bk"])),
        "wv_g": stack(lambda p: group_w(p["wv"])),
        "bv_g": stack(lambda p: group_b(p["bv"])),
        "wo_g": stack(lambda p: group_wo(p["wo"])),
        "bo": stack(lambda p: p["bo"]),
        "ln": stack(lambda p: jnp.concatenate(
            [p["ln_att_g"], p["ln_att_b"], p["ln_ffn_g"], p["ln_ffn_b"],
             p["ln_out_g"], p["ln_out_b"]], axis=0)),
        "wup": stack(lambda p: p["wup"]),
        "bup": stack(lambda p: p["bup"]),
        "wdown": stack(lambda p: p["wdown"]),
        "bdown": stack(lambda p: p["bdown"]),
    }


def _const_spec(shape):
    nd = len(shape)
    return pl.BlockSpec(shape, lambda l, _n=nd: (0,) * _n)


def _layer_spec(shape):
    nd = len(shape)
    return pl.BlockSpec((1,) + shape, lambda l, _n=nd: (l,) + (0,) * _n)


def cross_att_stack(pose2, velg, params):
    """Run the full LAYERS-deep CrossAtt stack in one pallas_call."""
    eye8 = jnp.eye(SEQ, dtype=jnp.float32)
    return pl.pallas_call(
        cross_att_kernel,
        out_shape=jax.ShapeDtypeStruct((ROWS, D_MODEL), jnp.float32),
        grid=(LAYERS,),
        in_specs=[
            _const_spec((ROWS, D_MODEL)),                       # pose (resident)
            _const_spec((GROUPS, SEQ, D_MODEL)),                # grouped vel (resident)
            _const_spec((SEQ, SEQ)),                            # identity (resident)
            _layer_spec((GROUPS, D_MODEL, HIDDEN_HEAD)),        # wq_g
            _layer_spec((GROUPS, 1, HIDDEN_HEAD)),              # bq_g
            _layer_spec((GROUPS, D_MODEL, HIDDEN_HEAD)),        # wk_g
            _layer_spec((GROUPS, 1, HIDDEN_HEAD)),              # bk_g
            _layer_spec((GROUPS, D_MODEL, HIDDEN_HEAD)),        # wv_g
            _layer_spec((GROUPS, 1, HIDDEN_HEAD)),              # bv_g
            _layer_spec((GROUPS, HIDDEN_HEAD, D_MODEL)),        # wo_g
            _layer_spec((1, D_MODEL)),                          # bo
            _layer_spec((6, D_MODEL)),                          # layernorm params
            _layer_spec((D_MODEL, FFN_HIDDEN)),                 # wup
            _layer_spec((1, FFN_HIDDEN)),                       # bup
            _layer_spec((FFN_HIDDEN, D_MODEL)),                 # wdown
            _layer_spec((1, D_MODEL)),                          # bdown
        ],
        out_specs=_const_spec((ROWS, D_MODEL)),
        compiler_params=pltpu.CompilerParams(
            dimension_semantics=("arbitrary",)),                # layers are sequential
    )(pose2, velg, eye8,
      params["wq_g"], params["bq_g"], params["wk_g"], params["bk_g"],
      params["wv_g"], params["bv_g"], params["wo_g"], params["bo"],
      params["ln"], params["wup"], params["bup"], params["wdown"], params["bdown"])


def cross_att_forward(params, pose, vel, img=None):
    B, S, D = pose.shape
    pose2 = pose.reshape(B * S, D)

    def run(kv):
        kvg = jnp.broadcast_to(kv.reshape(B, 1, S, D),
                               (B, HEADS, S, D)).reshape(GROUPS, S, D)
        return cross_att_stack(pose2, kvg, params).reshape(B, S, D)

    img_out = run(img) if img is not None else None
    pose_out = run(vel)
    return pose_out, img_out


# ----------------------------------------------------------------------------
# Pure-JAX reference (sort-based exact entmax-1.5) for validation
# ----------------------------------------------------------------------------
def _entmax15_ref(scores):
    x = (scores - jnp.max(scores, axis=-1, keepdims=True)) * 0.5
    xs = -jnp.sort(-x, axis=-1)
    K = x.shape[-1]
    rho = jnp.arange(1, K + 1, dtype=x.dtype)
    mean = jnp.cumsum(xs, axis=-1) / rho
    mean_sq = jnp.cumsum(xs * xs, axis=-1) / rho
    ss = rho * (mean_sq - mean * mean)
    delta = jnp.maximum((1.0 - ss) / rho, 0.0)
    tau = mean - jnp.sqrt(delta)
    support = jnp.sum((tau <= xs).astype(jnp.int32), axis=-1, keepdims=True)
    tau_star = jnp.take_along_axis(tau, support - 1, axis=-1)
    return jnp.maximum(x - tau_star, 0.0) ** 2


def _mha_ref(q, k, v, p):
    B, S, D = q.shape
    H, hd = HEADS, HIDDEN_HEAD

    def proj(x, w, b):
        y = x.reshape(B * S, D) @ w + b
        return y.reshape(B, S, H, hd).transpose(0, 2, 1, 3)

    qh, kh, vh = proj(q, p["wq"], p["bq"]), proj(k, p["wk"], p["bk"]), proj(v, p["wv"], p["bv"])
    scores = jnp.einsum('bhqd,bhkd->bhqk', qh, kh) / math.sqrt(hd)
    att = _entmax15_ref(scores)
    o = jnp.einsum('bhqk,bhkd->bhqd', att, vh).transpose(0, 2, 1, 3).reshape(B, S, D)
    return o @ p["wo"] + p["bo"]


def _layer_norm_ref(x, g, b):
    mu = jnp.mean(x, axis=-1, keepdims=True)
    var = jnp.mean((x - mu) ** 2, axis=-1, keepdims=True)
    return (x - mu) / jnp.sqrt(var + LN_EPS) * g + b


def cross_att_ref(layer_params, pose, vel, img=None):
    def run(x, kv):
        for p in layer_params:
            memory = x
            y = _mha_ref(x, kv, kv, p)                                  # CrossLayers
            y = _layer_norm_ref(y, p["ln_att_g"], p["ln_att_b"])
            x = x + y
            z = _layer_norm_ref(x, p["ln_ffn_g"], p["ln_ffn_b"])
            u = z @ p["wup"] + p["bup"]
            u = u * jnp.tanh(jax.nn.softplus(u))                        # Mish
            x = x + (u @ p["wdown"] + p["bdown"])
            x = _layer_norm_ref(x, p["ln_out_g"], p["ln_out_b"]) + memory   # CrossAtt
        return x

    img_out = run(pose, img) if img is not None else None
    pose_out = run(pose, vel)
    return pose_out, img_out


if __name__ == "__main__":
    key = jax.random.PRNGKey(0)
    bound = 1.0 / math.sqrt(D_MODEL)
    bound_f = 1.0 / math.sqrt(FFN_HIDDEN)

    def uni(kk, shape, b):
        return jax.random.uniform(kk, shape, jnp.float32, -b, b)

    layer_params = []
    for _ in range(LAYERS):
        key, *ks = jax.random.split(key, 20)
        layer_params.append({
            "wq": uni(ks[0], (D_MODEL, D_MODEL), bound), "bq": uni(ks[1], (1, D_MODEL), bound),
            "wk": uni(ks[2], (D_MODEL, D_MODEL), bound), "bk": uni(ks[3], (1, D_MODEL), bound),
            "wv": uni(ks[4], (D_MODEL, D_MODEL), bound), "bv": uni(ks[5], (1, D_MODEL), bound),
            "wo": uni(ks[6], (D_MODEL, D_MODEL), bound), "bo": uni(ks[7], (1, D_MODEL), bound),
            "wup": uni(ks[8], (D_MODEL, FFN_HIDDEN), bound), "bup": uni(ks[9], (1, FFN_HIDDEN), bound),
            "wdown": uni(ks[10], (FFN_HIDDEN, D_MODEL), bound_f), "bdown": uni(ks[11], (1, D_MODEL), bound_f),
            "ln_att_g": 1.0 + 0.1 * jax.random.normal(ks[12], (1, D_MODEL), jnp.float32),
            "ln_att_b": 0.1 * jax.random.normal(ks[13], (1, D_MODEL), jnp.float32),
            "ln_ffn_g": 1.0 + 0.1 * jax.random.normal(ks[14], (1, D_MODEL), jnp.float32),
            "ln_ffn_b": 0.1 * jax.random.normal(ks[15], (1, D_MODEL), jnp.float32),
            "ln_out_g": 1.0 + 0.1 * jax.random.normal(ks[16], (1, D_MODEL), jnp.float32),
            "ln_out_b": 0.1 * jax.random.normal(ks[17], (1, D_MODEL), jnp.float32),
        })

    packed = pack_params(layer_params)

    key, k1, k2, k3 = jax.random.split(key, 4)
    pose = jax.random.normal(k1, (BATCH, SEQ, D_MODEL), jnp.float32)
    vel = jax.random.normal(k2, (BATCH, SEQ, D_MODEL), jnp.float32)
    img = jax.random.normal(k3, (BATCH, SEQ, D_MODEL), jnp.float32)

    pose_out, img_out = cross_att_forward(packed, pose, vel, img=img)
    pose_out = jax.block_until_ready(pose_out)
    img_out = jax.block_until_ready(img_out)

    pose_ref, img_ref = cross_att_ref(layer_params, pose, vel, img=img)

    assert pose_out.shape == (BATCH, SEQ, D_MODEL)
    assert img_out.shape == (BATCH, SEQ, D_MODEL)
    assert np.allclose(np.asarray(pose_out), np.asarray(pose_ref), atol=2e-3, rtol=2e-3)
    assert np.allclose(np.asarray(img_out), np.asarray(img_ref), atol=2e-3, rtol=2e-3)

    print("KERNEL_OK")
</pallas_src>

<mosaic_0001>
module attributes {stable_mosaic.version = 11 : i64} {
  func.func @cross_att_kernel(%arg0: i32, %arg1: memref<16x32xf32, #tpu.memory_space<vmem>>, %arg2: memref<8x8x32xf32, #tpu.memory_space<vmem>>, %arg3: memref<8x8xf32, #tpu.memory_space<vmem>>, %arg4: memref<1x8x32x8xf32, #tpu.memory_space<vmem>>, %arg5: memref<1x8x1x8xf32, #tpu.memory_space<vmem>>, %arg6: memref<1x8x32x8xf32, #tpu.memory_space<vmem>>, %arg7: memref<1x8x1x8xf32, #tpu.memory_space<vmem>>, %arg8: memref<1x8x32x8xf32, #tpu.memory_space<vmem>>, %arg9: memref<1x8x1x8xf32, #tpu.memory_space<vmem>>, %arg10: memref<1x8x8x32xf32, #tpu.memory_space<vmem>>, %arg11: memref<1x1x32xf32, #tpu.memory_space<vmem>>, %arg12: memref<1x6x32xf32, #tpu.memory_space<vmem>>, %arg13: memref<1x32x96xf32, #tpu.memory_space<vmem>>, %arg14: memref<1x1x96xf32, #tpu.memory_space<vmem>>, %arg15: memref<1x96x32xf32, #tpu.memory_space<vmem>>, %arg16: memref<1x1x32xf32, #tpu.memory_space<vmem>>, %arg17: memref<16x32xf32, #tpu.memory_space<vmem>>) attributes {dimension_semantics = [#tpu.dimension_semantics<arbitrary>], iteration_bounds = array<i64: 2>, scalar_prefetch = 0 : i64, scratch_operands = 0 : i64, tpu.core_type = #tpu.core_type<tc>, window_params = [{pipeline_mode = #tpu.pipeline_mode<synchronous>, transform_indices = @transform_0, window_bounds = array<i64: 16, 32>}, {pipeline_mode = #tpu.pipeline_mode<synchronous>, transform_indices = @transform_1, window_bounds = array<i64: 8, 8, 32>}, {pipeline_mode = #tpu.pipeline_mode<synchronous>, transform_indices = @transform_2, window_bounds = array<i64: 8, 8>}, {transform_indices = @transform_3, window_bounds = array<i64: 1, 8, 32, 8>}, {transform_indices = @transform_4, window_bounds = array<i64: 1, 8, 1, 8>}, {transform_indices = @transform_5, window_bounds = array<i64: 1, 8, 32, 8>}, {transform_indices = @transform_6, window_bounds = array<i64: 1, 8, 1, 8>}, {transform_indices = @transform_7, window_bounds = array<i64: 1, 8, 32, 8>}, {transform_indices = @transform_8, window_bounds = array<i64: 1, 8, 1, 8>}, {transform_indices = @transform_9, window_bounds = array<i64: 1, 8, 8, 32>}, {transform_indices = @transform_10, window_bounds = array<i64: 1, 1, 32>}, {transform_indices = @transform_11, window_bounds = array<i64: 1, 6, 32>}, {transform_indices = @transform_12, window_bounds = array<i64: 1, 32, 96>}, {transform_indices = @transform_13, window_bounds = array<i64: 1, 1, 96>}, {transform_indices = @transform_14, window_bounds = array<i64: 1, 96, 32>}, {transform_indices = @transform_15, window_bounds = array<i64: 1, 1, 32>}, {pipeline_mode = #tpu.pipeline_mode<synchronous>, transform_indices = @transform_16, window_bounds = array<i64: 16, 32>}]} {
    %c0_i32 = arith.constant 0 : i32
    %0 = arith.cmpi eq, %arg0, %c0_i32 : i32
    %1 = arith.extui %0 : i1 to i32
    %c0_i32_0 = arith.constant 0 : i32
    %2 = arith.cmpi ne, %1, %c0_i32_0 : i32
    scf.if %2 {
      %c0_95 = arith.constant 0 : index
      %c0_96 = arith.constant 0 : index
      %288 = vector.load %arg1[%c0_95, %c0_96] : memref<16x32xf32, #tpu.memory_space<vmem>>, vector<16x32xf32>
      %c0_97 = arith.constant 0 : index
      %c0_98 = arith.constant 0 : index
      %289 = vector.load %arg17[%c0_97, %c0_98] : memref<16x32xf32, #tpu.memory_space<vmem>>, vector<16x32xf32>
      tpu.vector_store %arg17[%c0_97, %c0_98], %288 {strides = array<i32>} : memref<16x32xf32, #tpu.memory_space<vmem>>, vector<16x32xf32>,
    } else {
    }
    %c0 = arith.constant 0 : index
    %c0_1 = arith.constant 0 : index
    %3 = vector.load %arg17[%c0, %c0_1] : memref<16x32xf32, #tpu.memory_space<vmem>>, vector<16x32xf32>
    %c0_2 = arith.constant 0 : index
    %c0_3 = arith.constant 0 : index
    %4 = vector.load %arg3[%c0_2, %c0_3] : memref<8x8xf32, #tpu.memory_space<vmem>>, vector<8x8xf32>
    %c0_4 = arith.constant 0 : index
    %c0_5 = arith.constant 0 : index
    %c0_6 = arith.constant 0 : index
    %5 = vector.load %arg2[%c0_4, %c0_5, %c0_6] : memref<8x8x32xf32, #tpu.memory_space<vmem>>, vector<8x8x32xf32>
    %6 = vector.shape_cast %3 : vector<16x32xf32> to vector<2x1x8x32xf32>
    %7 = vector.shape_cast %6 : vector<2x1x8x32xf32> to vector<2x1x8x32xf32>
    %8 = vector.broadcast %7 : vector<2x1x8x32xf32> to vector<2x4x8x32xf32>
    %9 = vector.shape_cast %8 : vector<2x4x8x32xf32> to vector<8x8x32xf32>
    %c0_7 = arith.constant 0 : index
    %c0_8 = arith.constant 0 : index
    %c0_9 = arith.constant 0 : index
    %c0_10 = arith.constant 0 : index
    %10 = vector.load %arg4[%c0_7, %c0_8, %c0_9, %c0_10] : memref<1x8x32x8xf32, #tpu.memory_space<vmem>>, vector<1x8x32x8xf32>
    %11 = vector.shape_cast %10 : vector<1x8x32x8xf32> to vector<8x32x8xf32>
    "tpu.trace_start"() <{level = 10 : i32, message = "gtd,gdf->gtf"}> : () -> ()
    %cst = arith.constant dense<0.000000e+00> : vector<8x8x8xf32>
    %12 = tpu.matmul %9, %11, %cst {dimension_numbers = #tpu.dot_dimension_numbers<[2], [1], [1], [2], [0, 0, 0, 1, 1, 2], [0], [0]>} : vector<8x8x32xf32>, vector<8x32x8xf32>, vector<8x8x8xf32> -> vector<8x8x8xf32>
    "tpu.trace_stop"() : () -> ()
    %c0_11 = arith.constant 0 : index
    %c0_12 = arith.constant 0 : index
    %c0_13 = arith.constant 0 : index
    %c0_14 = arith.constant 0 : index
    %13 = vector.load %arg5[%c0_11, %c0_12, %c0_13, %c0_14] : memref<1x8x1x8xf32, #tpu.memory_space<vmem>>, vector<1x8x1x8xf32>
    %14 = vector.shape_cast %13 : vector<1x8x1x8xf32> to vector<8x1x8xf32>
    %15 = vector.broadcast %14 : vector<8x1x8xf32> to vector<8x8x8xf32>
    %16 = arith.addf %12, %15 : vector<8x8x8xf32>
    %c0_15 = arith.constant 0 : index
    %c0_16 = arith.constant 0 : index
    %c0_17 = arith.constant 0 : index
    %c0_18 = arith.constant 0 : index
    %17 = vector.load %arg6[%c0_15, %c0_16, %c0_17, %c0_18] : memref<1x8x32x8xf32, #tpu.memory_space<vmem>>, vector<1x8x32x8xf32>
    %18 = vector.shape_cast %17 : vector<1x8x32x8xf32> to vector<8x32x8xf32>
    "tpu.trace_start"() <{level = 10 : i32, message = "gtd,gdf->gtf"}> : () -> ()
    %cst_19 = arith.constant dense<0.000000e+00> : vector<8x8x8xf32>
    %19 = tpu.matmul %5, %18, %cst_19 {dimension_numbers = #tpu.dot_dimension_numbers<[2], [1], [1], [2], [0, 0, 0, 1, 1, 2], [0], [0]>} : vector<8x8x32xf32>, vector<8x32x8xf32>, vector<8x8x8xf32> -> vector<8x8x8xf32>
    "tpu.trace_stop"() : () -> ()
    %c0_20 = arith.constant 0 : index
    %c0_21 = arith.constant 0 : index
    %c0_22 = arith.constant 0 : index
    %c0_23 = arith.constant 0 : index
    %20 = vector.load %arg7[%c0_20, %c0_21, %c0_22, %c0_23] : memref<1x8x1x8xf32, #tpu.memory_space<vmem>>, vector<1x8x1x8xf32>
    %21 = vector.shape_cast %20 : vector<1x8x1x8xf32> to vector<8x1x8xf32>
    %22 = vector.broadcast %21 : vector<8x1x8xf32> to vector<8x8x8xf32>
    %23 = arith.addf %19, %22 : vector<8x8x8xf32>
    %c0_24 = arith.constant 0 : index
    %c0_25 = arith.constant 0 : index
    %c0_26 = arith.constant 0 : index
    %c0_27 = arith.constant 0 : index
    %24 = vector.load %arg8[%c0_24, %c0_25, %c0_26, %c0_27] : memref<1x8x32x8xf32, #tpu.memory_space<vmem>>, vector<1x8x32x8xf32>
    %25 = vector.shape_cast %24 : vector<1x8x32x8xf32> to vector<8x32x8xf32>
    "tpu.trace_start"() <{level = 10 : i32, message = "gtd,gdf->gtf"}> : () -> ()
    %cst_28 = arith.constant dense<0.000000e+00> : vector<8x8x8xf32>
    %26 = tpu.matmul %5, %25, %cst_28 {dimension_numbers = #tpu.dot_dimension_numbers<[2], [1], [1], [2], [0, 0, 0, 1, 1, 2], [0], [0]>} : vector<8x8x32xf32>, vector<8x32x8xf32>, vector<8x8x8xf32> -> vector<8x8x8xf32>
    "tpu.trace_stop"() : () -> ()
    %c0_29 = arith.constant 0 : index
    %c0_30 = arith.constant 0 : index
    %c0_31 = arith.constant 0 : index
    %c0_32 = arith.constant 0 : index
    %27 = vector.load %arg9[%c0_29, %c0_30, %c0_31, %c0_32] : memref<1x8x1x8xf32, #tpu.memory_space<vmem>>, vector<1x8x1x8xf32>
    %28 = vector.shape_cast %27 : vector<1x8x1x8xf32> to vector<8x1x8xf32>
    %29 = vector.broadcast %28 : vector<8x1x8xf32> to vector<8x8x8xf32>
    %30 = arith.addf %26, %29 : vector<8x8x8xf32>
    "tpu.trace_start"() <{level = 10 : i32, message = "gqd,gkd->gqk"}> : () -> ()
    %cst_33 = arith.constant dense<0.000000e+00> : vector<8x8x8xf32>
    %31 = tpu.matmul %16, %23, %cst_33 {dimension_numbers = #tpu.dot_dimension_numbers<[2], [2], [1], [1], [0, 0, 0, 1, 1, 1], [0], [0]>} : vector<8x8x8xf32>, vector<8x8x8xf32>, vector<8x8x8xf32> -> vector<8x8x8xf32>
    "tpu.trace_stop"() : () -> ()
    %cst_34 = arith.constant 0.353553385 : f32
    %32 = vector.broadcast %cst_34 : f32 to vector<8x8x8xf32>
    %33 = arith.mulf %31, %32 : vector<8x8x8xf32>
    %34 = vector.shape_cast %33 : vector<8x8x8xf32> to vector<64x8xf32>
    %cst_35 = arith.constant dense<0.000000e+00> : vector<8x64xf32>
    %35 = tpu.matmul %4, %34, %cst_35 {dimension_numbers = #tpu.dot_dimension_numbers<[1], [1], [0], [0], [0, 0, 1, 0], [], []>} : vector<8x8xf32>, vector<64x8xf32>, vector<8x64xf32> -> vector<8x64xf32>
    %cst_36 = arith.constant dense<0xFF800000> : vector<64xf32>
    %36 = vector.multi_reduction <maximumf>, %35, %cst_36 [0] : vector<8x64xf32> to vector<64xf32>
    %37 = vector.shape_cast %36 : vector<64xf32> to vector<1x64xf32>
    %38 = vector.broadcast %37 : vector<1x64xf32> to vector<8x64xf32>
    %39 = arith.subf %35, %38 : vector<8x64xf32>
    %cst_37 = arith.constant 5.000000e-01 : f32
    %40 = vector.broadcast %cst_37 : f32 to vector<8x64xf32>
    %41 = arith.mulf %39, %40 : vector<8x64xf32>
    %42 = vector.shape_cast %41 : vector<8x64xf32> to vector<8x1x64xf32>
    %43 = vector.shape_cast %41 : vector<8x64xf32> to vector<1x8x64xf32>
    %44 = vector.broadcast %42 : vector<8x1x64xf32> to vector<8x8x64xf32>
    %45 = vector.broadcast %43 : vector<1x8x64xf32> to vector<8x8x64xf32>
    %46 = arith.cmpf oge, %44, %45 : vector<8x8x64xf32>
    %47 = arith.extui %46 : vector<8x8x64xi1> to vector<8x8x64xi32>
    %48 = arith.sitofp %47 : vector<8x8x64xi32> to vector<8x8x64xf32>
    %49 = vector.extract_strided_slice %48 {offsets = [0, 0, 0], sizes = [1, 8, 64], strides = [1, 1, 1]} : vector<8x8x64xf32> to vector<1x8x64xf32>
    %50 = vector.shape_cast %49 : vector<1x8x64xf32> to vector<8x64xf32>
    %51 = vector.extract_strided_slice %48 {offsets = [1, 0, 0], sizes = [1, 8, 64], strides = [1, 1, 1]} : vector<8x8x64xf32> to vector<1x8x64xf32>
    %52 = vector.shape_cast %51 : vector<1x8x64xf32> to vector<8x64xf32>
    %53 = arith.addf %50, %52 : vector<8x64xf32>
    %54 = vector.extract_strided_slice %48 {offsets = [2, 0, 0], sizes = [1, 8, 64], strides = [1, 1, 1]} : vector<8x8x64xf32> to vector<1x8x64xf32>
    %55 = vector.shape_cast %54 : vector<1x8x64xf32> to vector<8x64xf32>
    %56 = arith.addf %53, %55 : vector<8x64xf32>
    %57 = vector.extract_strided_slice %48 {offsets = [3, 0, 0], sizes = [1, 8, 64], strides = [1, 1, 1]} : vector<8x8x64xf32> to vector<1x8x64xf32>
    %58 = vector.shape_cast %57 : vector<1x8x64xf32> to vector<8x64xf32>
    %59 = arith.addf %56, %58 : vector<8x64xf32>
    %60 = vector.extract_strided_slice %48 {offsets = [4, 0, 0], sizes = [1, 8, 64], strides = [1, 1, 1]} : vector<8x8x64xf32> to vector<1x8x64xf32>
    %61 = vector.shape_cast %60 : vector<1x8x64xf32> to vector<8x64xf32>
    %62 = arith.addf %59, %61 : vector<8x64xf32>
    %63 = vector.extract_strided_slice %48 {offsets = [5, 0, 0], sizes = [1, 8, 64], strides = [1, 1, 1]} : vector<8x8x64xf32> to vector<1x8x64xf32>
    %64 = vector.shape_cast %63 : vector<1x8x64xf32> to vector<8x64xf32>
    %65 = arith.addf %62, %64 : vector<8x64xf32>
    %66 = vector.extract_strided_slice %48 {offsets = [6, 0, 0], sizes = [1, 8, 64], strides = [1, 1, 1]} : vector<8x8x64xf32> to vector<1x8x64xf32>
    %67 = vector.shape_cast %66 : vector<1x8x64xf32> to vector<8x64xf32>
    %68 = arith.addf %65, %67 : vector<8x64xf32>
    %69 = vector.extract_strided_slice %48 {offsets = [7, 0, 0], sizes = [1, 8, 64], strides = [1, 1, 1]} : vector<8x8x64xf32> to vector<1x8x64xf32>
    %70 = vector.shape_cast %69 : vector<1x8x64xf32> to vector<8x64xf32>
    %71 = arith.addf %68, %70 : vector<8x64xf32>
    %72 = vector.broadcast %42 : vector<8x1x64xf32> to vector<8x8x64xf32>
    %73 = arith.mulf %48, %72 : vector<8x8x64xf32>
    %74 = vector.extract_strided_slice %73 {offsets = [0, 0, 0], sizes = [1, 8, 64], strides = [1, 1, 1]} : vector<8x8x64xf32> to vector<1x8x64xf32>
    %75 = vector.shape_cast %74 : vector<1x8x64xf32> to vector<8x64xf32>
    %76 = vector.extract_strided_slice %73 {offsets = [1, 0, 0], sizes = [1, 8, 64], strides = [1, 1, 1]} : vector<8x8x64xf32> to vector<1x8x64xf32>
    %77 = vector.shape_cast %76 : vector<1x8x64xf32> to vector<8x64xf32>
    %78 = arith.addf %75, %77 : vector<8x64xf32>
    %79 = vector.extract_strided_slice %73 {offsets = [2, 0, 0], sizes = [1, 8, 64], strides = [1, 1, 1]} : vector<8x8x64xf32> to vector<1x8x64xf32>
    %80 = vector.shape_cast %79 : vector<1x8x64xf32> to vector<8x64xf32>
    %81 = arith.addf %78, %80 : vector<8x64xf32>
    %82 = vector.extract_strided_slice %73 {offsets = [3, 0, 0], sizes = [1, 8, 64], strides = [1, 1, 1]} : vector<8x8x64xf32> to vector<1x8x64xf32>
    %83 = vector.shape_cast %82 : vector<1x8x64xf32> to vector<8x64xf32>
    %84 = arith.addf %81, %83 : vector<8x64xf32>
    %85 = vector.extract_strided_slice %73 {offsets = [4, 0, 0], sizes = [1, 8, 64], strides = [1, 1, 1]} : vector<8x8x64xf32> to vector<1x8x64xf32>
    %86 = vector.shape_cast %85 : vector<1x8x64xf32> to vector<8x64xf32>
    %87 = arith.addf %84, %86 : vector<8x64xf32>
    %88 = vector.extract_strided_slice %73 {offsets = [5, 0, 0], sizes = [1, 8, 64], strides = [1, 1, 1]} : vector<8x8x64xf32> to vector<1x8x64xf32>
    %89 = vector.shape_cast %88 : vector<1x8x64xf32> to vector<8x64xf32>
    %90 = arith.addf %87, %89 : vector<8x64xf32>
    %91 = vector.extract_strided_slice %73 {offsets = [6, 0, 0], sizes = [1, 8, 64], strides = [1, 1, 1]} : vector<8x8x64xf32> to vector<1x8x64xf32>
    %92 = vector.shape_cast %91 : vector<1x8x64xf32> to vector<8x64xf32>
    %93 = arith.addf %90, %92 : vector<8x64xf32>
    %94 = vector.extract_strided_slice %73 {offsets = [7, 0, 0], sizes = [1, 8, 64], strides = [1, 1, 1]} : vector<8x8x64xf32> to vector<1x8x64xf32>
    %95 = vector.shape_cast %94 : vector<1x8x64xf32> to vector<8x64xf32>
    %96 = arith.addf %93, %95 : vector<8x64xf32>
    %97 = arith.mulf %42, %42 : vector<8x1x64xf32>
    %98 = vector.broadcast %97 : vector<8x1x64xf32> to vector<8x8x64xf32>
    %99 = arith.mulf %48, %98 : vector<8x8x64xf32>
    %100 = vector.extract_strided_slice %99 {offsets = [0, 0, 0], sizes = [1, 8, 64], strides = [1, 1, 1]} : vector<8x8x64xf32> to vector<1x8x64xf32>
    %101 = vector.shape_cast %100 : vector<1x8x64xf32> to vector<8x64xf32>
    %102 = vector.extract_strided_slice %99 {offsets = [1, 0, 0], sizes = [1, 8, 64], strides = [1, 1, 1]} : vector<8x8x64xf32> to vector<1x8x64xf32>
    %103 = vector.shape_cast %102 : vector<1x8x64xf32> to vector<8x64xf32>
    %104 = arith.addf %101, %103 : vector<8x64xf32>
    %105 = vector.extract_strided_slice %99 {offsets = [2, 0, 0], sizes = [1, 8, 64], strides = [1, 1, 1]} : vector<8x8x64xf32> to vector<1x8x64xf32>
    %106 = vector.shape_cast %105 : vector<1x8x64xf32> to vector<8x64xf32>
    %107 = arith.addf %104, %106 : vector<8x64xf32>
    %108 = vector.extract_strided_slice %99 {offsets = [3, 0, 0], sizes = [1, 8, 64], strides = [1, 1, 1]} : vector<8x8x64xf32> to vector<1x8x64xf32>
    %109 = vector.shape_cast %108 : vector<1x8x64xf32> to vector<8x64xf32>
    %110 = arith.addf %107, %109 : vector<8x64xf32>
    %111 = vector.extract_strided_slice %99 {offsets = [4, 0, 0], sizes = [1, 8, 64], strides = [1, 1, 1]} : vector<8x8x64xf32> to vector<1x8x64xf32>
    %112 = vector.shape_cast %111 : vector<1x8x64xf32> to vector<8x64xf32>
    %113 = arith.addf %110, %112 : vector<8x64xf32>
    %114 = vector.extract_strided_slice %99 {offsets = [5, 0, 0], sizes = [1, 8, 64], strides = [1, 1, 1]} : vector<8x8x64xf32> to vector<1x8x64xf32>
    %115 = vector.shape_cast %114 : vector<1x8x64xf32> to vector<8x64xf32>
    %116 = arith.addf %113, %115 : vector<8x64xf32>
    %117 = vector.extract_strided_slice %99 {offsets = [6, 0, 0], sizes = [1, 8, 64], strides = [1, 1, 1]} : vector<8x8x64xf32> to vector<1x8x64xf32>
    %118 = vector.shape_cast %117 : vector<1x8x64xf32> to vector<8x64xf32>
    %119 = arith.addf %116, %118 : vector<8x64xf32>
    %120 = vector.extract_strided_slice %99 {offsets = [7, 0, 0], sizes = [1, 8, 64], strides = [1, 1, 1]} : vector<8x8x64xf32> to vector<1x8x64xf32>
    %121 = vector.shape_cast %120 : vector<1x8x64xf32> to vector<8x64xf32>
    %122 = arith.addf %119, %121 : vector<8x64xf32>
    %123 = tpu.reciprocal %71 {approx = true} : vector<8x64xf32> -> vector<8x64xf32>
    %124 = arith.mulf %71, %123 : vector<8x64xf32>
    %cst_38 = arith.constant 2.000000e+00 : f32
    %125 = vector.broadcast %cst_38 : f32 to vector<8x64xf32>
    %126 = arith.subf %125, %124 : vector<8x64xf32>
    %127 = arith.mulf %123, %126 : vector<8x64xf32>
    %128 = arith.mulf %96, %127 : vector<8x64xf32>
    %129 = arith.mulf %122, %127 : vector<8x64xf32>
    %130 = arith.mulf %128, %128 : vector<8x64xf32>
    %131 = arith.subf %129, %130 : vector<8x64xf32>
    %132 = arith.mulf %71, %131 : vector<8x64xf32>
    %cst_39 = arith.constant 1.000000e+00 : f32
    %133 = vector.broadcast %cst_39 : f32 to vector<8x64xf32>
    %134 = arith.subf %133, %132 : vector<8x64xf32>
    %135 = arith.mulf %134, %127 : vector<8x64xf32>
    %cst_40 = arith.constant 0.000000e+00 : f32
    %136 = vector.broadcast %cst_40 : f32 to vector<8x64xf32>
    %137 = arith.maximumf %135, %136 : vector<8x64xf32>
    %138 = math.sqrt %137 : vector<8x64xf32>
    %139 = arith.subf %128, %138 : vector<8x64xf32>
    %140 = arith.cmpf ole, %139, %41 : vector<8x64xf32>
    %cst_41 = arith.constant 0.000000e+00 : f32
    %141 = vector.broadcast %cst_41 : f32 to vector<8x64xf32>
    %142 = arith.select %140, %71, %141 : vector<8x64xi1>, vector<8x64xf32>
    %cst_42 = arith.constant dense<0xFF800000> : vector<64xf32>
    %143 = vector.multi_reduction <maximumf>, %142, %cst_42 [0] : vector<8x64xf32> to vector<64xf32>
    %144 = vector.shape_cast %143 : vector<64xf32> to vector<1x64xf32>
    %145 = vector.broadcast %144 : vector<1x64xf32> to vector<8x64xf32>
    %146 = arith.cmpf oeq, %71, %145 : vector<8x64xf32>
    %147 = arith.andi %140, %146 : vector<8x64xi1>
    %148 = arith.extui %147 : vector<8x64xi1> to vector<8x64xi32>
    %149 = arith.sitofp %148 : vector<8x64xi32> to vector<8x64xf32>
    %cst_43 = arith.constant dense<0.000000e+00> : vector<64xf32>
    %150 = vector.multi_reduction <add>, %149, %cst_43 [0] : vector<8x64xf32> to vector<64xf32>
    %151 = vector.shape_cast %150 : vector<64xf32> to vector<1x64xf32>
    %cst_44 = arith.constant 0.000000e+00 : f32
    %152 = vector.broadcast %cst_44 : f32 to vector<8x64xf32>
    %153 = arith.select %147, %139, %152 : vector<8x64xi1>, vector<8x64xf32>
    %cst_45 = arith.constant dense<0.000000e+00> : vector<64xf32>
    %154 = vector.multi_reduction <add>, %153, %cst_45 [0] : vector<8x64xf32> to vector<64xf32>
    %155 = vector.shape_cast %154 : vector<64xf32> to vector<1x64xf32>
    %156 = tpu.reciprocal %151 {approx = true} : vector<1x64xf32> -> vector<1x64xf32>
    %157 = arith.mulf %151, %156 : vector<1x64xf32>
    %cst_46 = arith.constant 2.000000e+00 : f32
    %158 = vector.broadcast %cst_46 : f32 to vector<1x64xf32>
    %159 = arith.subf %158, %157 : vector<1x64xf32>
    %160 = arith.mulf %156, %159 : vector<1x64xf32>
    %161 = arith.mulf %155, %160 : vector<1x64xf32>
    %162 = vector.broadcast %161 : vector<1x64xf32> to vector<8x64xf32>
    %163 = arith.subf %41, %162 : vector<8x64xf32>
    %cst_47 = arith.constant 0.000000e+00 : f32
    %164 = vector.broadcast %cst_47 : f32 to vector<8x64xf32>
    %165 = arith.maximumf %163, %164 : vector<8x64xf32>
    %166 = arith.mulf %165, %165 : vector<8x64xf32>
    %cst_48 = arith.constant dense<0.000000e+00> : vector<64x8xf32>
    %167 = tpu.matmul %166, %4, %cst_48 {dimension_numbers = #tpu.dot_dimension_numbers<[0], [0], [1], [1], [0, 1, 1, 1], [], []>} : vector<8x64xf32>, vector<8x8xf32>, vector<64x8xf32> -> vector<64x8xf32>
    %168 = vector.shape_cast %167 : vector<64x8xf32> to vector<8x8x8xf32>
    "tpu.trace_start"() <{level = 10 : i32, message = "gqk,gkd->gqd"}> : () -> ()
    %cst_49 = arith.constant dense<0.000000e+00> : vector<8x8x8xf32>
    %169 = tpu.matmul %168, %30, %cst_49 {dimension_numbers = #tpu.dot_dimension_numbers<[2], [1], [1], [2], [0, 0, 0, 1, 1, 2], [0], [0]>} : vector<8x8x8xf32>, vector<8x8x8xf32>, vector<8x8x8xf32> -> vector<8x8x8xf32>
    "tpu.trace_stop"() : () -> ()
    %c0_50 = arith.constant 0 : index
    %c0_51 = arith.constant 0 : index
    %c0_52 = arith.constant 0 : index
    %c0_53 = arith.constant 0 : index
    %170 = vector.load %arg10[%c0_50, %c0_51, %c0_52, %c0_53] : memref<1x8x8x32xf32, #tpu.memory_space<vmem>>, vector<1x8x8x32xf32>
    %171 = vector.shape_cast %170 : vector<1x8x8x32xf32> to vector<8x8x32xf32>
    "tpu.trace_start"() <{level = 10 : i32, message = "gqd,gdo->gqo"}> : () -> ()
    %cst_54 = arith.constant dense<0.000000e+00> : vector<8x8x32xf32>
    %172 = tpu.matmul %169, %171, %cst_54 {dimension_numbers = #tpu.dot_dimension_numbers<[2], [1], [1], [2], [0, 0, 0, 1, 1, 2], [0], [0]>} : vector<8x8x8xf32>, vector<8x8x32xf32>, vector<8x8x32xf32> -> vector<8x8x32xf32>
    "tpu.trace_stop"() : () -> ()
    %173 = vector.shape_cast %172 : vector<8x8x32xf32> to vector<2x4x8x32xf32>
    %174 = vector.extract_strided_slice %173 {offsets = [0, 0, 0, 0], sizes = [2, 1, 8, 32], strides = [1, 1, 1, 1]} : vector<2x4x8x32xf32> to vector<2x1x8x32xf32>
    %175 = vector.shape_cast %174 : vector<2x1x8x32xf32> to vector<2x8x32xf32>
    %176 = vector.extract_strided_slice %173 {offsets = [0, 1, 0, 0], sizes = [2, 1, 8, 32], strides = [1, 1, 1, 1]} : vector<2x4x8x32xf32> to vector<2x1x8x32xf32>
    %177 = vector.shape_cast %176 : vector<2x1x8x32xf32> to vector<2x8x32xf32>
    %178 = arith.addf %175, %177 : vector<2x8x32xf32>
    %179 = vector.extract_strided_slice %173 {offsets = [0, 2, 0, 0], sizes = [2, 1, 8, 32], strides = [1, 1, 1, 1]} : vector<2x4x8x32xf32> to vector<2x1x8x32xf32>
    %180 = vector.shape_cast %179 : vector<2x1x8x32xf32> to vector<2x8x32xf32>
    %181 = arith.addf %178, %180 : vector<2x8x32xf32>
    %182 = vector.extract_strided_slice %173 {offsets = [0, 3, 0, 0], sizes = [2, 1, 8, 32], strides = [1, 1, 1, 1]} : vector<2x4x8x32xf32> to vector<2x1x8x32xf32>
    %183 = vector.shape_cast %182 : vector<2x1x8x32xf32> to vector<2x8x32xf32>
    %184 = arith.addf %181, %183 : vector<2x8x32xf32>
    %185 = vector.shape_cast %184 : vector<2x8x32xf32> to vector<16x32xf32>
    %c0_55 = arith.constant 0 : index
    %c0_56 = arith.constant 0 : index
    %c0_57 = arith.constant 0 : index
    %186 = vector.load %arg11[%c0_55, %c0_56, %c0_57] : memref<1x1x32xf32, #tpu.memory_space<vmem>>, vector<1x1x32xf32>
    %187 = vector.shape_cast %186 : vector<1x1x32xf32> to vector<1x32xf32>
    %188 = vector.broadcast %187 : vector<1x32xf32> to vector<16x32xf32>
    %189 = arith.addf %185, %188 : vector<16x32xf32>
    %c0_58 = arith.constant 0 : index
    %c0_59 = arith.constant 0 : index
    %c0_60 = arith.constant 0 : index
    %190 = vector.load %arg12[%c0_58, %c0_59, %c0_60] : memref<1x6x32xf32, #tpu.memory_space<vmem>>, vector<1x6x32xf32>
    %191 = vector.shape_cast %190 : vector<1x6x32xf32> to vector<6x32xf32>
    %192 = vector.extract_strided_slice %191 {offsets = [0, 0], sizes = [1, 32], strides = [1, 1]} : vector<6x32xf32> to vector<1x32xf32>
    %193 = vector.extract_strided_slice %191 {offsets = [1, 0], sizes = [1, 32], strides = [1, 1]} : vector<6x32xf32> to vector<1x32xf32>
    %cst_61 = arith.constant dense<0.000000e+00> : vector<16xf32>
    %194 = vector.multi_reduction <add>, %189, %cst_61 [1] : vector<16x32xf32> to vector<16xf32>
    %195 = vector.shape_cast %194 : vector<16xf32> to vector<16x1xf32>
    %cst_62 = arith.constant 3.200000e+01 : f32
    %196 = vector.broadcast %cst_62 : f32 to vector<16x1xf32>
    %197 = arith.divf %195, %196 : vector<16x1xf32>
    %198 = vector.broadcast %197 : vector<16x1xf32> to vector<16x32xf32>
    %199 = arith.subf %189, %198 : vector<16x32xf32>
    %200 = arith.mulf %199, %199 : vector<16x32xf32>
    %cst_63 = arith.constant dense<0.000000e+00> : vector<16xf32>
    %201 = vector.multi_reduction <add>, %200, %cst_63 [1] : vector<16x32xf32> to vector<16xf32>
    %202 = vector.shape_cast %201 : vector<16xf32> to vector<16x1xf32>
    %cst_64 = arith.constant 3.200000e+01 : f32
    %203 = vector.broadcast %cst_64 : f32 to vector<16x1xf32>
    %204 = arith.divf %202, %203 : vector<16x1xf32>
    %cst_65 = arith.constant 9.99999974E-6 : f32
    %205 = vector.broadcast %cst_65 : f32 to vector<16x1xf32>
    %206 = arith.addf %204, %205 : vector<16x1xf32>
    %207 = math.rsqrt %206 : vector<16x1xf32>
    %208 = vector.broadcast %207 : vector<16x1xf32> to vector<16x32xf32>
    %209 = arith.mulf %199, %208 : vector<16x32xf32>
    %210 = vector.broadcast %192 : vector<1x32xf32> to vector<16x32xf32>
    %211 = arith.mulf %209, %210 : vector<16x32xf32>
    %212 = vector.broadcast %193 : vector<1x32xf32> to vector<16x32xf32>
    %213 = arith.addf %211, %212 : vector<16x32xf32>
    %214 = arith.addf %3, %213 : vector<16x32xf32>
    %215 = vector.extract_strided_slice %191 {offsets = [2, 0], sizes = [1, 32], strides = [1, 1]} : vector<6x32xf32> to vector<1x32xf32>
    %216 = vector.extract_strided_slice %191 {offsets = [3, 0], sizes = [1, 32], strides = [1, 1]} : vector<6x32xf32> to vector<1x32xf32>
    %cst_66 = arith.constant dense<0.000000e+00> : vector<16xf32>
    %217 = vector.multi_reduction <add>, %214, %cst_66 [1] : vector<16x32xf32> to vector<16xf32>
    %218 = vector.shape_cast %217 : vector<16xf32> to vector<16x1xf32>
    %cst_67 = arith.constant 3.200000e+01 : f32
    %219 = vector.broadcast %cst_67 : f32 to vector<16x1xf32>
    %220 = arith.divf %218, %219 : vector<16x1xf32>
    %221 = vector.broadcast %220 : vector<16x1xf32> to vector<16x32xf32>
    %222 = arith.subf %214, %221 : vector<16x32xf32>
    %223 = arith.mulf %222, %222 : vector<16x32xf32>
    %cst_68 = arith.constant dense<0.000000e+00> : vector<16xf32>
    %224 = vector.multi_reduction <add>, %223, %cst_68 [1] : vector<16x32xf32> to vector<16xf32>
    %225 = vector.shape_cast %224 : vector<16xf32> to vector<16x1xf32>
    %cst_69 = arith.constant 3.200000e+01 : f32
    %226 = vector.broadcast %cst_69 : f32 to vector<16x1xf32>
    %227 = arith.divf %225, %226 : vector<16x1xf32>
    %cst_70 = arith.constant 9.99999974E-6 : f32
    %228 = vector.broadcast %cst_70 : f32 to vector<16x1xf32>
    %229 = arith.addf %227, %228 : vector<16x1xf32>
    %230 = math.rsqrt %229 : vector<16x1xf32>
    %231 = vector.broadcast %230 : vector<16x1xf32> to vector<16x32xf32>
    %232 = arith.mulf %222, %231 : vector<16x32xf32>
    %233 = vector.broadcast %215 : vector<1x32xf32> to vector<16x32xf32>
    %234 = arith.mulf %232, %233 : vector<16x32xf32>
    %235 = vector.broadcast %216 : vector<1x32xf32> to vector<16x32xf32>
    %236 = arith.addf %234, %235 : vector<16x32xf32>
    %c0_71 = arith.constant 0 : index
    %c0_72 = arith.constant 0 : index
    %c0_73 = arith.constant 0 : index
    %237 = vector.load %arg13[%c0_71, %c0_72, %c0_73] : memref<1x32x96xf32, #tpu.memory_space<vmem>>, vector<1x32x96xf32>
    %238 = vector.shape_cast %237 : vector<1x32x96xf32> to vector<32x96xf32>
    %cst_74 = arith.constant dense<0.000000e+00> : vector<16x96xf32>
    %239 = tpu.matmul %236, %238, %cst_74 {dimension_numbers = #tpu.dot_dimension_numbers<[1], [0], [0], [1], [0, 0, 1, 1], [], []>} : vector<16x32xf32>, vector<32x96xf32>, vector<16x96xf32> -> vector<16x96xf32>
    %c0_75 = arith.constant 0 : index
    %c0_76 = arith.constant 0 : index
    %c0_77 = arith.constant 0 : index
    %240 = vector.load %arg14[%c0_75, %c0_76, %c0_77] : memref<1x1x96xf32, #tpu.memory_space<vmem>>, vector<1x1x96xf32>
    %241 = vector.shape_cast %240 : vector<1x1x96xf32> to vector<1x96xf32>
    %242 = vector.broadcast %241 : vector<1x96xf32> to vector<16x96xf32>
    %243 = arith.addf %239, %242 : vector<16x96xf32>
    %cst_78 = arith.constant 0.000000e+00 : f32
    %244 = vector.broadcast %cst_78 : f32 to vector<16x96xf32>
    %245 = arith.maximumf %243, %244 : vector<16x96xf32>
    %246 = math.absf %243 : vector<16x96xf32>
    %cst_79 = arith.constant 0.000000e+00 : f32
    %247 = vector.broadcast %cst_79 : f32 to vector<16x96xf32>
    %248 = arith.subf %247, %246 : vector<16x96xf32>
    %249 = math.exp %248 : vector<16x96xf32>
    %cst_80 = arith.constant 1.000000e+00 : f32
    %250 = vector.broadcast %cst_80 : f32 to vector<16x96xf32>
    %251 = arith.addf %250, %249 : vector<16x96xf32>
    %252 = math.log %251 : vector<16x96xf32>
    %253 = arith.addf %245, %252 : vector<16x96xf32>
    %254 = math.tanh %253 : vector<16x96xf32>
    %255 = arith.mulf %243, %254 : vector<16x96xf32>
    %c0_81 = arith.constant 0 : index
    %c0_82 = arith.constant 0 : index
    %c0_83 = arith.constant 0 : index
    %256 = vector.load %arg15[%c0_81, %c0_82, %c0_83] : memref<1x96x32xf32, #tpu.memory_space<vmem>>, vector<1x96x32xf32>
    %257 = vector.shape_cast %256 : vector<1x96x32xf32> to vector<96x32xf32>
    %cst_84 = arith.constant dense<0.000000e+00> : vector<16x32xf32>
    %258 = tpu.matmul %255, %257, %cst_84 {dimension_numbers = #tpu.dot_dimension_numbers<[1], [0], [0], [1], [0, 0, 1, 1], [], []>} : vector<16x96xf32>, vector<96x32xf32>, vector<16x32xf32> -> vector<16x32xf32>
    %c0_85 = arith.constant 0 : index
    %c0_86 = arith.constant 0 : index
    %c0_87 = arith.constant 0 : index
    %259 = vector.load %arg16[%c0_85, %c0_86, %c0_87] : memref<1x1x32xf32, #tpu.memory_space<vmem>>, vector<1x1x32xf32>
    %260 = vector.shape_cast %259 : vector<1x1x32xf32> to vector<1x32xf32>
    %261 = vector.broadcast %260 : vector<1x32xf32> to vector<16x32xf32>
    %262 = arith.addf %258, %261 : vector<16x32xf32>
    %263 = arith.addf %214, %262 : vector<16x32xf32>
    %264 = vector.extract_strided_slice %191 {offsets = [4, 0], sizes = [1, 32], strides = [1, 1]} : vector<6x32xf32> to vector<1x32xf32>
    %265 = vector.extract_strided_slice %191 {offsets = [5, 0], sizes = [1, 32], strides = [1, 1]} : vector<6x32xf32> to vector<1x32xf32>
    %cst_88 = arith.constant dense<0.000000e+00> : vector<16xf32>
    %266 = vector.multi_reduction <add>, %263, %cst_88 [1] : vector<16x32xf32> to vector<16xf32>
    %267 = vector.shape_cast %266 : vector<16xf32> to vector<16x1xf32>
    %cst_89 = arith.constant 3.200000e+01 : f32
    %268 = vector.broadcast %cst_89 : f32 to vector<16x1xf32>
    %269 = arith.divf %267, %268 : vector<16x1xf32>
    %270 = vector.broadcast %269 : vector<16x1xf32> to vector<16x32xf32>
    %271 = arith.subf %263, %270 : vector<16x32xf32>
    %272 = arith.mulf %271, %271 : vector<16x32xf32>
    %cst_90 = arith.constant dense<0.000000e+00> : vector<16xf32>
    %273 = vector.multi_reduction <add>, %272, %cst_90 [1] : vector<16x32xf32> to vector<16xf32>
    %274 = vector.shape_cast %273 : vector<16xf32> to vector<16x1xf32>
    %cst_91 = arith.constant 3.200000e+01 : f32
    %275 = vector.broadcast %cst_91 : f32 to vector<16x1xf32>
    %276 = arith.divf %274, %275 : vector<16x1xf32>
    %cst_92 = arith.constant 9.99999974E-6 : f32
    %277 = vector.broadcast %cst_92 : f32 to vector<16x1xf32>
    %278 = arith.addf %276, %277 : vector<16x1xf32>
    %279 = math.rsqrt %278 : vector<16x1xf32>
    %280 = vector.broadcast %279 : vector<16x1xf32> to vector<16x32xf32>
    %281 = arith.mulf %271, %280 : vector<16x32xf32>
    %282 = vector.broadcast %264 : vector<1x32xf32> to vector<16x32xf32>
    %283 = arith.mulf %281, %282 : vector<16x32xf32>
    %284 = vector.broadcast %265 : vector<1x32xf32> to vector<16x32xf32>
    %285 = arith.addf %283, %284 : vector<16x32xf32>
    %286 = arith.addf %285, %3 : vector<16x32xf32>
    %c0_93 = arith.constant 0 : index
    %c0_94 = arith.constant 0 : index
    %287 = vector.load %arg17[%c0_93, %c0_94] : memref<16x32xf32, #tpu.memory_space<vmem>>, vector<16x32xf32>
    tpu.vector_store %arg17[%c0_93, %c0_94], %286 {strides = array<i32>} : memref<16x32xf32, #tpu.memory_space<vmem>>, vector<16x32xf32>,
    return
  }
  func.func @transform_0(%arg0: i32) -> (i32, i32) {
    %c0_i32 = arith.constant 0 : i32
    %c0_i32_0 = arith.constant 0 : i32
    %c0_i32_1 = arith.constant 0 : i32
    return %c0_i32, %c0_i32_0 : i32, i32
  }
  func.func @transform_1(%arg0: i32) -> (i32, i32, i32) {
    %c0_i32 = arith.constant 0 : i32
    %c0_i32_0 = arith.constant 0 : i32
    %c0_i32_1 = arith.constant 0 : i32
    %c0_i32_2 = arith.constant 0 : i32
    return %c0_i32, %c0_i32_0, %c0_i32_1 : i32, i32, i32
  }
  func.func @transform_2(%arg0: i32) -> (i32, i32) {
    %c0_i32 = arith.constant 0 : i32
    %c0_i32_0 = arith.constant 0 : i32
    %c0_i32_1 = arith.constant 0 : i32
    return %c0_i32, %c0_i32_0 : i32, i32
  }
  func.func @transform_3(%arg0: i32) -> (i32, i32, i32, i32) {
    %c0_i32 = arith.constant 0 : i32
    %c0_i32_0 = arith.constant 0 : i32
    %c0_i32_1 = arith.constant 0 : i32
    %c0_i32_2 = arith.constant 0 : i32
    return %arg0, %c0_i32, %c0_i32_0, %c0_i32_1 : i32, i32, i32, i32
  }
  func.func @transform_4(%arg0: i32) -> (i32, i32, i32, i32) {
    %c0_i32 = arith.constant 0 : i32
    %c0_i32_0 = arith.constant 0 : i32
    %c0_i32_1 = arith.constant 0 : i32
    %c0_i32_2 = arith.constant 0 : i32
    return %arg0, %c0_i32, %c0_i32_0, %c0_i32_1 : i32, i32, i32, i32
  }
  func.func @transform_5(%arg0: i32) -> (i32, i32, i32, i32) {
    %c0_i32 = arith.constant 0 : i32
    %c0_i32_0 = arith.constant 0 : i32
    %c0_i32_1 = arith.constant 0 : i32
    %c0_i32_2 = arith.constant 0 : i32
    return %arg0, %c0_i32, %c0_i32_0, %c0_i32_1 : i32, i32, i32, i32
  }
  func.func @transform_6(%arg0: i32) -> (i32, i32, i32, i32) {
    %c0_i32 = arith.constant 0 : i32
    %c0_i32_0 = arith.constant 0 : i32
    %c0_i32_1 = arith.constant 0 : i32
    %c0_i32_2 = arith.constant 0 : i32
    return %arg0, %c0_i32, %c0_i32_0, %c0_i32_1 : i32, i32, i32, i32
  }
  func.func @transform_7(%arg0: i32) -> (i32, i32, i32, i32) {
    %c0_i32 = arith.constant 0 : i32
    %c0_i32_0 = arith.constant 0 : i32
    %c0_i32_1 = arith.constant 0 : i32
    %c0_i32_2 = arith.constant 0 : i32
    return %arg0, %c0_i32, %c0_i32_0, %c0_i32_1 : i32, i32, i32, i32
  }
  func.func @transform_8(%arg0: i32) -> (i32, i32, i32, i32) {
    %c0_i32 = arith.constant 0 : i32
    %c0_i32_0 = arith.constant 0 : i32
    %c0_i32_1 = arith.constant 0 : i32
    %c0_i32_2 = arith.constant 0 : i32
    return %arg0, %c0_i32, %c0_i32_0, %c0_i32_1 : i32, i32, i32, i32
  }
  func.func @transform_9(%arg0: i32) -> (i32, i32, i32, i32) {
    %c0_i32 = arith.constant 0 : i32
    %c0_i32_0 = arith.constant 0 : i32
    %c0_i32_1 = arith.constant 0 : i32
    %c0_i32_2 = arith.constant 0 : i32
    return %arg0, %c0_i32, %c0_i32_0, %c0_i32_1 : i32, i32, i32, i32
  }
  func.func @transform_10(%arg0: i32) -> (i32, i32, i32) {
    %c0_i32 = arith.constant 0 : i32
    %c0_i32_0 = arith.constant 0 : i32
    %c0_i32_1 = arith.constant 0 : i32
    return %arg0, %c0_i32, %c0_i32_0 : i32, i32, i32
  }
  func.func @transform_11(%arg0: i32) -> (i32, i32, i32) {
    %c0_i32 = arith.constant 0 : i32
    %c0_i32_0 = arith.constant 0 : i32
    %c0_i32_1 = arith.constant 0 : i32
    return %arg0, %c0_i32, %c0_i32_0 : i32, i32, i32
  }
  func.func @transform_12(%arg0: i32) -> (i32, i32, i32) {
    %c0_i32 = arith.constant 0 : i32
    %c0_i32_0 = arith.constant 0 : i32
    %c0_i32_1 = arith.constant 0 : i32
    return %arg0, %c0_i32, %c0_i32_0 : i32, i32, i32
  }
  func.func @transform_13(%arg0: i32) -> (i32, i32, i32) {
    %c0_i32 = arith.constant 0 : i32
    %c0_i32_0 = arith.constant 0 : i32
    %c0_i32_1 = arith.constant 0 : i32
    return %arg0, %c0_i32, %c0_i32_0 : i32, i32, i32
  }
  func.func @transform_14(%arg0: i32) -> (i32, i32, i32) {
    %c0_i32 = arith.constant 0 : i32
    %c0_i32_0 = arith.constant 0 : i32
    %c0_i32_1 = arith.constant 0 : i32
    return %arg0, %c0_i32, %c0_i32_0 : i32, i32, i32
  }
  func.func @transform_15(%arg0: i32) -> (i32, i32, i32) {
    %c0_i32 = arith.constant 0 : i32
    %c0_i32_0 = arith.constant 0 : i32
    %c0_i32_1 = arith.constant 0 : i32
    return %arg0, %c0_i32, %c0_i32_0 : i32, i32, i32
  }
  func.func @transform_16(%arg0: i32) -> (i32, i32) {
    %c0_i32 = arith.constant 0 : i32
    %c0_i32_0 = arith.constant 0 : i32
    %c0_i32_1 = arith.constant 0 : i32
    return %c0_i32, %c0_i32_0 : i32, i32
  }
}

</mosaic_0001>

<llo_original>
// kernel: tpu_custom_call.1
$region0: #{tpu_custom_call.1}
  #allocation0 [shape = 'u32[]', space=smem, size = 0x4, offset = 0x4, fixed_abs, tag = 'smem constant byte address 0x4 - core index']
  #allocation1 [shape = 'u32[72,128]{1,0:T(1,128)}', space=vmem, size = 0x9000, scoped, tag = 'internal scratch']
  %s0 = inlined_call_operand.vmem [shape: f32[16,32], index: 0, kind: input, shape index: {}]
  %s1 = inlined_call_operand.vmem [shape: f32[8,8,32], index: 1, kind: input, shape index: {}]
  %s2 = inlined_call_operand.vmem [shape: f32[8,8], index: 2, kind: input, shape index: {}]
  %s3 = inlined_call_operand.vmem [shape: f32[2,8,32,8], index: 3, kind: input, shape index: {}]
  %s4 = inlined_call_operand.vmem [shape: f32[2,8,1,8], index: 4, kind: input, shape index: {}]
  %s5 = inlined_call_operand.vmem [shape: f32[2,8,32,8], index: 5, kind: input, shape index: {}]
  %s6 = inlined_call_operand.vmem [shape: f32[2,8,1,8], index: 6, kind: input, shape index: {}]
  %s7 = inlined_call_operand.vmem [shape: f32[2,8,32,8], index: 7, kind: input, shape index: {}]
  %s8 = inlined_call_operand.vmem [shape: f32[2,8,1,8], index: 8, kind: input, shape index: {}]
  %s9 = inlined_call_operand.vmem [shape: f32[2,8,8,32], index: 9, kind: input, shape index: {}]
  %s10 = inlined_call_operand.vmem [shape: f32[2,1,32], index: 10, kind: input, shape index: {}]
  %s11 = inlined_call_operand.vmem [shape: f32[2,6,32], index: 11, kind: input, shape index: {}]
  %s12 = inlined_call_operand.vmem [shape: f32[2,32,96], index: 12, kind: input, shape index: {}]
  %s13 = inlined_call_operand.vmem [shape: f32[2,1,96], index: 13, kind: input, shape index: {}]
  %s14 = inlined_call_operand.vmem [shape: f32[2,96,32], index: 14, kind: input, shape index: {}]
  %s15 = inlined_call_operand.vmem [shape: f32[2,1,32], index: 15, kind: input, shape index: {}]
  %s16 = inlined_call_operand.hbm [shape: f32[16,32], index: 16, kind: output, shape index: {}]
  %s17 = sld [smem:[#allocation0]]
  $region101: #{tpu_custom_call.1} parent=0
    _
  %s19 = ssub.s32 1, %s17
  %s20 = scalar_select 0, %s19, %s17
  $region1: #{tpu_custom_call.1} parent=0
    #allocation2 [shape = 'u8[8192]{0}', space=vmem, size = 0x2000, scoped, tag = 'output window, operand 0, single buffered']
    #allocation3 [shape = 's32[2]{0}', space=sflag, size = 0x8, scoped, tag = 'scoped memory for tpu_custom_call.1']
    %21 = vsyncpa [#allocation3], 0
    loop: start=0, step=1, limit=4
    $region2: #{tpu_custom_call.1} parent=1 // loop_pre_header
      _
    $region3: #{tpu_custom_call.1} parent=1 // loop_header
      %s23 = sphi 0, %s27
      %p24 = scmp.ge.s32.totalorder %s23, 4
      %s31 = sphi 0, %s31
      %s33 = sphi 0, %s31
      %s34 = sphi 0, %s33
      %s48 = sphi 0, %s34
      %s52 = sphi 0, %s52
      %s54 = sphi 0, %s52
      %s55 = sphi 0, %s54
      %s69 = sphi 0, %s55
      %s73 = sphi 0, %s73
      %s75 = sphi 0, %s73
      %s76 = sphi 0, %s75
      %s90 = sphi 0, %s76
      %s96 = sphi 0, %s98
      %s99 = sphi 0, %s96
      %s100 = sphi 0, %s99
      %s116 = sphi 0, %s100
      %s122 = sphi 0, %s124
      %s125 = sphi 0, %s122
      %s126 = sphi 0, %s125
      %s142 = sphi 0, %s126
      %s148 = sphi 0, %s150
      %s151 = sphi 0, %s148
      %s152 = sphi 0, %s151
      %s168 = sphi 0, %s152
      %s174 = sphi 0, %s176
      %s177 = sphi 0, %s174
      %s178 = sphi 0, %s177
      %s194 = sphi 0, %s178
      %s200 = sphi 0, %s202
      %s203 = sphi 0, %s200
      %s204 = sphi 0, %s203
      %s220 = sphi 0, %s204
      %s226 = sphi 0, %s228
      %s229 = sphi 0, %s226
      %s230 = sphi 0, %s229
      %s246 = sphi 0, %s230
      %s252 = sphi 0, %s254
      %s255 = sphi 0, %s252
      %s256 = sphi 0, %s255
      %s272 = sphi 0, %s256
      %s278 = sphi 0, %s280
      %s281 = sphi 0, %s278
      %s282 = sphi 0, %s281
      %s298 = sphi 0, %s282
      %s304 = sphi 0, %s306
      %s307 = sphi 0, %s304
      %s308 = sphi 0, %s307
      %s324 = sphi 0, %s308
      %s330 = sphi 0, %s332
      %s333 = sphi 0, %s330
      %s334 = sphi 0, %s333
      %s350 = sphi 0, %s334
      %s356 = sphi 0, %s358
      %s359 = sphi 0, %s356
      %s360 = sphi 0, %s359
      %s376 = sphi 0, %s360
      %s382 = sphi 0, %s384
      %s385 = sphi 0, %s382
      %s386 = sphi 0, %s385
      %s402 = sphi 0, %s386
      %s408 = sphi 0, %s410
      %s411 = sphi 0, %s408
      %s412 = sphi 0, %s411
      %s428 = sphi 0, %s412
      %s432 = sphi 0, %s432
      %s434 = sphi 0, %s432
      %s435 = sphi 0, %s434
      %s449 = sphi 0, %s435
    $region4: #{tpu_custom_call.1} parent=1 // loop_header_branch
      %26 = sbr.rel (%p24) target = $region8
    $region5: #{tpu_custom_call.1} parent=1 // loop_body
      %s28 = ssub.s32 %s23, 1
      %s29 = ssub.s32 %s23, 2
      %s30 = sadd.s32 %s23, 1
      %s32 = sadd.s32 %s31, 1
      %p35 = scmp.eq.s32.totalorder %s23, 1
      %p36 = scmp.ne.s32.totalorder %s31, %s33
      %p37 = scmp.eq.s32.totalorder %s23, 0
      %p38 = por %p36, %p37
      %p39 = scmp.ne.s32.totalorder %s31, %s33
      %p40 = scmp.eq.s32.totalorder %s28, 1
      %p41 = por %p39, %p40
      %p42 = scmp.ne.s32.totalorder %s33, %s34
      %p43 = scmp.eq.s32.totalorder %s28, 0
      %p44 = por %p42, %p43
      %p45 = scmp.ne.s32.totalorder %s33, %s34
      %p46 = scmp.eq.s32.totalorder %s29, 1
      %p47 = por %p45, %p46
      %p49 = scmp.ne.s32.totalorder %s34, %s48
      %p50 = scmp.eq.s32.totalorder %s29, 0
      %p51 = por %p49, %p50
      %s53 = sadd.s32 %s52, 1
      %p56 = scmp.eq.s32.totalorder %s23, 1
      %p57 = scmp.ne.s32.totalorder %s52, %s54
      %p58 = scmp.eq.s32.totalorder %s23, 0
      %p59 = por %p57, %p58
      %p60 = scmp.ne.s32.totalorder %s52, %s54
      %p61 = scmp.eq.s32.totalorder %s28, 1
      %p62 = por %p60, %p61
      %p63 = scmp.ne.s32.totalorder %s54, %s55
      %p64 = scmp.eq.s32.totalorder %s28, 0
      %p65 = por %p63, %p64
      %p66 = scmp.ne.s32.totalorder %s54, %s55
      %p67 = scmp.eq.s32.totalorder %s29, 1
      %p68 = por %p66, %p67
      %p70 = scmp.ne.s32.totalorder %s55, %s69
      %p71 = scmp.eq.s32.totalorder %s29, 0
      %p72 = por %p70, %p71
      %s74 = sadd.s32 %s73, 1
      %p77 = scmp.eq.s32.totalorder %s23, 1
      %p78 = scmp.ne.s32.totalorder %s73, %s75
      %p79 = scmp.eq.s32.totalorder %s23, 0
      %p80 = por %p78, %p79
      %p81 = scmp.ne.s32.totalorder %s73, %s75
      %p82 = scmp.eq.s32.totalorder %s28, 1
      %p83 = por %p81, %p82
      %p84 = scmp.ne.s32.totalorder %s75, %s76
      %p85 = scmp.eq.s32.totalorder %s28, 0
      %p86 = por %p84, %p85
      %p87 = scmp.ne.s32.totalorder %s75, %s76
      %p88 = scmp.eq.s32.totalorder %s29, 1
      %p89 = por %p87, %p88
      %p91 = scmp.ne.s32.totalorder %s76, %s90
      %p92 = scmp.eq.s32.totalorder %s29, 0
      %p93 = por %p91, %p92
      %s94 = ssub.s32 %s23, %s30
      %p95 = scmp.eq.s32.totalorder %s94, 0
      %s97 = sadd.s32 %s96, 1
      %s98 = scalar_select %p95, %s96, %s97
      %p101 = pneg %p95
      %p102 = scmp.eq.s32.totalorder %s23, 1
      %p103 = por %p101, %p102
      %p104 = scmp.ne.s32.totalorder %s96, %s99
      %p105 = scmp.eq.s32.totalorder %s23, 0
      %p106 = por %p104, %p105
      %p107 = scmp.ne.s32.totalorder %s96, %s99
      %p108 = scmp.eq.s32.totalorder %s28, 1
      %p109 = por %p107, %p108
      %p110 = scmp.ne.s32.totalorder %s99, %s100
      %p111 = scmp.eq.s32.totalorder %s28, 0
      %p112 = por %p110, %p111
      %p113 = scmp.ne.s32.totalorder %s99, %s100
      %p114 = scmp.eq.s32.totalorder %s29, 1
      %p115 = por %p113, %p114
      %p117 = scmp.ne.s32.totalorder %s100, %s116
      %p118 = scmp.eq.s32.totalorder %s29, 0
      %p119 = por %p117, %p118
      %s120 = ssub.s32 %s23, %s30
      %p121 = scmp.eq.s32.totalorder %s120, 0
      %s123 = sadd.s32 %s122, 1
      %s124 = scalar_select %p121, %s122, %s123
      %p127 = pneg %p121
      %p128 = scmp.eq.s32.totalorder %s23, 1
      %p129 = por %p127, %p128
      %p130 = scmp.ne.s32.totalorder %s122, %s125
      %p131 = scmp.eq.s32.totalorder %s23, 0
      %p132 = por %p130, %p131
      %p133 = scmp.ne.s32.totalorder %s122, %s125
      %p134 = scmp.eq.s32.totalorder %s28, 1
      %p135 = por %p133, %p134
      %p136 = scmp.ne.s32.totalorder %s125, %s126
      %p137 = scmp.eq.s32.totalorder %s28, 0
      %p138 = por %p136, %p137
      %p139 = scmp.ne.s32.totalorder %s125, %s126
      %p140 = scmp.eq.s32.totalorder %s29, 1
      %p141 = por %p139, %p140
      %p143 = scmp.ne.s32.totalorder %s126, %s142
      %p144 = scmp.eq.s32.totalorder %s29, 0
      %p145 = por %p143, %p144
      %s146 = ssub.s32 %s23, %s30
      %p147 = scmp.eq.s32.totalorder %s146, 0
      %s149 = sadd.s32 %s148, 1
      %s150 = scalar_select %p147, %s148, %s149
      %p153 = pneg %p147
      %p154 = scmp.eq.s32.totalorder %s23, 1
      %p155 = por %p153, %p154
      %p156 = scmp.ne.s32.totalorder %s148, %s151
      %p157 = scmp.eq.s32.totalorder %s23, 0
      %p158 = por %p156, %p157
      %p159 = scmp.ne.s32.totalorder %s148, %s151
      %p160 = scmp.eq.s32.totalorder %s28, 1
      %p161 = por %p159, %p160
      %p162 = scmp.ne.s32.totalorder %s151, %s152
      %p163 = scmp.eq.s32.totalorder %s28, 0
      %p164 = por %p162, %p163
      %p165 = scmp.ne.s32.totalorder %s151, %s152
      %p166 = scmp.eq.s32.totalorder %s29, 1
      %p167 = por %p165, %p166
      %p169 = scmp.ne.s32.totalorder %s152, %s168
      %p170 = scmp.eq.s32.totalorder %s29, 0
      %p171 = por %p169, %p170
      %s172 = ssub.s32 %s23, %s30
      %p173 = scmp.eq.s32.totalorder %s172, 0
      %s175 = sadd.s32 %s174, 1
      %s176 = scalar_select %p173, %s174, %s175
      %p179 = pneg %p173
      %p180 = scmp.eq.s32.totalorder %s23, 1
      %p181 = por %p179, %p180
      %p182 = scmp.ne.s32.totalorder %s174, %s177
      %p183 = scmp.eq.s32.totalorder %s23, 0
      %p184 = por %p182, %p183
      %p185 = scmp.ne.s32.totalorder %s174, %s177
      %p186 = scmp.eq.s32.totalorder %s28, 1
      %p187 = por %p185, %p186
      %p188 = scmp.ne.s32.totalorder %s177, %s178
      %p189 = scmp.eq.s32.totalorder %s28, 0
      %p190 = por %p188, %p189
      %p191 = scmp.ne.s32.totalorder %s177, %s178
      %p192 = scmp.eq.s32.totalorder %s29, 1
      %p193 = por %p191, %p192
      %p195 = scmp.ne.s32.totalorder %s178, %s194
      %p196 = scmp.eq.s32.totalorder %s29, 0
      %p197 = por %p195, %p196
      %s198 = ssub.s32 %s23, %s30
      %p199 = scmp.eq.s32.totalorder %s198, 0
      %s201 = sadd.s32 %s200, 1
      %s202 = scalar_select %p199, %s200, %s201
      %p205 = pneg %p199
      %p206 = scmp.eq.s32.totalorder %s23, 1
      %p207 = por %p205, %p206
      %p208 = scmp.ne.s32.totalorder %s200, %s203
      %p209 = scmp.eq.s32.totalorder %s23, 0
      %p210 = por %p208, %p209
      %p211 = scmp.ne.s32.totalorder %s200, %s203
      %p212 = scmp.eq.s32.totalorder %s28, 1
      %p213 = por %p211, %p212
      %p214 = scmp.ne.s32.totalorder %s203, %s204
      %p215 = scmp.eq.s32.totalorder %s28, 0
      %p216 = por %p214, %p215
      %p217 = scmp.ne.s32.totalorder %s203, %s204
      %p218 = scmp.eq.s32.totalorder %s29, 1
      %p219 = por %p217, %p218
      %p221 = scmp.ne.s32.totalorder %s204, %s220
      %p222 = scmp.eq.s32.totalorder %s29, 0
      %p223 = por %p221, %p222
      %s224 = ssub.s32 %s23, %s30
      %p225 = scmp.eq.s32.totalorder %s224, 0
      %s227 = sadd.s32 %s226, 1
      %s228 = scalar_select %p225, %s226, %s227
      %p231 = pneg %p225
      %p232 = scmp.eq.s32.totalorder %s23, 1
      %p233 = por %p231, %p232
      %p234 = scmp.ne.s32.totalorder %s226, %s229
      %p235 = scmp.eq.s32.totalorder %s23, 0
      %p236 = por %p234, %p235
      %p237 = scmp.ne.s32.totalorder %s226, %s229
      %p238 = scmp.eq.s32.totalorder %s28, 1
      %p239 = por %p237, %p238
      %p240 = scmp.ne.s32.totalorder %s229, %s230
      %p241 = scmp.eq.s32.totalorder %s28, 0
      %p242 = por %p240, %p241
      %p243 = scmp.ne.s32.totalorder %s229, %s230
      %p244 = scmp.eq.s32.totalorder %s29, 1
      %p245 = por %p243, %p244
      %p247 = scmp.ne.s32.totalorder %s230, %s246
      %p248 = scmp.eq.s32.totalorder %s29, 0
      %p249 = por %p247, %p248
      %s250 = ssub.s32 %s23, %s30
      %p251 = scmp.eq.s32.totalorder %s250, 0
      %s253 = sadd.s32 %s252, 1
      %s254 = scalar_select %p251, %s252, %s253
      %p257 = pneg %p251
      %p258 = scmp.eq.s32.totalorder %s23, 1
      %p259 = por %p257, %p258
      %p260 = scmp.ne.s32.totalorder %s252, %s255
      %p261 = scmp.eq.s32.totalorder %s23, 0
      %p262 = por %p260, %p261
      %p263 = scmp.ne.s32.totalorder %s252, %s255
      %p264 = scmp.eq.s32.totalorder %s28, 1
      %p265 = por %p263, %p264
      %p266 = scmp.ne.s32.totalorder %s255, %s256
      %p267 = scmp.eq.s32.totalorder %s28, 0
      %p268 = por %p266, %p267
      %p269 = scmp.ne.s32.totalorder %s255, %s256
      %p270 = scmp.eq.s32.totalorder %s29, 1
      %p271 = por %p269, %p270
      %p273 = scmp.ne.s32.totalorder %s256, %s272
      %p274 = scmp.eq.s32.totalorder %s29, 0
      %p275 = por %p273, %p274
      %s276 = ssub.s32 %s23, %s30
      %p277 = scmp.eq.s32.totalorder %s276, 0
      %s279 = sadd.s32 %s278, 1
      %s280 = scalar_select %p277, %s278, %s279
      %p283 = pneg %p277
      %p284 = scmp.eq.s32.totalorder %s23, 1
      %p285 = por %p283, %p284
      %p286 = scmp.ne.s32.totalorder %s278, %s281
      %p287 = scmp.eq.s32.totalorder %s23, 0
      %p288 = por %p286, %p287
      %p289 = scmp.ne.s32.totalorder %s278, %s281
      %p290 = scmp.eq.s32.totalorder %s28, 1
      %p291 = por %p289, %p290
      %p292 = scmp.ne.s32.totalorder %s281, %s282
      %p293 = scmp.eq.s32.totalorder %s28, 0
      %p294 = por %p292, %p293
      %p295 = scmp.ne.s32.totalorder %s281, %s282
      %p296 = scmp.eq.s32.totalorder %s29, 1
      %p297 = por %p295, %p296
      %p299 = scmp.ne.s32.totalorder %s282, %s298
      %p300 = scmp.eq.s32.totalorder %s29, 0
      %p301 = por %p299, %p300
      %s302 = ssub.s32 %s23, %s30
      %p303 = scmp.eq.s32.totalorder %s302, 0
      %s305 = sadd.s32 %s304, 1
      %s306 = scalar_select %p303, %s304, %s305
      %p309 = pneg %p303
      %p310 = scmp.eq.s32.totalorder %s23, 1
      %p311 = por %p309, %p310
      %p312 = scmp.ne.s32.totalorder %s304, %s307
      %p313 = scmp.eq.s32.totalorder %s23, 0
      %p314 = por %p312, %p313
      %p315 = scmp.ne.s32.totalorder %s304, %s307
      %p316 = scmp.eq.s32.totalorder %s28, 1
      %p317 = por %p315, %p316
      %p318 = scmp.ne.s32.totalorder %s307, %s308
      %p319 = scmp.eq.s32.totalorder %s28, 0
      %p320 = por %p318, %p319
      %p321 = scmp.ne.s32.totalorder %s307, %s308
      %p322 = scmp.eq.s32.totalorder %s29, 1
      %p323 = por %p321, %p322
      %p325 = scmp.ne.s32.totalorder %s308, %s324
      %p326 = scmp.eq.s32.totalorder %s29, 0
      %p327 = por %p325, %p326
      %s328 = ssub.s32 %s23, %s30
      %p329 = scmp.eq.s32.totalorder %s328, 0
      %s331 = sadd.s32 %s330, 1
      %s332 = scalar_select %p329, %s330, %s331
      %p335 = pneg %p329
      %p336 = scmp.eq.s32.totalorder %s23, 1
      %p337 = por %p335, %p336
      %p338 = scmp.ne.s32.totalorder %s330, %s333
      %p339 = scmp.eq.s32.totalorder %s23, 0
      %p340 = por %p338, %p339
      %p341 = scmp.ne.s32.totalorder %s330, %s333
      %p342 = scmp.eq.s32.totalorder %s28, 1
      %p343 = por %p341, %p342
      %p344 = scmp.ne.s32.totalorder %s333, %s334
      %p345 = scmp.eq.s32.totalorder %s28, 0
      %p346 = por %p344, %p345
      %p347 = scmp.ne.s32.totalorder %s333, %s334
      %p348 = scmp.eq.s32.totalorder %s29, 1
      %p349 = por %p347, %p348
      %p351 = scmp.ne.s32.totalorder %s334, %s350
      %p352 = scmp.eq.s32.totalorder %s29, 0
      %p353 = por %p351, %p352
      %s354 = ssub.s32 %s23, %s30
      %p355 = scmp.eq.s32.totalorder %s354, 0
      %s357 = sadd.s32 %s356, 1
      %s358 = scalar_select %p355, %s356, %s357
      %p361 = pneg %p355
      %p362 = scmp.eq.s32.totalorder %s23, 1
      %p363 = por %p361, %p362
      %p364 = scmp.ne.s32.totalorder %s356, %s359
      %p365 = scmp.eq.s32.totalorder %s23, 0
      %p366 = por %p364, %p365
      %p367 = scmp.ne.s32.totalorder %s356, %s359
      %p368 = scmp.eq.s32.totalorder %s28, 1
      %p369 = por %p367, %p368
      %p370 = scmp.ne.s32.totalorder %s359, %s360
      %p371 = scmp.eq.s32.totalorder %s28, 0
      %p372 = por %p370, %p371
      %p373 = scmp.ne.s32.totalorder %s359, %s360
      %p374 = scmp.eq.s32.totalorder %s29, 1
      %p375 = por %p373, %p374
      %p377 = scmp.ne.s32.totalorder %s360, %s376
      %p378 = scmp.eq.s32.totalorder %s29, 0
      %p379 = por %p377, %p378
      %s380 = ssub.s32 %s23, %s30
      %p381 = scmp.eq.s32.totalorder %s380, 0
      %s383 = sadd.s32 %s382, 1
      %s384 = scalar_select %p381, %s382, %s383
      %p387 = pneg %p381
      %p388 = scmp.eq.s32.totalorder %s23, 1
      %p389 = por %p387, %p388
      %p390 = scmp.ne.s32.totalorder %s382, %s385
      %p391 = scmp.eq.s32.totalorder %s23, 0
      %p392 = por %p390, %p391
      %p393 = scmp.ne.s32.totalorder %s382, %s385
      %p394 = scmp.eq.s32.totalorder %s28, 1
      %p395 = por %p393, %p394
      %p396 = scmp.ne.s32.totalorder %s385, %s386
      %p397 = scmp.eq.s32.totalorder %s28, 0
      %p398 = por %p396, %p397
      %p399 = scmp.ne.s32.totalorder %s385, %s386
      %p400 = scmp.eq.s32.totalorder %s29, 1
      %p401 = por %p399, %p400
      %p403 = scmp.ne.s32.totalorder %s386, %s402
      %p404 = scmp.eq.s32.totalorder %s29, 0
      %p405 = por %p403, %p404
      %s406 = ssub.s32 %s23, %s30
      %p407 = scmp.eq.s32.totalorder %s406, 0
      %s409 = sadd.s32 %s408, 1
      %s410 = scalar_select %p407, %s408, %s409
      %p413 = pneg %p407
      %p414 = scmp.eq.s32.totalorder %s23, 1
      %p415 = por %p413, %p414
      %p416 = scmp.ne.s32.totalorder %s408, %s411
      %p417 = scmp.eq.s32.totalorder %s23, 0
      %p418 = por %p416, %p417
      %p419 = scmp.ne.s32.totalorder %s408, %s411
      %p420 = scmp.eq.s32.totalorder %s28, 1
      %p421 = por %p419, %p420
      %p422 = scmp.ne.s32.totalorder %s411, %s412
      %p423 = scmp.eq.s32.totalorder %s28, 0
      %p424 = por %p422, %p423
      %p425 = scmp.ne.s32.totalorder %s411, %s412
      %p426 = scmp.eq.s32.totalorder %s29, 1
      %p427 = por %p425, %p426
      %p429 = scmp.ne.s32.totalorder %s412, %s428
      %p430 = scmp.eq.s32.totalorder %s29, 0
      %p431 = por %p429, %p430
      %s433 = sadd.s32 %s432, 1
      %p436 = scmp.eq.s32.totalorder %s23, 1
      %p437 = scmp.ne.s32.totalorder %s432, %s434
      %p438 = scmp.eq.s32.totalorder %s23, 0
      %p439 = por %p437, %p438
      %p440 = scmp.ne.s32.totalorder %s432, %s434
      %p441 = scmp.eq.s32.totalorder %s28, 1
      %p442 = por %p440, %p441
      %p443 = scmp.ne.s32.totalorder %s434, %s435
      %p444 = scmp.eq.s32.totalorder %s28, 0
      %p445 = por %p443, %p444
      %p446 = scmp.ne.s32.totalorder %s434, %s435
      %p447 = scmp.eq.s32.totalorder %s29, 1
      %p448 = por %p446, %p447
      %p450 = scmp.ne.s32.totalorder %s435, %s449
      %p451 = scmp.eq.s32.totalorder %s29, 0
      %p452 = por %p450, %p451
      %p453 = scmp.le.s32.totalorder 1, %s23
      %p454 = scmp.lt.s32.totalorder %s23, 3
      %p455 = pnand %p453, %p454
      %p456 = pneg %p455
      // Predicated region
      $region9: #{tpu_custom_call.1} parent=5 // pred_check
        _
      $region10: #{tpu_custom_call.1} parent=5 // pred_check_branch
        %458 = sbr.rel (%p455) target = $region12
      $region11: #{tpu_custom_call.1} parent=5 // pred_region
        %s459 = ssub.s32 %s23, 1
        // Predicated region
        $region13: #{tpu_custom_call.1} parent=11 // pred_check
          %p460 = pneg %p44
        $region14: #{tpu_custom_call.1} parent=11 // pred_check_branch
          %462 = sbr.rel (%p460) target = $region16
        $region15: #{tpu_custom_call.1} parent=11 // pred_region
          _
        $region16: #{tpu_custom_call.1} parent=11 // pred_fallthru
          _
        // Predicated region
        $region17: #{tpu_custom_call.1} parent=11 // pred_check
          %p463 = pneg %p65
        $region18: #{tpu_custom_call.1} parent=11 // pred_check_branch
          %465 = sbr.rel (%p463) target = $region20
        $region19: #{tpu_custom_call.1} parent=11 // pred_region
          _
        $region20: #{tpu_custom_call.1} parent=11 // pred_fallthru
          _
        // Predicated region
        $region21: #{tpu_custom_call.1} parent=11 // pred_check
          %p466 = pneg %p86
        $region22: #{tpu_custom_call.1} parent=11 // pred_check_branch
          %468 = sbr.rel (%p466) target = $region24
        $region23: #{tpu_custom_call.1} parent=11 // pred_region
          _
        $region24: #{tpu_custom_call.1} parent=11 // pred_fallthru
          _
      $region12: #{tpu_custom_call.1} parent=5 // pred_fallthru
        _
      %p469 = scmp.lt.s32.totalorder %s23, 2
      // Predicated region
      $region25: #{tpu_custom_call.1} parent=5 // pred_check
        %p470 = pneg %p469
      $region26: #{tpu_custom_call.1} parent=5 // pred_check_branch
        %472 = sbr.rel (%p470) target = $region28
      $region27: #{tpu_custom_call.1} parent=5 // pred_region
        // Predicated region
        $region29: #{tpu_custom_call.1} parent=27 // pred_check
          %p473 = pneg %p106
        $region30: #{tpu_custom_call.1} parent=27 // pred_check_branch
          %475 = sbr.rel (%p473) target = $region32
        $region31: #{tpu_custom_call.1} parent=27 // pred_region
          %p476 = scmp.lt.s32.totalorder %s23, 1
          %s477 = scalar_select %p476, %s23, 1
          %s478 = smul.addr %s477, 32
          %s479 = smul.addr %s478, 8
          %s480 = scalar_lea.vmem %s3, %s479
        $region32: #{tpu_custom_call.1} parent=27 // pred_fallthru
          _
        // Predicated region
        $region33: #{tpu_custom_call.1} parent=27 // pred_check
          %p481 = pneg %p132
        $region34: #{tpu_custom_call.1} parent=27 // pred_check_branch
          %483 = sbr.rel (%p481) target = $region36
        $region35: #{tpu_custom_call.1} parent=27 // pred_region
          %p484 = scmp.lt.s32.totalorder %s23, 1
          %s485 = scalar_select %p484, %s23, 1
          %s486 = smul.addr %s485, 8
          %s487 = scalar_lea.vmem %s4, %s486
        $region36: #{tpu_custom_call.1} parent=27 // pred_fallthru
          _
        // Predicated region
        $region37: #{tpu_custom_call.1} parent=27 // pred_check
          %p488 = pneg %p158
        $region38: #{tpu_custom_call.1} parent=27 // pred_check_branch
          %490 = sbr.rel (%p488) target = $region40
        $region39: #{tpu_custom_call.1} parent=27 // pred_region
          %p491 = scmp.lt.s32.totalorder %s23, 1
          %s492 = scalar_select %p491, %s23, 1
          %s493 = smul.addr %s492, 32
          %s494 = smul.addr %s493, 8
          %s495 = scalar_lea.vmem %s5, %s494
        $region40: #{tpu_custom_call.1} parent=27 // pred_fallthru
          _
        // Predicated region
        $region41: #{tpu_custom_call.1} parent=27 // pred_check
          %p496 = pneg %p184
        $region42: #{tpu_custom_call.1} parent=27 // pred_check_branch
          %498 = sbr.rel (%p496) target = $region44
        $region43: #{tpu_custom_call.1} parent=27 // pred_region
          %p499 = scmp.lt.s32.totalorder %s23, 1
          %s500 = scalar_select %p499, %s23, 1
          %s501 = smul.addr %s500, 8
          %s502 = scalar_lea.vmem %s6, %s501
        $region44: #{tpu_custom_call.1} parent=27 // pred_fallthru
          _
        // Predicated region
        $region45: #{tpu_custom_call.1} parent=27 // pred_check
          %p503 = pneg %p210
        $region46: #{tpu_custom_call.1} parent=27 // pred_check_branch
          %505 = sbr.rel (%p503) target = $region48
        $region47: #{tpu_custom_call.1} parent=27 // pred_region
          %p506 = scmp.lt.s32.totalorder %s23, 1
          %s507 = scalar_select %p506, %s23, 1
          %s508 = smul.addr %s507, 32
          %s509 = smul.addr %s508, 8
          %s510 = scalar_lea.vmem %s7, %s509
        $region48: #{tpu_custom_call.1} parent=27 // pred_fallthru
          _
        // Predicated region
        $region49: #{tpu_custom_call.1} parent=27 // pred_check
          %p511 = pneg %p236
        $region50: #{tpu_custom_call.1} parent=27 // pred_check_branch
          %513 = sbr.rel (%p511) target = $region52
        $region51: #{tpu_custom_call.1} parent=27 // pred_region
          %p514 = scmp.lt.s32.totalorder %s23, 1
          %s515 = scalar_select %p514, %s23, 1
          %s516 = smul.addr %s515, 8
          %s517 = scalar_lea.vmem %s8, %s516
        $region52: #{tpu_custom_call.1} parent=27 // pred_fallthru
          _
        // Predicated region
        $region53: #{tpu_custom_call.1} parent=27 // pred_check
          %p518 = pneg %p262
        $region54: #{tpu_custom_call.1} parent=27 // pred_check_branch
          %520 = sbr.rel (%p518) target = $region56
        $region55: #{tpu_custom_call.1} parent=27 // pred_region
          %p521 = scmp.lt.s32.totalorder %s23, 1
          %s522 = scalar_select %p521, %s23, 1
          %s523 = smul.addr %s522, 8
          %s524 = smul.addr %s523, 8
          %s525 = scalar_lea.vmem %s9, %s524
        $region56: #{tpu_custom_call.1} parent=27 // pred_fallthru
          _
        // Predicated region
        $region57: #{tpu_custom_call.1} parent=27 // pred_check
          %p526 = pneg %p288
        $region58: #{tpu_custom_call.1} parent=27 // pred_check_branch
          %528 = sbr.rel (%p526) target = $region60
        $region59: #{tpu_custom_call.1} parent=27 // pred_region
          %p529 = scmp.lt.s32.totalorder %s23, 1
          %s530 = scalar_select %p529, %s23, 1
          %s531 = scalar_lea.vmem %s10, %s530
        $region60: #{tpu_custom_call.1} parent=27 // pred_fallthru
          _
        // Predicated region
        $region61: #{tpu_custom_call.1} parent=27 // pred_check
          %p532 = pneg %p314
        $region62: #{tpu_custom_call.1} parent=27 // pred_check_branch
          %534 = sbr.rel (%p532) target = $region64
        $region63: #{tpu_custom_call.1} parent=27 // pred_region
          %p535 = scmp.lt.s32.totalorder %s23, 1
          %s536 = scalar_select %p535, %s23, 1
          %s537 = smul.addr %s536, 8
          %s538 = scalar_lea.vmem %s11, %s537
        $region64: #{tpu_custom_call.1} parent=27 // pred_fallthru
          _
        // Predicated region
        $region65: #{tpu_custom_call.1} parent=27 // pred_check
          %p539 = pneg %p340
        $region66: #{tpu_custom_call.1} parent=27 // pred_check_branch
          %541 = sbr.rel (%p539) target = $region68
        $region67: #{tpu_custom_call.1} parent=27 // pred_region
          %p542 = scmp.lt.s32.totalorder %s23, 1
          %s543 = scalar_select %p542, %s23, 1
          %s544 = smul.addr %s543, 4
          %s545 = smul.addr %s544, 8
          %s546 = scalar_lea.vmem %s12, %s545
        $region68: #{tpu_custom_call.1} parent=27 // pred_fallthru
          _
        // Predicated region
        $region69: #{tpu_custom_call.1} parent=27 // pred_check
          %p547 = pneg %p366
        $region70: #{tpu_custom_call.1} parent=27 // pred_check_branch
          %549 = sbr.rel (%p547) target = $region72
        $region71: #{tpu_custom_call.1} parent=27 // pred_region
          %p550 = scmp.lt.s32.totalorder %s23, 1
          %s551 = scalar_select %p550, %s23, 1
          %s552 = scalar_lea.vmem %s13, %s551
        $region72: #{tpu_custom_call.1} parent=27 // pred_fallthru
          _
        // Predicated region
        $region73: #{tpu_custom_call.1} parent=27 // pred_check
          %p553 = pneg %p392
        $region74: #{tpu_custom_call.1} parent=27 // pred_check_branch
          %555 = sbr.rel (%p553) target = $region76
        $region75: #{tpu_custom_call.1} parent=27 // pred_region
          %p556 = scmp.lt.s32.totalorder %s23, 1
          %s557 = scalar_select %p556, %s23, 1
          %s558 = smul.addr %s557, 12
          %s559 = smul.addr %s558, 8
          %s560 = scalar_lea.vmem %s14, %s559
        $region76: #{tpu_custom_call.1} parent=27 // pred_fallthru
          _
        // Predicated region
        $region77: #{tpu_custom_call.1} parent=27 // pred_check
          %p561 = pneg %p418
        $region78: #{tpu_custom_call.1} parent=27 // pred_check_branch
          %563 = sbr.rel (%p561) target = $region80
        $region79: #{tpu_custom_call.1} parent=27 // pred_region
          %p564 = scmp.lt.s32.totalorder %s23, 1
          %s565 = scalar_select %p564, %s23, 1
          %s566 = scalar_lea.vmem %s15, %s565
        $region80: #{tpu_custom_call.1} parent=27 // pred_fallthru
          _
      $region28: #{tpu_custom_call.1} parent=5 // pred_fallthru
        _
      %p567 = scmp.le.s32.totalorder 1, %s23
      %p568 = scmp.lt.s32.totalorder %s23, 3
      %p569 = pnand %p567, %p568
      %p570 = pneg %p569
      // Predicated region
      $region81: #{tpu_custom_call.1} parent=5 // pred_check
        _
      $region82: #{tpu_custom_call.1} parent=5 // pred_check_branch
        %572 = sbr.rel (%p569) target = $region84
      $region83: #{tpu_custom_call.1} parent=5 // pred_region
        %s573 = ssub.s32 %s23, 1
        %p574 = pneg %p44
        %p575 = pneg %p41
        %p576 = pneg %p65
        %p577 = pneg %p62
        %p578 = pneg %p86
        %p579 = pneg %p83
        %p580 = scmp.lt.s32.totalorder %s28, 1
        %s581 = scalar_select %p580, %s28, 1
        %s582 = smul.addr %s581, 32
        %s583 = smul.addr %s582, 8
        %s584 = scalar_lea.vmem %s3, %s583
        %p585 = pneg %p112
        %p586 = pneg %p109
        %p587 = scmp.lt.s32.totalorder %s28, 1
        %s588 = scalar_select %p587, %s28, 1
        %s589 = smul.addr %s588, 8
        %s590 = scalar_lea.vmem %s4, %s589
        %p591 = pneg %p138
        %p592 = pneg %p135
        %p593 = scmp.lt.s32.totalorder %s28, 1
        %s594 = scalar_select %p593, %s28, 1
        %s595 = smul.addr %s594, 32
        %s596 = smul.addr %s595, 8
        %s597 = scalar_lea.vmem %s5, %s596
        %p598 = pneg %p164
        %p599 = pneg %p161
        %p600 = scmp.lt.s32.totalorder %s28, 1
        %s601 = scalar_select %p600, %s28, 1
        %s602 = smul.addr %s601, 8
        %s603 = scalar_lea.vmem %s6, %s602
        %p604 = pneg %p190
        %p605 = pneg %p187
        %p606 = scmp.lt.s32.totalorder %s28, 1
        %s607 = scalar_select %p606, %s28, 1
        %s608 = smul.addr %s607, 32
        %s609 = smul.addr %s608, 8
        %s610 = scalar_lea.vmem %s7, %s609
        %p611 = pneg %p216
        %p612 = pneg %p213
        %p613 = scmp.lt.s32.totalorder %s28, 1
        %s614 = scalar_select %p613, %s28, 1
        %s615 = smul.addr %s614, 8
        %s616 = scalar_lea.vmem %s8, %s615
        %p617 = pneg %p242
        %p618 = pneg %p239
        %p619 = scmp.lt.s32.totalorder %s28, 1
        %s620 = scalar_select %p619, %s28, 1
        %s621 = smul.addr %s620, 8
        %s622 = smul.addr %s621, 8
        %s623 = scalar_lea.vmem %s9, %s622
        %p624 = pneg %p268
        %p625 = pneg %p265
        %p626 = scmp.lt.s32.totalorder %s28, 1
        %s627 = scalar_select %p626, %s28, 1
        %s628 = scalar_lea.vmem %s10, %s627
        %p629 = pneg %p294
        %p630 = pneg %p291
        %p631 = scmp.lt.s32.totalorder %s28, 1
        %s632 = scalar_select %p631, %s28, 1
        %s633 = smul.addr %s632, 8
        %s634 = scalar_lea.vmem %s11, %s633
        %p635 = pneg %p320
        %p636 = pneg %p317
        %p637 = scmp.lt.s32.totalorder %s28, 1
        %s638 = scalar_select %p637, %s28, 1
        %s639 = smul.addr %s638, 4
        %s640 = smul.addr %s639, 8
        %s641 = scalar_lea.vmem %s12, %s640
        %p642 = pneg %p346
        %p643 = pneg %p343
        %p644 = scmp.lt.s32.totalorder %s28, 1
        %s645 = scalar_select %p644, %s28, 1
        %s646 = scalar_lea.vmem %s13, %s645
        %p647 = pneg %p372
        %p648 = pneg %p369
        %p649 = scmp.lt.s32.totalorder %s28, 1
        %s650 = scalar_select %p649, %s28, 1
        %s651 = smul.addr %s650, 12
        %s652 = smul.addr %s651, 8
        %s653 = scalar_lea.vmem %s14, %s652
        %p654 = pneg %p398
        %p655 = pneg %p395
        %p656 = scmp.lt.s32.totalorder %s28, 1
        %s657 = scalar_select %p656, %s28, 1
        %s658 = scalar_lea.vmem %s15, %s657
        %p659 = pneg %p424
        %p660 = pneg %p421
        %p661 = pneg %p445
        %p662 = pneg %p442
        %p663 = scmp.lt.s32.totalorder %s28, 1
        %s664 = scalar_select %p663, %s28, 1
        %s665 = smul.addr %s664, 32
        %s666 = smul.addr %s665, 8
        %s667 = scalar_lea.vmem %s3, %s666
        %p668 = scmp.lt.s32.totalorder %s28, 1
        %s669 = scalar_select %p668, %s28, 1
        %s670 = smul.addr %s669, 8
        %s671 = scalar_lea.vmem %s4, %s670
        %p672 = scmp.lt.s32.totalorder %s28, 1
        %s673 = scalar_select %p672, %s28, 1
        %s674 = smul.addr %s673, 32
        %s675 = smul.addr %s674, 8
        %s676 = scalar_lea.vmem %s5, %s675
        %p677 = scmp.lt.s32.totalorder %s28, 1
        %s678 = scalar_select %p677, %s28, 1
        %s679 = smul.addr %s678, 8
        %s680 = scalar_lea.vmem %s6, %s679
        %p681 = scmp.lt.s32.totalorder %s28, 1
        %s682 = scalar_select %p681, %s28, 1
        %s683 = smul.addr %s682, 32
        %s684 = smul.addr %s683, 8
        %s685 = scalar_lea.vmem %s7, %s684
        %p686 = scmp.lt.s32.totalorder %s28, 1
        %s687 = scalar_select %p686, %s28, 1
        %s688 = smul.addr %s687, 8
        %s689 = scalar_lea.vmem %s8, %s688
        %p690 = scmp.lt.s32.totalorder %s28, 1
        %s691 = scalar_select %p690, %s28, 1
        %s692 = smul.addr %s691, 8
        %s693 = smul.addr %s692, 8
        %s694 = scalar_lea.vmem %s9, %s693
        %p695 = scmp.lt.s32.totalorder %s28, 1
        %s696 = scalar_select %p695, %s28, 1
        %s697 = scalar_lea.vmem %s10, %s696
        %p698 = scmp.lt.s32.totalorder %s28, 1
        %s699 = scalar_select %p698, %s28, 1
        %s700 = smul.addr %s699, 8
        %s701 = scalar_lea.vmem %s11, %s700
        %p702 = scmp.lt.s32.totalorder %s28, 1
        %s703 = scalar_select %p702, %s28, 1
        %s704 = smul.addr %s703, 4
        %s705 = smul.addr %s704, 8
        %s706 = scalar_lea.vmem %s12, %s705
        %p707 = scmp.lt.s32.totalorder %s28, 1
        %s708 = scalar_select %p707, %s28, 1
        %s709 = scalar_lea.vmem %s13, %s708
        %p710 = scmp.lt.s32.totalorder %s28, 1
        %s711 = scalar_select %p710, %s28, 1
        %s712 = smul.addr %s711, 12
        %s713 = smul.addr %s712, 8
        %s714 = scalar_lea.vmem %s14, %s713
        %p715 = scmp.lt.s32.totalorder %s28, 1
        %s716 = scalar_select %p715, %s28, 1
        %s717 = scalar_lea.vmem %s15, %s716
        %p718 = scmp.eq.s32.totalorder %s28, 0
        // Predicated region
        $region85: #{tpu_custom_call.1} parent=83 // pred_check
          %p719 = pneg %p718
        $region86: #{tpu_custom_call.1} parent=83 // pred_check_branch
          %721 = sbr.rel (%p719) target = $region88
        $region87: #{tpu_custom_call.1} parent=83 // pred_region
          %v722 = vld [vmem:[%s0] sm:$0xff]
          %v723 = vld [vmem:[%s0 + $0x8] sm:$0xff]
          %vm724 = vcmask 261120
          %725 = vst.msk [vmem:[#allocation2] sm:$0xff] %vm724, %v722
          %726 = vst.msk [vmem:[#allocation2 + $0x8] sm:$0xff] %vm724, %v723
        $region88: #{tpu_custom_call.1} parent=83 // pred_fallthru
          _
        %v727 = vld [vmem:[#allocation2] sm:$0xff]
        %v728 = vld [vmem:[#allocation2 + $0x8] sm:$0xff]
        %v729 = vld [vmem:[%s2] sm:$0xff]
        %v730 = vld [vmem:[%s1] sm:$0xff]
        %v731 = vld [vmem:[%s1 + $0x8] sm:$0xff]
        %v732 = vld [vmem:[%s1 + $0x10] sm:$0xff]
        %v733 = vld [vmem:[%s1 + $0x18] sm:$0xff]
        %v734 = vld [vmem:[%s1 + $0x20] sm:$0xff]
        %v735 = vld [vmem:[%s1 + $0x28] sm:$0xff]
        %v736 = vld [vmem:[%s1 + $0x30] sm:$0xff]
        %v737 = vld [vmem:[%s1 + $0x38] sm:$0xff]
        %v738 = vld [vmem:[%s667] sm:$0xff]
        %v739 = vld [vmem:[%s667 + $0x8] sm:$0xff]
        %v740 = vld [vmem:[%s667 + $0x10] sm:$0xff]
        %v741 = vld [vmem:[%s667 + $0x18] sm:$0xff]
        %v742 = vld [vmem:[%s667 + $0x20] sm:$0xff]
        %v743 = vld [vmem:[%s667 + $0x28] sm:$0xff]
        %v744 = vld [vmem:[%s667 + $0x30] sm:$0xff]
        %v745 = vld [vmem:[%s667 + $0x38] sm:$0xff]
        %v746 = vld [vmem:[%s667 + $0x40] sm:$0xff]
        %v747 = vld [vmem:[%s667 + $0x48] sm:$0xff]
        %v748 = vld [vmem:[%s667 + $0x50] sm:$0xff]
        %v749 = vld [vmem:[%s667 + $0x58] sm:$0xff]
        %v750 = vld [vmem:[%s667 + $0x60] sm:$0xff]
        %v751 = vld [vmem:[%s667 + $0x68] sm:$0xff]
        %v752 = vld [vmem:[%s667 + $0x70] sm:$0xff]
        %v753 = vld [vmem:[%s667 + $0x78] sm:$0xff]
        %v754 = vld [vmem:[%s667 + $0x80] sm:$0xff]
        %v755 = vld [vmem:[%s667 + $0x88] sm:$0xff]
        %v756 = vld [vmem:[%s667 + $0x90] sm:$0xff]
        %v757 = vld [vmem:[%s667 + $0x98] sm:$0xff]
        %v758 = vld [vmem:[%s667 + $0xa0] sm:$0xff]
        %v759 = vld [vmem:[%s667 + $0xa8] sm:$0xff]
        %v760 = vld [vmem:[%s667 + $0xb0] sm:$0xff]
        %v761 = vld [vmem:[%s667 + $0xb8] sm:$0xff]
        %v762 = vld [vmem:[%s667 + $0xc0] sm:$0xff]
        %v763 = vld [vmem:[%s667 + $0xc8] sm:$0xff]
        %v764 = vld [vmem:[%s667 + $0xd0] sm:$0xff]
        %v765 = vld [vmem:[%s667 + $0xd8] sm:$0xff]
        %v766 = vld [vmem:[%s667 + $0xe0] sm:$0xff]
        %v767 = vld [vmem:[%s667 + $0xe8] sm:$0xff]
        %v768 = vld [vmem:[%s667 + $0xf0] sm:$0xff]
        %v769 = vld [vmem:[%s667 + $0xf8] sm:$0xff]
        %v770 = vld [vmem:[%s671] sm:$0x1]
        %v771 = vld [vmem:[%s671 + $0x1] sm:$0x1]
        %v772 = vld [vmem:[%s671 + $0x2] sm:$0x1]
        %v773 = vld [vmem:[%s671 + $0x3] sm:$0x1]
        %v774 = vld [vmem:[%s671 + $0x4] sm:$0x1]
        %v775 = vld [vmem:[%s671 + $0x5] sm:$0x1]
        %v776 = vld [vmem:[%s671 + $0x6] sm:$0x1]
        %v777 = vld [vmem:[%s671 + $0x7] sm:$0x1]
        %v786 = vperm.slane %v770, 0
        %v787 = vperm.slane %v771, 0
        %v788 = vperm.slane %v772, 0
        %v789 = vperm.slane %v773, 0
        %v790 = vperm.slane %v774, 0
        %v791 = vperm.slane %v775, 0
        %v792 = vperm.slane %v776, 0
        %v793 = vperm.slane %v777, 0
        %vm802 = vcmask 261120
        %v804 = vsel %vm802, %v727, 0
        %806 = vmatpush.msra.mxu0 0.0
        %807 = vmatpush.msra.mxu0 0.0
        %808 = vmatpush.msra.mxu0 0.0
        %809 = vmatpush.msra.mxu0 0.0
        %810 = vmatpush.msra.mxu0 0.0
        %811 = vmatpush.msra.mxu0 0.0
        %812 = vmatpush.msra.mxu0 0.0
        %813 = vmatpush.msra.mxu0 0.0
        %814 = vmatpush.msra.mxu0 0.0
        %815 = vmatpush.msra.mxu0 0.0
        %816 = vmatpush.msra.mxu0 0.0
        %817 = vmatpush.msra.mxu0 0.0
        %818 = vmatpush.msra.mxu0 %v741
        %819 = vmatpush.msra.mxu0 %v740
        %820 = vmatpush.msra.mxu0 %v739
        %821 = vmatpush.msra.mxu0 %v738
        %822 = vmatmul.f32.gmra.mxu0 %v804
        %v823 = vpop.f32.mrf.mxu0
        %v824 = vadd.f32 %v786, %v823
        %825 = vdwg.mxu0
        %826 = vmatpush.msra.mxu0 0.0
        %827 = vmatpush.msra.mxu0 0.0
        %828 = vmatpush.msra.mxu0 0.0
        %829 = vmatpush.msra.mxu0 0.0
        %830 = vmatpush.msra.mxu0 0.0
        %831 = vmatpush.msra.mxu0 0.0
        %832 = vmatpush.msra.mxu0 0.0
        %833 = vmatpush.msra.mxu0 0.0
        %834 = vmatpush.msra.mxu0 0.0
        %835 = vmatpush.msra.mxu0 0.0
        %836 = vmatpush.msra.mxu0 0.0
        %837 = vmatpush.msra.mxu0 0.0
        %838 = vmatpush.msra.mxu0 %v745
        %839 = vmatpush.msra.mxu0 %v744
        %840 = vmatpush.msra.mxu0 %v743
        %841 = vmatpush.msra.mxu0 %v742
        %842 = vmatmul.f32.gmra.mxu0 %v804
        %v843 = vpop.f32.mrf.mxu0
        %v844 = vadd.f32 %v787, %v843
        %845 = vdwg.mxu0
        %846 = vmatpush.msra.mxu0 0.0
        %847 = vmatpush.msra.mxu0 0.0
        %848 = vmatpush.msra.mxu0 0.0
        %849 = vmatpush.msra.mxu0 0.0
        %850 = vmatpush.msra.mxu0 0.0
        %851 = vmatpush.msra.mxu0 0.0
        %852 = vmatpush.msra.mxu0 0.0
        %853 = vmatpush.msra.mxu0 0.0
        %854 = vmatpush.msra.mxu0 0.0
        %855 = vmatpush.msra.mxu0 0.0
        %856 = vmatpush.msra.mxu0 0.0
        %857 = vmatpush.msra.mxu0 0.0
        %858 = vmatpush.msra.mxu0 %v749
        %859 = vmatpush.msra.mxu0 %v748
        %860 = vmatpush.msra.mxu0 %v747
        %861 = vmatpush.msra.mxu0 %v746
        %862 = vmatmul.f32.gmra.mxu0 %v804
        %v863 = vpop.f32.mrf.mxu0
        %v864 = vadd.f32 %v788, %v863
        %865 = vdwg.mxu0
        %866 = vmatpush.msra.mxu0 0.0
        %867 = vmatpush.msra.mxu0 0.0
        %868 = vmatpush.msra.mxu0 0.0
        %869 = vmatpush.msra.mxu0 0.0
        %870 = vmatpush.msra.mxu0 0.0
        %871 = vmatpush.msra.mxu0 0.0
        %872 = vmatpush.msra.mxu0 0.0
        %873 = vmatpush.msra.mxu0 0.0
        %874 = vmatpush.msra.mxu0 0.0
        %875 = vmatpush.msra.mxu0 0.0
        %876 = vmatpush.msra.mxu0 0.0
        %877 = vmatpush.msra.mxu0 0.0
        %878 = vmatpush.msra.mxu0 %v753
        %879 = vmatpush.msra.mxu0 %v752
        %880 = vmatpush.msra.mxu0 %v751
        %881 = vmatpush.msra.mxu0 %v750
        %882 = vmatmul.f32.gmra.mxu0 %v804
        %v883 = vpop.f32.mrf.mxu0
        %v884 = vadd.f32 %v789, %v883
        %885 = vdwg.mxu0
        %v887 = vsel %vm802, %v728, 0
        %889 = vmatpush.msra.mxu0 0.0
        %890 = vmatpush.msra.mxu0 0.0
        %891 = vmatpush.msra.mxu0 0.0
        %892 = vmatpush.msra.mxu0 0.0
        %893 = vmatpush.msra.mxu0 0.0
        %894 = vmatpush.msra.mxu0 0.0
        %895 = vmatpush.msra.mxu0 0.0
        %896 = vmatpush.msra.mxu0 0.0
        %897 = vmatpush.msra.mxu0 0.0
        %898 = vmatpush.msra.mxu0 0.0
        %899 = vmatpush.msra.mxu0 0.0
        %900 = vmatpush.msra.mxu0 0.0
        %901 = vmatpush.msra.mxu0 %v757
        %902 = vmatpush.msra.mxu0 %v756
        %903 = vmatpush.msra.mxu0 %v755
        %904 = vmatpush.msra.mxu0 %v754
        %905 = vmatmul.f32.gmra.mxu0 %v887
        %v906 = vpop.f32.mrf.mxu0
        %v907 = vadd.f32 %v790, %v906
        %908 = vdwg.mxu0
        %909 = vmatpush.msra.mxu0 0.0
        %910 = vmatpush.msra.mxu0 0.0
        %911 = vmatpush.msra.mxu0 0.0
        %912 = vmatpush.msra.mxu0 0.0
        %913 = vmatpush.msra.mxu0 0.0
        %914 = vmatpush.msra.mxu0 0.0
        %915 = vmatpush.msra.mxu0 0.0
        %916 = vmatpush.msra.mxu0 0.0
        %917 = vmatpush.msra.mxu0 0.0
        %918 = vmatpush.msra.mxu0 0.0
        %919 = vmatpush.msra.mxu0 0.0
        %920 = vmatpush.msra.mxu0 0.0
        %921 = vmatpush.msra.mxu0 %v761
        %922 = vmatpush.msra.mxu0 %v760
        %923 = vmatpush.msra.mxu0 %v759
        %924 = vmatpush.msra.mxu0 %v758
        %925 = vmatmul.f32.gmra.mxu0 %v887
        %v926 = vpop.f32.mrf.mxu0
        %v927 = vadd.f32 %v791, %v926
        %928 = vdwg.mxu0
        %929 = vmatpush.msra.mxu0 0.0
        %930 = vmatpush.msra.mxu0 0.0
        %931 = vmatpush.msra.mxu0 0.0
        %932 = vmatpush.msra.mxu0 0.0
        %933 = vmatpush.msra.mxu0 0.0
        %934 = vmatpush.msra.mxu0 0.0
        %935 = vmatpush.msra.mxu0 0.0
        %936 = vmatpush.msra.mxu0 0.0
        %937 = vmatpush.msra.mxu0 0.0
        %938 = vmatpush.msra.mxu0 0.0
        %939 = vmatpush.msra.mxu0 0.0
        %940 = vmatpush.msra.mxu0 0.0
        %941 = vmatpush.msra.mxu0 %v765
        %942 = vmatpush.msra.mxu0 %v764
        %943 = vmatpush.msra.mxu0 %v763
        %944 = vmatpush.msra.mxu0 %v762
        %945 = vmatmul.f32.gmra.mxu0 %v887
        %v946 = vpop.f32.mrf.mxu0
        %v947 = vadd.f32 %v792, %v946
        %948 = vdwg.mxu0
        %949 = vmatpush.msra.mxu0 0.0
        %950 = vmatpush.msra.mxu0 0.0
        %951 = vmatpush.msra.mxu0 0.0
        %952 = vmatpush.msra.mxu0 0.0
        %953 = vmatpush.msra.mxu0 0.0
        %954 = vmatpush.msra.mxu0 0.0
        %955 = vmatpush.msra.mxu0 0.0
        %956 = vmatpush.msra.mxu0 0.0
        %957 = vmatpush.msra.mxu0 0.0
        %958 = vmatpush.msra.mxu0 0.0
        %959 = vmatpush.msra.mxu0 0.0
        %960 = vmatpush.msra.mxu0 0.0
        %961 = vmatpush.msra.mxu0 %v769
        %962 = vmatpush.msra.mxu0 %v768
        %963 = vmatpush.msra.mxu0 %v767
        %964 = vmatpush.msra.mxu0 %v766
        %965 = vmatmul.f32.gmra.mxu0 %v887
        %v966 = vpop.f32.mrf.mxu0
        %v967 = vadd.f32 %v793, %v966
        %968 = vdwg.mxu0
        %v969 = vld [vmem:[%s676] sm:$0xff]
        %v970 = vld [vmem:[%s676 + $0x8] sm:$0xff]
        %v971 = vld [vmem:[%s676 + $0x10] sm:$0xff]
        %v972 = vld [vmem:[%s676 + $0x18] sm:$0xff]
        %v973 = vld [vmem:[%s676 + $0x20] sm:$0xff]
        %v974 = vld [vmem:[%s676 + $0x28] sm:$0xff]
        %v975 = vld [vmem:[%s676 + $0x30] sm:$0xff]
        %v976 = vld [vmem:[%s676 + $0x38] sm:$0xff]
        %v977 = vld [vmem:[%s676 + $0x40] sm:$0xff]
        %v978 = vld [vmem:[%s676 + $0x48] sm:$0xff]
        %v979 = vld [vmem:[%s676 + $0x50] sm:$0xff]
        %v980 = vld [vmem:[%s676 + $0x58] sm:$0xff]
        %v981 = vld [vmem:[%s676 + $0x60] sm:$0xff]
        %v982 = vld [vmem:[%s676 + $0x68] sm:$0xff]
        %v983 = vld [vmem:[%s676 + $0x70] sm:$0xff]
        %v984 = vld [vmem:[%s676 + $0x78] sm:$0xff]
        %v985 = vld [vmem:[%s676 + $0x80] sm:$0xff]
        %v986 = vld [vmem:[%s676 + $0x88] sm:$0xff]
        %v987 = vld [vmem:[%s676 + $0x90] sm:$0xff]
        %v988 = vld [vmem:[%s676 + $0x98] sm:$0xff]
        %v989 = vld [vmem:[%s676 + $0xa0] sm:$0xff]
        %v990 = vld [vmem:[%s676 + $0xa8] sm:$0xff]
        %v991 = vld [vmem:[%s676 + $0xb0] sm:$0xff]
        %v992 = vld [vmem:[%s676 + $0xb8] sm:$0xff]
        %v993 = vld [vmem:[%s676 + $0xc0] sm:$0xff]
        %v994 = vld [vmem:[%s676 + $0xc8] sm:$0xff]
        %v995 = vld [vmem:[%s676 + $0xd0] sm:$0xff]
        %v996 = vld [vmem:[%s676 + $0xd8] sm:$0xff]
        %v997 = vld [vmem:[%s676 + $0xe0] sm:$0xff]
        %v998 = vld [vmem:[%s676 + $0xe8] sm:$0xff]
        %v999 = vld [vmem:[%s676 + $0xf0] sm:$0xff]
        %v1000 = vld [vmem:[%s676 + $0xf8] sm:$0xff]
        %v1001 = vld [vmem:[%s680] sm:$0x1]
        %v1002 = vld [vmem:[%s680 + $0x1] sm:$0x1]
        %v1003 = vld [vmem:[%s680 + $0x2] sm:$0x1]
        %v1004 = vld [vmem:[%s680 + $0x3] sm:$0x1]
        %v1005 = vld [vmem:[%s680 + $0x4] sm:$0x1]
        %v1006 = vld [vmem:[%s680 + $0x5] sm:$0x1]
        %v1007 = vld [vmem:[%s680 + $0x6] sm:$0x1]
        %v1008 = vld [vmem:[%s680 + $0x7] sm:$0x1]
        %v1017 = vperm.slane %v1001, 0
        %v1018 = vperm.slane %v1002, 0
        %v1019 = vperm.slane %v1003, 0
        %v1020 = vperm.slane %v1004, 0
        %v1021 = vperm.slane %v1005, 0
        %v1022 = vperm.slane %v1006, 0
        %v1023 = vperm.slane %v1007, 0
        %v1024 = vperm.slane %v1008, 0
        %v1034 = vsel %vm802, %v730, 0
        %1036 = vmatpush.msra.mxu0 0.0
        %1037 = vmatpush.msra.mxu0 0.0
        %1038 = vmatpush.msra.mxu0 0.0
        %1039 = vmatpush.msra.mxu0 0.0
        %1040 = vmatpush.msra.mxu0 0.0
        %1041 = vmatpush.msra.mxu0 0.0
        %1042 = vmatpush.msra.mxu0 0.0
        %1043 = vmatpush.msra.mxu0 0.0
        %1044 = vmatpush.msra.mxu0 0.0
        %1045 = vmatpush.msra.mxu0 0.0
        %1046 = vmatpush.msra.mxu0 0.0
        %1047 = vmatpush.msra.mxu0 0.0
        %1048 = vmatpush.msra.mxu0 %v972
        %1049 = vmatpush.msra.mxu0 %v971
        %1050 = vmatpush.msra.mxu0 %v970
        %1051 = vmatpush.msra.mxu0 %v969
        %1052 = vmatmul.f32.gmra.mxu0 %v1034
        %v1053 = vpop.f32.mrf.mxu0
        %v1054 = vadd.f32 %v1017, %v1053
        %1055 = vdwg.mxu0
        %v1057 = vsel %vm802, %v731, 0
        %1059 = vmatpush.msra.mxu0 0.0
        %1060 = vmatpush.msra.mxu0 0.0
        %1061 = vmatpush.msra.mxu0 0.0
        %1062 = vmatpush.msra.mxu0 0.0
        %1063 = vmatpush.msra.mxu0 0.0
        %1064 = vmatpush.msra.mxu0 0.0
        %1065 = vmatpush.msra.mxu0 0.0
        %1066 = vmatpush.msra.mxu0 0.0
        %1067 = vmatpush.msra.mxu0 0.0
        %1068 = vmatpush.msra.mxu0 0.0
        %1069 = vmatpush.msra.mxu0 0.0
        %1070 = vmatpush.msra.mxu0 0.0
        %1071 = vmatpush.msra.mxu0 %v976
        %1072 = vmatpush.msra.mxu0 %v975
        %1073 = vmatpush.msra.mxu0 %v974
        %1074 = vmatpush.msra.mxu0 %v973
        %1075 = vmatmul.f32.gmra.mxu0 %v1057
        %v1076 = vpop.f32.mrf.mxu0
        %v1077 = vadd.f32 %v1018, %v1076
        %1078 = vdwg.mxu0
        %v1080 = vsel %vm802, %v732, 0
        %1082 = vmatpush.msra.mxu0 0.0
        %1083 = vmatpush.msra.mxu0 0.0
        %1084 = vmatpush.msra.mxu0 0.0
        %1085 = vmatpush.msra.mxu0 0.0
        %1086 = vmatpush.msra.mxu0 0.0
        %1087 = vmatpush.msra.mxu0 0.0
        %1088 = vmatpush.msra.mxu0 0.0
        %1089 = vmatpush.msra.mxu0 0.0
        %1090 = vmatpush.msra.mxu0 0.0
        %1091 = vmatpush.msra.mxu0 0.0
        %1092 = vmatpush.msra.mxu0 0.0
        %1093 = vmatpush.msra.mxu0 0.0
        %1094 = vmatpush.msra.mxu0 %v980
        %1095 = vmatpush.msra.mxu0 %v979
        %1096 = vmatpush.msra.mxu0 %v978
        %1097 = vmatpush.msra.mxu0 %v977
        %1098 = vmatmul.f32.gmra.mxu0 %v1080
        %v1099 = vpop.f32.mrf.mxu0
        %v1100 = vadd.f32 %v1019, %v1099
        %1101 = vdwg.mxu0
        %v1103 = vsel %vm802, %v733, 0
        %1105 = vmatpush.msra.mxu0 0.0
        %1106 = vmatpush.msra.mxu0 0.0
        %1107 = vmatpush.msra.mxu0 0.0
        %1108 = vmatpush.msra.mxu0 0.0
        %1109 = vmatpush.msra.mxu0 0.0
        %1110 = vmatpush.msra.mxu0 0.0
        %1111 = vmatpush.msra.mxu0 0.0
        %1112 = vmatpush.msra.mxu0 0.0
        %1113 = vmatpush.msra.mxu0 0.0
        %1114 = vmatpush.msra.mxu0 0.0
        %1115 = vmatpush.msra.mxu0 0.0
        %1116 = vmatpush.msra.mxu0 0.0
        %1117 = vmatpush.msra.mxu0 %v984
        %1118 = vmatpush.msra.mxu0 %v983
        %1119 = vmatpush.msra.mxu0 %v982
        %1120 = vmatpush.msra.mxu0 %v981
        %1121 = vmatmul.f32.gmra.mxu0 %v1103
        %v1122 = vpop.f32.mrf.mxu0
        %v1123 = vadd.f32 %v1020, %v1122
        %1124 = vdwg.mxu0
        %v1126 = vsel %vm802, %v734, 0
        %1128 = vmatpush.msra.mxu0 0.0
        %1129 = vmatpush.msra.mxu0 0.0
        %1130 = vmatpush.msra.mxu0 0.0
        %1131 = vmatpush.msra.mxu0 0.0
        %1132 = vmatpush.msra.mxu0 0.0
        %1133 = vmatpush.msra.mxu0 0.0
        %1134 = vmatpush.msra.mxu0 0.0
        %1135 = vmatpush.msra.mxu0 0.0
        %1136 = vmatpush.msra.mxu0 0.0
        %1137 = vmatpush.msra.mxu0 0.0
        %1138 = vmatpush.msra.mxu0 0.0
        %1139 = vmatpush.msra.mxu0 0.0
        %1140 = vmatpush.msra.mxu0 %v988
        %1141 = vmatpush.msra.mxu0 %v987
        %1142 = vmatpush.msra.mxu0 %v986
        %1143 = vmatpush.msra.mxu0 %v985
        %1144 = vmatmul.f32.gmra.mxu0 %v1126
        %v1145 = vpop.f32.mrf.mxu0
        %v1146 = vadd.f32 %v1021, %v1145
        %1147 = vdwg.mxu0
        %v1149 = vsel %vm802, %v735, 0
        %1151 = vmatpush.msra.mxu0 0.0
        %1152 = vmatpush.msra.mxu0 0.0
        %1153 = vmatpush.msra.mxu0 0.0
        %1154 = vmatpush.msra.mxu0 0.0
        %1155 = vmatpush.msra.mxu0 0.0
        %1156 = vmatpush.msra.mxu0 0.0
        %1157 = vmatpush.msra.mxu0 0.0
        %1158 = vmatpush.msra.mxu0 0.0
        %1159 = vmatpush.msra.mxu0 0.0
        %1160 = vmatpush.msra.mxu0 0.0
        %1161 = vmatpush.msra.mxu0 0.0
        %1162 = vmatpush.msra.mxu0 0.0
        %1163 = vmatpush.msra.mxu0 %v992
        %1164 = vmatpush.msra.mxu0 %v991
        %1165 = vmatpush.msra.mxu0 %v990
        %1166 = vmatpush.msra.mxu0 %v989
        %1167 = vmatmul.f32.gmra.mxu0 %v1149
        %v1168 = vpop.f32.mrf.mxu0
        %v1169 = vadd.f32 %v1022, %v1168
        %1170 = vdwg.mxu0
        %v1172 = vsel %vm802, %v736, 0
        %1174 = vmatpush.msra.mxu0 0.0
        %1175 = vmatpush.msra.mxu0 0.0
        %1176 = vmatpush.msra.mxu0 0.0
        %1177 = vmatpush.msra.mxu0 0.0
        %1178 = vmatpush.msra.mxu0 0.0
        %1179 = vmatpush.msra.mxu0 0.0
        %1180 = vmatpush.msra.mxu0 0.0
        %1181 = vmatpush.msra.mxu0 0.0
        %1182 = vmatpush.msra.mxu0 0.0
        %1183 = vmatpush.msra.mxu0 0.0
        %1184 = vmatpush.msra.mxu0 0.0
        %1185 = vmatpush.msra.mxu0 0.0
        %1186 = vmatpush.msra.mxu0 %v996
        %1187 = vmatpush.msra.mxu0 %v995
        %1188 = vmatpush.msra.mxu0 %v994
        %1189 = vmatpush.msra.mxu0 %v993
        %1190 = vmatmul.f32.gmra.mxu0 %v1172
        %v1191 = vpop.f32.mrf.mxu0
        %v1192 = vadd.f32 %v1023, %v1191
        %1193 = vdwg.mxu0
        %v1195 = vsel %vm802, %v737, 0
        %1197 = vmatpush.msra.mxu0 0.0
        %1198 = vmatpush.msra.mxu0 0.0
        %1199 = vmatpush.msra.mxu0 0.0
        %1200 = vmatpush.msra.mxu0 0.0
        %1201 = vmatpush.msra.mxu0 0.0
        %1202 = vmatpush.msra.mxu0 0.0
        %1203 = vmatpush.msra.mxu0 0.0
        %1204 = vmatpush.msra.mxu0 0.0
        %1205 = vmatpush.msra.mxu0 0.0
        %1206 = vmatpush.msra.mxu0 0.0
        %1207 = vmatpush.msra.mxu0 0.0
        %1208 = vmatpush.msra.mxu0 0.0
        %1209 = vmatpush.msra.mxu0 %v1000
        %1210 = vmatpush.msra.mxu0 %v999
        %1211 = vmatpush.msra.mxu0 %v998
        %1212 = vmatpush.msra.mxu0 %v997
        %1213 = vmatmul.f32.gmra.mxu0 %v1195
        %v1214 = vpop.f32.mrf.mxu0
        %v1215 = vadd.f32 %v1024, %v1214
        %1216 = vdwg.mxu0
        %v1217 = vld [vmem:[%s685] sm:$0xff]
        %v1218 = vld [vmem:[%s685 + $0x8] sm:$0xff]
        %v1219 = vld [vmem:[%s685 + $0x10] sm:$0xff]
        %v1220 = vld [vmem:[%s685 + $0x18] sm:$0xff]
        %v1221 = vld [vmem:[%s685 + $0x20] sm:$0xff]
        %v1222 = vld [vmem:[%s685 + $0x28] sm:$0xff]
        %v1223 = vld [vmem:[%s685 + $0x30] sm:$0xff]
        %v1224 = vld [vmem:[%s685 + $0x38] sm:$0xff]
        %v1225 = vld [vmem:[%s685 + $0x40] sm:$0xff]
        %v1226 = vld [vmem:[%s685 + $0x48] sm:$0xff]
        %v1227 = vld [vmem:[%s685 + $0x50] sm:$0xff]
        %v1228 = vld [vmem:[%s685 + $0x58] sm:$0xff]
        %v1229 = vld [vmem:[%s685 + $0x60] sm:$0xff]
        %v1230 = vld [vmem:[%s685 + $0x68] sm:$0xff]
        %v1231 = vld [vmem:[%s685 + $0x70] sm:$0xff]
        %v1232 = vld [vmem:[%s685 + $0x78] sm:$0xff]
        %v1233 = vld [vmem:[%s685 + $0x80] sm:$0xff]
        %v1234 = vld [vmem:[%s685 + $0x88] sm:$0xff]
        %v1235 = vld [vmem:[%s685 + $0x90] sm:$0xff]
        %v1236 = vld [vmem:[%s685 + $0x98] sm:$0xff]
        %v1237 = vld [vmem:[%s685 + $0xa0] sm:$0xff]
        %v1238 = vld [vmem:[%s685 + $0xa8] sm:$0xff]
        %v1239 = vld [vmem:[%s685 + $0xb0] sm:$0xff]
        %v1240 = vld [vmem:[%s685 + $0xb8] sm:$0xff]
        %v1241 = vld [vmem:[%s685 + $0xc0] sm:$0xff]
        %v1242 = vld [vmem:[%s685 + $0xc8] sm:$0xff]
        %v1243 = vld [vmem:[%s685 + $0xd0] sm:$0xff]
        %v1244 = vld [vmem:[%s685 + $0xd8] sm:$0xff]
        %v1245 = vld [vmem:[%s685 + $0xe0] sm:$0xff]
        %v1246 = vld [vmem:[%s685 + $0xe8] sm:$0xff]
        %v1247 = vld [vmem:[%s685 + $0xf0] sm:$0xff]
        %v1248 = vld [vmem:[%s685 + $0xf8] sm:$0xff]
        %v1249 = vld [vmem:[%s689] sm:$0x1]
        %v1250 = vld [vmem:[%s689 + $0x1] sm:$0x1]
        %v1251 = vld [vmem:[%s689 + $0x2] sm:$0x1]
        %v1252 = vld [vmem:[%s689 + $0x3] sm:$0x1]
        %v1253 = vld [vmem:[%s689 + $0x4] sm:$0x1]
        %v1254 = vld [vmem:[%s689 + $0x5] sm:$0x1]
        %v1255 = vld [vmem:[%s689 + $0x6] sm:$0x1]
        %v1256 = vld [vmem:[%s689 + $0x7] sm:$0x1]
        %v1265 = vperm.slane %v1249, 0
        %v1266 = vperm.slane %v1250, 0
        %v1267 = vperm.slane %v1251, 0
        %v1268 = vperm.slane %v1252, 0
        %v1269 = vperm.slane %v1253, 0
        %v1270 = vperm.slane %v1254, 0
        %v1271 = vperm.slane %v1255, 0
        %v1272 = vperm.slane %v1256, 0
        %1281 = vmatpush.msra.mxu0 0.0
        %1282 = vmatpush.msra.mxu0 0.0
        %1283 = vmatpush.msra.mxu0 0.0
        %1284 = vmatpush.msra.mxu0 0.0
        %1285 = vmatpush.msra.mxu0 0.0
        %1286 = vmatpush.msra.mxu0 0.0
        %1287 = vmatpush.msra.mxu0 0.0
        %1288 = vmatpush.msra.mxu0 0.0
        %1289 = vmatpush.msra.mxu0 0.0
        %1290 = vmatpush.msra.mxu0 0.0
        %1291 = vmatpush.msra.mxu0 0.0
        %1292 = vmatpush.msra.mxu0 0.0
        %1293 = vmatpush.msra.mxu0 %v1220
        %1294 = vmatpush.msra.mxu0 %v1219
        %1295 = vmatpush.msra.mxu0 %v1218
        %1296 = vmatpush.msra.mxu0 %v1217
        %1297 = vmatmul.f32.gmra.mxu0 %v1034
        %v1298 = vpop.f32.mrf.mxu0
        %v1299 = vadd.f32 %v1265, %v1298
        %1300 = vdwg.mxu0
        %1301 = vmatpush.msra.mxu0 0.0
        %1302 = vmatpush.msra.mxu0 0.0
        %1303 = vmatpush.msra.mxu0 0.0
        %1304 = vmatpush.msra.mxu0 0.0
        %1305 = vmatpush.msra.mxu0 0.0
        %1306 = vmatpush.msra.mxu0 0.0
        %1307 = vmatpush.msra.mxu0 0.0
        %1308 = vmatpush.msra.mxu0 0.0
        %1309 = vmatpush.msra.mxu0 0.0
        %1310 = vmatpush.msra.mxu0 0.0
        %1311 = vmatpush.msra.mxu0 0.0
        %1312 = vmatpush.msra.mxu0 0.0
        %1313 = vmatpush.msra.mxu0 %v1224
        %1314 = vmatpush.msra.mxu0 %v1223
        %1315 = vmatpush.msra.mxu0 %v1222
        %1316 = vmatpush.msra.mxu0 %v1221
        %1317 = vmatmul.f32.gmra.mxu0 %v1057
        %v1318 = vpop.f32.mrf.mxu0
        %v1319 = vadd.f32 %v1266, %v1318
        %1320 = vdwg.mxu0
        %1321 = vmatpush.msra.mxu0 0.0
        %1322 = vmatpush.msra.mxu0 0.0
        %1323 = vmatpush.msra.mxu0 0.0
        %1324 = vmatpush.msra.mxu0 0.0
        %1325 = vmatpush.msra.mxu0 0.0
        %1326 = vmatpush.msra.mxu0 0.0
        %1327 = vmatpush.msra.mxu0 0.0
        %1328 = vmatpush.msra.mxu0 0.0
        %1329 = vmatpush.msra.mxu0 0.0
        %1330 = vmatpush.msra.mxu0 0.0
        %1331 = vmatpush.msra.mxu0 0.0
        %1332 = vmatpush.msra.mxu0 0.0
        %1333 = vmatpush.msra.mxu0 %v1228
        %1334 = vmatpush.msra.mxu0 %v1227
        %1335 = vmatpush.msra.mxu0 %v1226
        %1336 = vmatpush.msra.mxu0 %v1225
        %1337 = vmatmul.f32.gmra.mxu0 %v1080
        %v1338 = vpop.f32.mrf.mxu0
        %v1339 = vadd.f32 %v1267, %v1338
        %1340 = vdwg.mxu0
        %1341 = vmatpush.msra.mxu0 0.0
        %1342 = vmatpush.msra.mxu0 0.0
        %1343 = vmatpush.msra.mxu0 0.0
        %1344 = vmatpush.msra.mxu0 0.0
        %1345 = vmatpush.msra.mxu0 0.0
        %1346 = vmatpush.msra.mxu0 0.0
        %1347 = vmatpush.msra.mxu0 0.0
        %1348 = vmatpush.msra.mxu0 0.0
        %1349 = vmatpush.msra.mxu0 0.0
        %1350 = vmatpush.msra.mxu0 0.0
        %1351 = vmatpush.msra.mxu0 0.0
        %1352 = vmatpush.msra.mxu0 0.0
        %1353 = vmatpush.msra.mxu0 %v1232
        %1354 = vmatpush.msra.mxu0 %v1231
        %1355 = vmatpush.msra.mxu0 %v1230
        %1356 = vmatpush.msra.mxu0 %v1229
        %1357 = vmatmul.f32.gmra.mxu0 %v1103
        %v1358 = vpop.f32.mrf.mxu0
        %v1359 = vadd.f32 %v1268, %v1358
        %1360 = vdwg.mxu0
        %1361 = vmatpush.msra.mxu0 0.0
        %1362 = vmatpush.msra.mxu0 0.0
        %1363 = vmatpush.msra.mxu0 0.0
        %1364 = vmatpush.msra.mxu0 0.0
        %1365 = vmatpush.msra.mxu0 0.0
        %1366 = vmatpush.msra.mxu0 0.0
        %1367 = vmatpush.msra.mxu0 0.0
        %1368 = vmatpush.msra.mxu0 0.0
        %1369 = vmatpush.msra.mxu0 0.0
        %1370 = vmatpush.msra.mxu0 0.0
        %1371 = vmatpush.msra.mxu0 0.0
        %1372 = vmatpush.msra.mxu0 0.0
        %1373 = vmatpush.msra.mxu0 %v1236
        %1374 = vmatpush.msra.mxu0 %v1235
        %1375 = vmatpush.msra.mxu0 %v1234
        %1376 = vmatpush.msra.mxu0 %v1233
        %1377 = vmatmul.f32.gmra.mxu0 %v1126
        %v1378 = vpop.f32.mrf.mxu0
        %v1379 = vadd.f32 %v1269, %v1378
        %1380 = vdwg.mxu0
        %1381 = vmatpush.msra.mxu0 0.0
        %1382 = vmatpush.msra.mxu0 0.0
        %1383 = vmatpush.msra.mxu0 0.0
        %1384 = vmatpush.msra.mxu0 0.0
        %1385 = vmatpush.msra.mxu0 0.0
        %1386 = vmatpush.msra.mxu0 0.0
        %1387 = vmatpush.msra.mxu0 0.0
        %1388 = vmatpush.msra.mxu0 0.0
        %1389 = vmatpush.msra.mxu0 0.0
        %1390 = vmatpush.msra.mxu0 0.0
        %1391 = vmatpush.msra.mxu0 0.0
        %1392 = vmatpush.msra.mxu0 0.0
        %1393 = vmatpush.msra.mxu0 %v1240
        %1394 = vmatpush.msra.mxu0 %v1239
        %1395 = vmatpush.msra.mxu0 %v1238
        %1396 = vmatpush.msra.mxu0 %v1237
        %1397 = vmatmul.f32.gmra.mxu0 %v1149
        %v1398 = vpop.f32.mrf.mxu0
        %v1399 = vadd.f32 %v1270, %v1398
        %1400 = vdwg.mxu0
        %1401 = vmatpush.msra.mxu0 0.0
        %1402 = vmatpush.msra.mxu0 0.0
        %1403 = vmatpush.msra.mxu0 0.0
        %1404 = vmatpush.msra.mxu0 0.0
        %1405 = vmatpush.msra.mxu0 0.0
        %1406 = vmatpush.msra.mxu0 0.0
        %1407 = vmatpush.msra.mxu0 0.0
        %1408 = vmatpush.msra.mxu0 0.0
        %1409 = vmatpush.msra.mxu0 0.0
        %1410 = vmatpush.msra.mxu0 0.0
        %1411 = vmatpush.msra.mxu0 0.0
        %1412 = vmatpush.msra.mxu0 0.0
        %1413 = vmatpush.msra.mxu0 %v1244
        %1414 = vmatpush.msra.mxu0 %v1243
        %1415 = vmatpush.msra.mxu0 %v1242
        %1416 = vmatpush.msra.mxu0 %v1241
        %1417 = vmatmul.f32.gmra.mxu0 %v1172
        %v1418 = vpop.f32.mrf.mxu0
        %v1419 = vadd.f32 %v1271, %v1418
        %1420 = vdwg.mxu0
        %1421 = vmatpush.msra.mxu0 0.0
        %1422 = vmatpush.msra.mxu0 0.0
        %1423 = vmatpush.msra.mxu0 0.0
        %1424 = vmatpush.msra.mxu0 0.0
        %1425 = vmatpush.msra.mxu0 0.0
        %1426 = vmatpush.msra.mxu0 0.0
        %1427 = vmatpush.msra.mxu0 0.0
        %1428 = vmatpush.msra.mxu0 0.0
        %1429 = vmatpush.msra.mxu0 0.0
        %1430 = vmatpush.msra.mxu0 0.0
        %1431 = vmatpush.msra.mxu0 0.0
        %1432 = vmatpush.msra.mxu0 0.0
        %1433 = vmatpush.msra.mxu0 %v1248
        %1434 = vmatpush.msra.mxu0 %v1247
        %1435 = vmatpush.msra.mxu0 %v1246
        %1436 = vmatpush.msra.mxu0 %v1245
        %1437 = vmatmul.f32.gmra.mxu0 %v1195
        %v1438 = vpop.f32.mrf.mxu0
        %v1439 = vadd.f32 %v1272, %v1438
        %1440 = vdwg.mxu0
        %vm1441 = vcmask 64512
        %v1443 = vsel %vm1441, %v824, 0
        %v1446 = vsel %vm1441, %v1054, 0
        %1448 = vmatpush.xpose.msra.mxu0 0.0
        %1449 = vmatpush.xpose.msra.mxu0 0.0
        %1450 = vmatpush.xpose.msra.mxu0 0.0
        %1451 = vmatpush.xpose.msra.mxu0 0.0
        %1452 = vmatpush.xpose.msra.mxu0 0.0
        %1453 = vmatpush.xpose.msra.mxu0 0.0
        %1454 = vmatpush.xpose.msra.mxu0 0.0
        %1455 = vmatpush.xpose.msra.mxu0 0.0
        %1456 = vmatpush.xpose.msra.mxu0 0.0
        %1457 = vmatpush.xpose.msra.mxu0 0.0
        %1458 = vmatpush.xpose.msra.mxu0 0.0
        %1459 = vmatpush.xpose.msra.mxu0 0.0
        %1460 = vmatpush.xpose.msra.mxu0 0.0
        %1461 = vmatpush.xpose.msra.mxu0 0.0
        %1462 = vmatpush.xpose.msra.mxu0 0.0
        %1463 = vmatpush.xpose.msra.mxu0 %v1446
        %1464 = vmatmul.f32.gmra.mxu0 %v1443
        %v1465 = vpop.f32.mrf.mxu0
        %v1466 = vadd.f32 0.0, %v1465
        %1467 = vdwg.mxu0
        %v1469 = vsel %vm1441, %v844, 0
        %v1472 = vsel %vm1441, %v1077, 0
        %1474 = vmatpush.xpose.msra.mxu0 0.0
        %1475 = vmatpush.xpose.msra.mxu0 0.0
        %1476 = vmatpush.xpose.msra.mxu0 0.0
        %1477 = vmatpush.xpose.msra.mxu0 0.0
        %1478 = vmatpush.xpose.msra.mxu0 0.0
        %1479 = vmatpush.xpose.msra.mxu0 0.0
        %1480 = vmatpush.xpose.msra.mxu0 0.0
        %1481 = vmatpush.xpose.msra.mxu0 0.0
        %1482 = vmatpush.xpose.msra.mxu0 0.0
        %1483 = vmatpush.xpose.msra.mxu0 0.0
        %1484 = vmatpush.xpose.msra.mxu0 0.0
        %1485 = vmatpush.xpose.msra.mxu0 0.0
        %1486 = vmatpush.xpose.msra.mxu0 0.0
        %1487 = vmatpush.xpose.msra.mxu0 0.0
        %1488 = vmatpush.xpose.msra.mxu0 0.0
        %1489 = vmatpush.xpose.msra.mxu0 %v1472
        %1490 = vmatmul.f32.gmra.mxu0 %v1469
        %v1491 = vpop.f32.mrf.mxu0
        %v1492 = vadd.f32 0.0, %v1491
        %1493 = vdwg.mxu0
        %v1495 = vsel %vm1441, %v864, 0
        %v1498 = vsel %vm1441, %v1100, 0
        %1500 = vmatpush.xpose.msra.mxu0 0.0
        %1501 = vmatpush.xpose.msra.mxu0 0.0
        %1502 = vmatpush.xpose.msra.mxu0 0.0
        %1503 = vmatpush.xpose.msra.mxu0 0.0
        %1504 = vmatpush.xpose.msra.mxu0 0.0
        %1505 = vmatpush.xpose.msra.mxu0 0.0
        %1506 = vmatpush.xpose.msra.mxu0 0.0
        %1507 = vmatpush.xpose.msra.mxu0 0.0
        %1508 = vmatpush.xpose.msra.mxu0 0.0
        %1509 = vmatpush.xpose.msra.mxu0 0.0
        %1510 = vmatpush.xpose.msra.mxu0 0.0
        %1511 = vmatpush.xpose.msra.mxu0 0.0
        %1512 = vmatpush.xpose.msra.mxu0 0.0
        %1513 = vmatpush.xpose.msra.mxu0 0.0
        %1514 = vmatpush.xpose.msra.mxu0 0.0
        %1515 = vmatpush.xpose.msra.mxu0 %v1498
        %1516 = vmatmul.f32.gmra.mxu0 %v1495
        %v1517 = vpop.f32.mrf.mxu0
        %v1518 = vadd.f32 0.0, %v1517
        %1519 = vdwg.mxu0
        %v1521 = vsel %vm1441, %v884, 0
        %v1524 = vsel %vm1441, %v1123, 0
        %1526 = vmatpush.xpose.msra.mxu0 0.0
        %1527 = vmatpush.xpose.msra.mxu0 0.0
        %1528 = vmatpush.xpose.msra.mxu0 0.0
        %1529 = vmatpush.xpose.msra.mxu0 0.0
        %1530 = vmatpush.xpose.msra.mxu0 0.0
        %1531 = vmatpush.xpose.msra.mxu0 0.0
        %1532 = vmatpush.xpose.msra.mxu0 0.0
        %1533 = vmatpush.xpose.msra.mxu0 0.0
        %1534 = vmatpush.xpose.msra.mxu0 0.0
        %1535 = vmatpush.xpose.msra.mxu0 0.0
        %1536 = vmatpush.xpose.msra.mxu0 0.0
        %1537 = vmatpush.xpose.msra.mxu0 0.0
        %1538 = vmatpush.xpose.msra.mxu0 0.0
        %1539 = vmatpush.xpose.msra.mxu0 0.0
        %1540 = vmatpush.xpose.msra.mxu0 0.0
        %1541 = vmatpush.xpose.msra.mxu0 %v1524
        %1542 = vmatmul.f32.gmra.mxu0 %v1521
        %v1543 = vpop.f32.mrf.mxu0
        %v1544 = vadd.f32 0.0, %v1543
        %1545 = vdwg.mxu0
        %v1547 = vsel %vm1441, %v907, 0
        %v1550 = vsel %vm1441, %v1146, 0
        %1552 = vmatpush.xpose.msra.mxu0 0.0
        %1553 = vmatpush.xpose.msra.mxu0 0.0
        %1554 = vmatpush.xpose.msra.mxu0 0.0
        %1555 = vmatpush.xpose.msra.mxu0 0.0
        %1556 = vmatpush.xpose.msra.mxu0 0.0
        %1557 = vmatpush.xpose.msra.mxu0 0.0
        %1558 = vmatpush.xpose.msra.mxu0 0.0
        %1559 = vmatpush.xpose.msra.mxu0 0.0
        %1560 = vmatpush.xpose.msra.mxu0 0.0
        %1561 = vmatpush.xpose.msra.mxu0 0.0
        %1562 = vmatpush.xpose.msra.mxu0 0.0
        %1563 = vmatpush.xpose.msra.mxu0 0.0
        %1564 = vmatpush.xpose.msra.mxu0 0.0
        %1565 = vmatpush.xpose.msra.mxu0 0.0
        %1566 = vmatpush.xpose.msra.mxu0 0.0
        %1567 = vmatpush.xpose.msra.mxu0 %v1550
        %1568 = vmatmul.f32.gmra.mxu0 %v1547
        %v1569 = vpop.f32.mrf.mxu0
        %v1570 = vadd.f32 0.0, %v1569
        %1571 = vdwg.mxu0
        %v1573 = vsel %vm1441, %v927, 0
        %v1576 = vsel %vm1441, %v1169, 0
        %1578 = vmatpush.xpose.msra.mxu0 0.0
        %1579 = vmatpush.xpose.msra.mxu0 0.0
        %1580 = vmatpush.xpose.msra.mxu0 0.0
        %1581 = vmatpush.xpose.msra.mxu0 0.0
        %1582 = vmatpush.xpose.msra.mxu0 0.0
        %1583 = vmatpush.xpose.msra.mxu0 0.0
        %1584 = vmatpush.xpose.msra.mxu0 0.0
        %1585 = vmatpush.xpose.msra.mxu0 0.0
        %1586 = vmatpush.xpose.msra.mxu0 0.0
        %1587 = vmatpush.xpose.msra.mxu0 0.0
        %1588 = vmatpush.xpose.msra.mxu0 0.0
        %1589 = vmatpush.xpose.msra.mxu0 0.0
        %1590 = vmatpush.xpose.msra.mxu0 0.0
        %1591 = vmatpush.xpose.msra.mxu0 0.0
        %1592 = vmatpush.xpose.msra.mxu0 0.0
        %1593 = vmatpush.xpose.msra.mxu0 %v1576
        %1594 = vmatmul.f32.gmra.mxu0 %v1573
        %v1595 = vpop.f32.mrf.mxu0
        %v1596 = vadd.f32 0.0, %v1595
        %1597 = vdwg.mxu0
        %v1599 = vsel %vm1441, %v947, 0
        %v1602 = vsel %vm1441, %v1192, 0
        %1604 = vmatpush.xpose.msra.mxu0 0.0
        %1605 = vmatpush.xpose.msra.mxu0 0.0
        %1606 = vmatpush.xpose.msra.mxu0 0.0
        %1607 = vmatpush.xpose.msra.mxu0 0.0
        %1608 = vmatpush.xpose.msra.mxu0 0.0
        %1609 = vmatpush.xpose.msra.mxu0 0.0
        %1610 = vmatpush.xpose.msra.mxu0 0.0
        %1611 = vmatpush.xpose.msra.mxu0 0.0
        %1612 = vmatpush.xpose.msra.mxu0 0.0
        %1613 = vmatpush.xpose.msra.mxu0 0.0
        %1614 = vmatpush.xpose.msra.mxu0 0.0
        %1615 = vmatpush.xpose.msra.mxu0 0.0
        %1616 = vmatpush.xpose.msra.mxu0 0.0
        %1617 = vmatpush.xpose.msra.mxu0 0.0
        %1618 = vmatpush.xpose.msra.mxu0 0.0
        %1619 = vmatpush.xpose.msra.mxu0 %v1602
        %1620 = vmatmul.f32.gmra.mxu0 %v1599
        %v1621 = vpop.f32.mrf.mxu0
        %v1622 = vadd.f32 0.0, %v1621
        %1623 = vdwg.mxu0
        %v1625 = vsel %vm1441, %v967, 0
        %v1628 = vsel %vm1441, %v1215, 0
        %1630 = vmatpush.xpose.msra.mxu0 0.0
        %1631 = vmatpush.xpose.msra.mxu0 0.0
        %1632 = vmatpush.xpose.msra.mxu0 0.0
        %1633 = vmatpush.xpose.msra.mxu0 0.0
        %1634 = vmatpush.xpose.msra.mxu0 0.0
        %1635 = vmatpush.xpose.msra.mxu0 0.0
        %1636 = vmatpush.xpose.msra.mxu0 0.0
        %1637 = vmatpush.xpose.msra.mxu0 0.0
        %1638 = vmatpush.xpose.msra.mxu0 0.0
        %1639 = vmatpush.xpose.msra.mxu0 0.0
        %1640 = vmatpush.xpose.msra.mxu0 0.0
        %1641 = vmatpush.xpose.msra.mxu0 0.0
        %1642 = vmatpush.xpose.msra.mxu0 0.0
        %1643 = vmatpush.xpose.msra.mxu0 0.0
        %1644 = vmatpush.xpose.msra.mxu0 0.0
        %1645 = vmatpush.xpose.msra.mxu0 %v1628
        %1646 = vmatmul.f32.gmra.mxu0 %v1625
        %v1647 = vpop.f32.mrf.mxu0
        %v1648 = vadd.f32 0.0, %v1647
        %1649 = vdwg.mxu0
        %v1650 = vmul.f32 %v1466, 0.35355338
        %v1651 = vmul.f32 %v1492, 0.35355338
        %v1652 = vmul.f32 %v1518, 0.35355338
        %v1653 = vmul.f32 %v1544, 0.35355338
        %v1654 = vmul.f32 %v1570, 0.35355338
        %v1655 = vmul.f32 %v1596, 0.35355338
        %v1656 = vmul.f32 %v1622, 0.35355338
        %v1657 = vmul.f32 %v1648, 0.35355338
        %v1659 = vsel %vm1441, %v729, 0
        %v1662 = vsel %vm1441, %v1650, 0
        %v1665 = vsel %vm1441, %v1651, 0
        %v1668 = vsel %vm1441, %v1652, 0
        %v1671 = vsel %vm1441, %v1653, 0
        %v1674 = vsel %vm1441, %v1654, 0
        %v1677 = vsel %vm1441, %v1655, 0
        %v1680 = vsel %vm1441, %v1656, 0
        %v1683 = vsel %vm1441, %v1657, 0
        %1685 = vmatpush.xpose.msra.mxu0 0.0
        %1686 = vmatpush.xpose.msra.mxu0 0.0
        %1687 = vmatpush.xpose.msra.mxu0 0.0
        %1688 = vmatpush.xpose.msra.mxu0 0.0
        %1689 = vmatpush.xpose.msra.mxu0 0.0
        %1690 = vmatpush.xpose.msra.mxu0 0.0
        %1691 = vmatpush.xpose.msra.mxu0 0.0
        %1692 = vmatpush.xpose.msra.mxu0 0.0
        %1693 = vmatpush.xpose.msra.mxu0 %v1683
        %1694 = vmatpush.xpose.msra.mxu0 %v1680
        %1695 = vmatpush.xpose.msra.mxu0 %v1677
        %1696 = vmatpush.xpose.msra.mxu0 %v1674
        %1697 = vmatpush.xpose.msra.mxu0 %v1671
        %1698 = vmatpush.xpose.msra.mxu0 %v1668
        %1699 = vmatpush.xpose.msra.mxu0 %v1665
        %1700 = vmatpush.xpose.msra.mxu0 %v1662
        %1701 = vmatmul.f32.gmra.mxu0 %v1659
        %v1702 = vpop.f32.mrf.mxu0
        %v1703 = vadd.f32 0.0, %v1702
        %1704 = vdwg.mxu0
        %vm1705 = vcmask 523264
        %v1706 = vsel %vm1705, %v1703, -inf
        %v1707 = vrot.slane %v1706, 4
        %v1708 = vmax.f32 %v1706, %v1707
        %v1709 = vrot.slane %v1708, 2
        %v1710 = vmax.f32 %v1708, %v1709
        %v1711 = vrot.slane %v1710, 1
        %v1712 = vmax.f32 %v1710, %v1711
        %v1713 = vsub.f32 %v1703, %v1712
        %v1714 = vmul.f32 %v1713, 0.5
        %v1716 = vrot.slane %v1714, 1
        %v1717 = vrot.slane %v1714, 2
        %v1718 = vrot.slane %v1714, 3
        %v1719 = vrot.slane %v1714, 4
        %v1720 = vrot.slane %v1714, 5
        %v1721 = vrot.slane %v1714, 6
        %v1722 = vrot.slane %v1714, 7
        %v1730 = vperm.slane %v1714, 0
        %v1731 = vperm.slane %v1716, 0
        %v1732 = vperm.slane %v1717, 0
        %v1733 = vperm.slane %v1718, 0
        %v1734 = vperm.slane %v1719, 0
        %v1735 = vperm.slane %v1720, 0
        %v1736 = vperm.slane %v1721, 0
        %v1737 = vperm.slane %v1722, 0
        %vm1746 = vcmp.ge.f32.partialorder %v1730, %v1714
        %vm1747 = vcmp.ge.f32.partialorder %v1731, %v1714
        %vm1748 = vcmp.ge.f32.partialorder %v1732, %v1714
        %vm1749 = vcmp.ge.f32.partialorder %v1733, %v1714
        %vm1750 = vcmp.ge.f32.partialorder %v1734, %v1714
        %vm1751 = vcmp.ge.f32.partialorder %v1735, %v1714
        %vm1752 = vcmp.ge.f32.partialorder %v1736, %v1714
        %vm1753 = vcmp.ge.f32.partialorder %v1737, %v1714
        %v1754 = vsel %vm1746, 1, 0
        %v1755 = vsel %vm1747, 1, 0
        %v1756 = vsel %vm1748, 1, 0
        %v1757 = vsel %vm1749, 1, 0
        %v1758 = vsel %vm1750, 1, 0
        %v1759 = vsel %vm1751, 1, 0
        %v1760 = vsel %vm1752, 1, 0
        %v1761 = vsel %vm1753, 1, 0
        %v1762 = vcvt.s32.f32 %v1754
        %v1763 = vcvt.s32.f32 %v1755
        %v1764 = vcvt.s32.f32 %v1756
        %v1765 = vcvt.s32.f32 %v1757
        %v1766 = vcvt.s32.f32 %v1758
        %v1767 = vcvt.s32.f32 %v1759
        %v1768 = vcvt.s32.f32 %v1760
        %v1769 = vcvt.s32.f32 %v1761
        %v1770 = vadd.f32 %v1762, %v1763
        %v1771 = vadd.f32 %v1770, %v1764
        %v1772 = vadd.f32 %v1771, %v1765
        %v1773 = vadd.f32 %v1772, %v1766
        %v1774 = vadd.f32 %v1773, %v1767
        %v1775 = vadd.f32 %v1774, %v1768
        %v1776 = vadd.f32 %v1775, %v1769
        %v1777 = vmul.f32 %v1762, %v1730
        %v1778 = vmul.f32 %v1763, %v1731
        %v1779 = vmul.f32 %v1764, %v1732
        %v1780 = vmul.f32 %v1765, %v1733
        %v1781 = vmul.f32 %v1766, %v1734
        %v1782 = vmul.f32 %v1767, %v1735
        %v1783 = vmul.f32 %v1768, %v1736
        %v1784 = vmul.f32 %v1769, %v1737
        %v1785 = vadd.f32 %v1777, %v1778
        %v1786 = vadd.f32 %v1785, %v1779
        %v1787 = vadd.f32 %v1786, %v1780
        %v1788 = vadd.f32 %v1787, %v1781
        %v1789 = vadd.f32 %v1788, %v1782
        %v1790 = vadd.f32 %v1789, %v1783
        %v1791 = vadd.f32 %v1790, %v1784
        %v1792 = vmul.f32 %v1714, %v1714
        %v1793 = vmul.f32 %v1716, %v1716
        %v1794 = vmul.f32 %v1717, %v1717
        %v1795 = vmul.f32 %v1718, %v1718
        %v1796 = vmul.f32 %v1719, %v1719
        %v1797 = vmul.f32 %v1720, %v1720
        %v1798 = vmul.f32 %v1721, %v1721
        %v1799 = vmul.f32 %v1722, %v1722
        %v1808 = vperm.slane %v1792, 0
        %v1809 = vperm.slane %v1793, 0
        %v1810 = vperm.slane %v1794, 0
        %v1811 = vperm.slane %v1795, 0
        %v1812 = vperm.slane %v1796, 0
        %v1813 = vperm.slane %v1797, 0
        %v1814 = vperm.slane %v1798, 0
        %v1815 = vperm.slane %v1799, 0
        %v1824 = vmul.f32 %v1762, %v1808
        %v1825 = vmul.f32 %v1763, %v1809
        %v1826 = vmul.f32 %v1764, %v1810
        %v1827 = vmul.f32 %v1765, %v1811
        %v1828 = vmul.f32 %v1766, %v1812
        %v1829 = vmul.f32 %v1767, %v1813
        %v1830 = vmul.f32 %v1768, %v1814
        %v1831 = vmul.f32 %v1769, %v1815
        %v1832 = vadd.f32 %v1824, %v1825
        %v1833 = vadd.f32 %v1832, %v1826
        %v1834 = vadd.f32 %v1833, %v1827
        %v1835 = vadd.f32 %v1834, %v1828
        %v1836 = vadd.f32 %v1835, %v1829
        %v1837 = vadd.f32 %v1836, %v1830
        %v1838 = vadd.f32 %v1837, %v1831
        %v1839 = vrcp.pop %v1776
        %v1840 = vmul.f32 %v1776, %v1839
        %v1841 = vsub.f32 2.0, %v1840
        %v1842 = vmul.f32 %v1839, %v1841
        %v1843 = vmul.f32 %v1791, %v1842
        %v1844 = vmul.f32 %v1838, %v1842
        %v1845 = vmul.f32 %v1843, %v1843
        %v1846 = vsub.f32 %v1844, %v1845
        %v1847 = vmul.f32 %v1776, %v1846
        %v1848 = vsub.f32 1.0, %v1847
        %v1849 = vmul.f32 %v1848, %v1842
        %v1850 = vmax.f32 %v1849, 0.0
        %v1851 = vrsqrt.pop %v1850
        %v1852 = vmul.f32 %v1851, %v1850
        %v1853 = vmul.f32 %v1852, %v1851
        %v1854 = vmul.f32 0.5, %v1853
        %v1855 = vsub.f32 1.5, %v1854
        %v1856 = vmul.f32 %v1851, %v1855
        %v1857 = vmul.f32 %v1850, %v1856
        %vm1858 = vcmp.eq.f32.partialorder %v1850, inf
        %v1859 = vsel %vm1858, %v1850, %v1857
        %vm1860 = vcmp.eq.f32.partialorder %v1850, 0.0
        %v1861 = vand.u32 %v1850, 2147483648
        %v1862 = vsel %vm1860, %v1861, %v1859
        %v1863 = vsub.f32 %v1843, %v1862
        %vm1864 = vcmp.le.f32.partialorder %v1863, %v1714
        %v1865 = vsel %vm1864, %v1776, 0.0
        %v1866 = vsel %vm1705, %v1865, -inf
        %v1867 = vrot.slane %v1866, 4
        %v1868 = vmax.f32 %v1866, %v1867
        %v1869 = vrot.slane %v1868, 2
        %v1870 = vmax.f32 %v1868, %v1869
        %v1871 = vrot.slane %v1870, 1
        %v1872 = vmax.f32 %v1870, %v1871
        %vm1873 = vcmp.eq.f32.partialorder %v1776, %v1872
        %vm1874 = vmand %vm1864, %vm1873
        %v1875 = vsel %vm1874, 1, 0
        %v1876 = vcvt.s32.f32 %v1875
        %v1877 = vsel %vm1705, %v1876, 0.0
        %v1878 = vrot.slane %v1877, 4
        %v1879 = vadd.f32 %v1877, %v1878
        %v1880 = vrot.slane %v1879, 2
        %v1881 = vadd.f32 %v1879, %v1880
        %v1882 = vrot.slane %v1881, 1
        %v1883 = vadd.f32 %v1881, %v1882
        %v1884 = vsel %vm1874, %v1863, 0.0
        %v1885 = vsel %vm1705, %v1884, 0.0
        %v1886 = vrot.slane %v1885, 4
        %v1887 = vadd.f32 %v1885, %v1886
        %v1888 = vrot.slane %v1887, 2
        %v1889 = vadd.f32 %v1887, %v1888
        %v1890 = vrot.slane %v1889, 1
        %v1891 = vadd.f32 %v1889, %v1890
        %v1892 = vrcp.pop %v1883
        %v1893 = vmul.f32 %v1883, %v1892
        %v1894 = vsub.f32 2.0, %v1893
        %v1895 = vmul.f32 %v1892, %v1894
        %v1896 = vmul.f32 %v1891, %v1895
        %v1897 = vsub.f32 %v1714, %v1896
        %v1898 = vmax.f32 %v1897, 0.0
        %v1899 = vmul.f32 %v1898, %v1898
        %1900 = vxpose.xlu0.b32.start [1/16] %v1899, 128
        %1901 = vxpose.xlu0.b32.cont [2/16] 0.0, 128
        %1902 = vxpose.xlu0.b32.cont [3/16] 0.0, 128
        %1903 = vxpose.xlu0.b32.cont [4/16] 0.0, 128
        %1904 = vxpose.xlu0.b32.cont [5/16] 0.0, 128
        %1905 = vxpose.xlu0.b32.cont [6/16] 0.0, 128
        %1906 = vxpose.xlu0.b32.cont [7/16] 0.0, 128
        %1907 = vxpose.xlu0.b32.cont [8/16] 0.0, 128
        %1908 = vxpose.xlu0.b32.cont [9/16] 0.0, 128
        %1909 = vxpose.xlu0.b32.cont [10/16] 0.0, 128
        %1910 = vxpose.xlu0.b32.cont [11/16] 0.0, 128
        %1911 = vxpose.xlu0.b32.cont [12/16] 0.0, 128
        %1912 = vxpose.xlu0.b32.cont [13/16] 0.0, 128
        %1913 = vxpose.xlu0.b32.cont [14/16] 0.0, 128
        %1914 = vxpose.xlu0.b32.cont [15/16] 0.0, 128
        %1915 = vxpose.xlu0.b32.end [16/16] 0.0, 128
        %v1916 = vpop.trf.xlu0
        %v1917 = vpop.trf.xlu0
        %v1918 = vpop.trf.xlu0
        %v1919 = vpop.trf.xlu0
        %v1920 = vpop.trf.xlu0
        %v1921 = vpop.trf.xlu0
        %v1922 = vpop.trf.xlu0
        %v1923 = vpop.trf.xlu0
        %v1924 = vpop.trf.xlu0
        %v1925 = vpop.trf.xlu0
        %v1926 = vpop.trf.xlu0
        %v1927 = vpop.trf.xlu0
        %v1928 = vpop.trf.xlu0
        %v1929 = vpop.trf.xlu0
        %v1930 = vpop.trf.xlu0
        %v1931 = vpop.trf.xlu0
        %v1933 = vsel %vm1441, %v1916, 0
        %v1936 = vsel %vm1441, %v1917, 0
        %v1939 = vsel %vm1441, %v1918, 0
        %v1942 = vsel %vm1441, %v1919, 0
        %v1945 = vsel %vm1441, %v1920, 0
        %v1948 = vsel %vm1441, %v1921, 0
        %v1951 = vsel %vm1441, %v1922, 0
        %v1954 = vsel %vm1441, %v1923, 0
        %1956 = vmatpush.msra.mxu0 0.0
        %1957 = vmatpush.msra.mxu0 0.0
        %1958 = vmatpush.msra.mxu0 0.0
        %1959 = vmatpush.msra.mxu0 0.0
        %1960 = vmatpush.msra.mxu0 0.0
        %1961 = vmatpush.msra.mxu0 0.0
        %1962 = vmatpush.msra.mxu0 0.0
        %1963 = vmatpush.msra.mxu0 0.0
        %1964 = vmatpush.msra.mxu0 0.0
        %1965 = vmatpush.msra.mxu0 0.0
        %1966 = vmatpush.msra.mxu0 0.0
        %1967 = vmatpush.msra.mxu0 0.0
        %1968 = vmatpush.msra.mxu0 0.0
        %1969 = vmatpush.msra.mxu0 0.0
        %1970 = vmatpush.msra.mxu0 0.0
        %1971 = vmatpush.msra.mxu0 %v729
        %1972 = vmatmul.f32.gmra.mxu0 %v1933
        %v1973 = vpop.f32.mrf.mxu0
        %v1974 = vadd.f32 0.0, %v1973
        %1975 = vmatmul.f32.gmra.mxu0 %v1936
        %v1976 = vpop.f32.mrf.mxu0
        %v1977 = vadd.f32 0.0, %v1976
        %1978 = vmatmul.f32.gmra.mxu0 %v1939
        %v1979 = vpop.f32.mrf.mxu0
        %v1980 = vadd.f32 0.0, %v1979
        %1981 = vmatmul.f32.gmra.mxu0 %v1942
        %v1982 = vpop.f32.mrf.mxu0
        %v1983 = vadd.f32 0.0, %v1982
        %1984 = vmatmul.f32.gmra.mxu0 %v1945
        %v1985 = vpop.f32.mrf.mxu0
        %v1986 = vadd.f32 0.0, %v1985
        %1987 = vmatmul.f32.gmra.mxu0 %v1948
        %v1988 = vpop.f32.mrf.mxu0
        %v1989 = vadd.f32 0.0, %v1988
        %1990 = vmatmul.f32.gmra.mxu0 %v1951
        %v1991 = vpop.f32.mrf.mxu0
        %v1992 = vadd.f32 0.0, %v1991
        %1993 = vmatmul.f32.gmra.mxu0 %v1954
        %v1994 = vpop.f32.mrf.mxu0
        %v1995 = vadd.f32 0.0, %v1994
        %1996 = vdwg.mxu0
        %v1998 = vsel %vm1441, %v1974, 0
        %2000 = vmatpush.msra.mxu0 0.0
        %2001 = vmatpush.msra.mxu0 0.0
        %2002 = vmatpush.msra.mxu0 0.0
        %2003 = vmatpush.msra.mxu0 0.0
        %2004 = vmatpush.msra.mxu0 0.0
        %2005 = vmatpush.msra.mxu0 0.0
        %2006 = vmatpush.msra.mxu0 0.0
        %2007 = vmatpush.msra.mxu0 0.0
        %2008 = vmatpush.msra.mxu0 0.0
        %2009 = vmatpush.msra.mxu0 0.0
        %2010 = vmatpush.msra.mxu0 0.0
        %2011 = vmatpush.msra.mxu0 0.0
        %2012 = vmatpush.msra.mxu0 0.0
        %2013 = vmatpush.msra.mxu0 0.0
        %2014 = vmatpush.msra.mxu0 0.0
        %2015 = vmatpush.msra.mxu0 %v1299
        %2016 = vmatmul.f32.gmra.mxu0 %v1998
        %v2017 = vpop.f32.mrf.mxu0
        %v2018 = vadd.f32 0.0, %v2017
        %2019 = vdwg.mxu0
        %v2021 = vsel %vm1441, %v1977, 0
        %2023 = vmatpush.msra.mxu0 0.0
        %2024 = vmatpush.msra.mxu0 0.0
        %2025 = vmatpush.msra.mxu0 0.0
        %2026 = vmatpush.msra.mxu0 0.0
        %2027 = vmatpush.msra.mxu0 0.0
        %2028 = vmatpush.msra.mxu0 0.0
        %2029 = vmatpush.msra.mxu0 0.0
        %2030 = vmatpush.msra.mxu0 0.0
        %2031 = vmatpush.msra.mxu0 0.0
        %2032 = vmatpush.msra.mxu0 0.0
        %2033 = vmatpush.msra.mxu0 0.0
        %2034 = vmatpush.msra.mxu0 0.0
        %2035 = vmatpush.msra.mxu0 0.0
        %2036 = vmatpush.msra.mxu0 0.0
        %2037 = vmatpush.msra.mxu0 0.0
        %2038 = vmatpush.msra.mxu0 %v1319
        %2039 = vmatmul.f32.gmra.mxu0 %v2021
        %v2040 = vpop.f32.mrf.mxu0
        %v2041 = vadd.f32 0.0, %v2040
        %2042 = vdwg.mxu0
        %v2044 = vsel %vm1441, %v1980, 0
        %2046 = vmatpush.msra.mxu0 0.0
        %2047 = vmatpush.msra.mxu0 0.0
        %2048 = vmatpush.msra.mxu0 0.0
        %2049 = vmatpush.msra.mxu0 0.0
        %2050 = vmatpush.msra.mxu0 0.0
        %2051 = vmatpush.msra.mxu0 0.0
        %2052 = vmatpush.msra.mxu0 0.0
        %2053 = vmatpush.msra.mxu0 0.0
        %2054 = vmatpush.msra.mxu0 0.0
        %2055 = vmatpush.msra.mxu0 0.0
        %2056 = vmatpush.msra.mxu0 0.0
        %2057 = vmatpush.msra.mxu0 0.0
        %2058 = vmatpush.msra.mxu0 0.0
        %2059 = vmatpush.msra.mxu0 0.0
        %2060 = vmatpush.msra.mxu0 0.0
        %2061 = vmatpush.msra.mxu0 %v1339
        %2062 = vmatmul.f32.gmra.mxu0 %v2044
        %v2063 = vpop.f32.mrf.mxu0
        %v2064 = vadd.f32 0.0, %v2063
        %2065 = vdwg.mxu0
        %v2067 = vsel %vm1441, %v1983, 0
        %2069 = vmatpush.msra.mxu0 0.0
        %2070 = vmatpush.msra.mxu0 0.0
        %2071 = vmatpush.msra.mxu0 0.0
        %2072 = vmatpush.msra.mxu0 0.0
        %2073 = vmatpush.msra.mxu0 0.0
        %2074 = vmatpush.msra.mxu0 0.0
        %2075 = vmatpush.msra.mxu0 0.0
        %2076 = vmatpush.msra.mxu0 0.0
        %2077 = vmatpush.msra.mxu0 0.0
        %2078 = vmatpush.msra.mxu0 0.0
        %2079 = vmatpush.msra.mxu0 0.0
        %2080 = vmatpush.msra.mxu0 0.0
        %2081 = vmatpush.msra.mxu0 0.0
        %2082 = vmatpush.msra.mxu0 0.0
        %2083 = vmatpush.msra.mxu0 0.0
        %2084 = vmatpush.msra.mxu0 %v1359
        %2085 = vmatmul.f32.gmra.mxu0 %v2067
        %v2086 = vpop.f32.mrf.mxu0
        %v2087 = vadd.f32 0.0, %v2086
        %2088 = vdwg.mxu0
        %v2090 = vsel %vm1441, %v1986, 0
        %2092 = vmatpush.msra.mxu0 0.0
        %2093 = vmatpush.msra.mxu0 0.0
        %2094 = vmatpush.msra.mxu0 0.0
        %2095 = vmatpush.msra.mxu0 0.0
        %2096 = vmatpush.msra.mxu0 0.0
        %2097 = vmatpush.msra.mxu0 0.0
        %2098 = vmatpush.msra.mxu0 0.0
        %2099 = vmatpush.msra.mxu0 0.0
        %2100 = vmatpush.msra.mxu0 0.0
        %2101 = vmatpush.msra.mxu0 0.0
        %2102 = vmatpush.msra.mxu0 0.0
        %2103 = vmatpush.msra.mxu0 0.0
        %2104 = vmatpush.msra.mxu0 0.0
        %2105 = vmatpush.msra.mxu0 0.0
        %2106 = vmatpush.msra.mxu0 0.0
        %2107 = vmatpush.msra.mxu0 %v1379
        %2108 = vmatmul.f32.gmra.mxu0 %v2090
        %v2109 = vpop.f32.mrf.mxu0
        %v2110 = vadd.f32 0.0, %v2109
        %2111 = vdwg.mxu0
        %v2113 = vsel %vm1441, %v1989, 0
        %2115 = vmatpush.msra.mxu0 0.0
        %2116 = vmatpush.msra.mxu0 0.0
        %2117 = vmatpush.msra.mxu0 0.0
        %2118 = vmatpush.msra.mxu0 0.0
        %2119 = vmatpush.msra.mxu0 0.0
        %2120 = vmatpush.msra.mxu0 0.0
        %2121 = vmatpush.msra.mxu0 0.0
        %2122 = vmatpush.msra.mxu0 0.0
        %2123 = vmatpush.msra.mxu0 0.0
        %2124 = vmatpush.msra.mxu0 0.0
        %2125 = vmatpush.msra.mxu0 0.0
        %2126 = vmatpush.msra.mxu0 0.0
        %2127 = vmatpush.msra.mxu0 0.0
        %2128 = vmatpush.msra.mxu0 0.0
        %2129 = vmatpush.msra.mxu0 0.0
        %2130 = vmatpush.msra.mxu0 %v1399
        %2131 = vmatmul.f32.gmra.mxu0 %v2113
        %v2132 = vpop.f32.mrf.mxu0
        %v2133 = vadd.f32 0.0, %v2132
        %2134 = vdwg.mxu0
        %v2136 = vsel %vm1441, %v1992, 0
        %2138 = vmatpush.msra.mxu0 0.0
        %2139 = vmatpush.msra.mxu0 0.0
        %2140 = vmatpush.msra.mxu0 0.0
        %2141 = vmatpush.msra.mxu0 0.0
        %2142 = vmatpush.msra.mxu0 0.0
        %2143 = vmatpush.msra.mxu0 0.0
        %2144 = vmatpush.msra.mxu0 0.0
        %2145 = vmatpush.msra.mxu0 0.0
        %2146 = vmatpush.msra.mxu0 0.0
        %2147 = vmatpush.msra.mxu0 0.0
        %2148 = vmatpush.msra.mxu0 0.0
        %2149 = vmatpush.msra.mxu0 0.0
        %2150 = vmatpush.msra.mxu0 0.0
        %2151 = vmatpush.msra.mxu0 0.0
        %2152 = vmatpush.msra.mxu0 0.0
        %2153 = vmatpush.msra.mxu0 %v1419
        %2154 = vmatmul.f32.gmra.mxu0 %v2136
        %v2155 = vpop.f32.mrf.mxu0
        %v2156 = vadd.f32 0.0, %v2155
        %2157 = vdwg.mxu0
        %v2159 = vsel %vm1441, %v1995, 0
        %2161 = vmatpush.msra.mxu0 0.0
        %2162 = vmatpush.msra.mxu0 0.0
        %2163 = vmatpush.msra.mxu0 0.0
        %2164 = vmatpush.msra.mxu0 0.0
        %2165 = vmatpush.msra.mxu0 0.0
        %2166 = vmatpush.msra.mxu0 0.0
        %2167 = vmatpush.msra.mxu0 0.0
        %2168 = vmatpush.msra.mxu0 0.0
        %2169 = vmatpush.msra.mxu0 0.0
        %2170 = vmatpush.msra.mxu0 0.0
        %2171 = vmatpush.msra.mxu0 0.0
        %2172 = vmatpush.msra.mxu0 0.0
        %2173 = vmatpush.msra.mxu0 0.0
        %2174 = vmatpush.msra.mxu0 0.0
        %2175 = vmatpush.msra.mxu0 0.0
        %2176 = vmatpush.msra.mxu0 %v1439
        %2177 = vmatmul.f32.gmra.mxu0 %v2159
        %v2178 = vpop.f32.mrf.mxu0
        %v2179 = vadd.f32 0.0, %v2178
        %2180 = vdwg.mxu0
        %v2181 = vld [vmem:[%s694] sm:$0xff]
        %v2182 = vld [vmem:[%s694 + $0x8] sm:$0xff]
        %v2183 = vld [vmem:[%s694 + $0x10] sm:$0xff]
        %v2184 = vld [vmem:[%s694 + $0x18] sm:$0xff]
        %v2185 = vld [vmem:[%s694 + $0x20] sm:$0xff]
        %v2186 = vld [vmem:[%s694 + $0x28] sm:$0xff]
        %v2187 = vld [vmem:[%s694 + $0x30] sm:$0xff]
        %v2188 = vld [vmem:[%s694 + $0x38] sm:$0xff]
        %v2190 = vsel %vm1441, %v2018, 0
        %2192 = vmatpush.msra.mxu0 0.0
        %2193 = vmatpush.msra.mxu0 0.0
        %2194 = vmatpush.msra.mxu0 0.0
        %2195 = vmatpush.msra.mxu0 0.0
        %2196 = vmatpush.msra.mxu0 0.0
        %2197 = vmatpush.msra.mxu0 0.0
        %2198 = vmatpush.msra.mxu0 0.0
        %2199 = vmatpush.msra.mxu0 0.0
        %2200 = vmatpush.msra.mxu0 0.0
        %2201 = vmatpush.msra.mxu0 0.0
        %2202 = vmatpush.msra.mxu0 0.0
        %2203 = vmatpush.msra.mxu0 0.0
        %2204 = vmatpush.msra.mxu0 0.0
        %2205 = vmatpush.msra.mxu0 0.0
        %2206 = vmatpush.msra.mxu0 0.0
        %2207 = vmatpush.msra.mxu0 %v2181
        %2208 = vmatmul.f32.gmra.mxu0 %v2190
        %v2209 = vpop.f32.mrf.mxu0
        %v2210 = vadd.f32 0.0, %v2209
        %2211 = vdwg.mxu0
        %v2213 = vsel %vm1441, %v2041, 0
        %2215 = vmatpush.msra.mxu0 0.0
        %2216 = vmatpush.msra.mxu0 0.0
        %2217 = vmatpush.msra.mxu0 0.0
        %2218 = vmatpush.msra.mxu0 0.0
        %2219 = vmatpush.msra.mxu0 0.0
        %2220 = vmatpush.msra.mxu0 0.0
        %2221 = vmatpush.msra.mxu0 0.0
        %2222 = vmatpush.msra.mxu0 0.0
        %2223 = vmatpush.msra.mxu0 0.0
        %2224 = vmatpush.msra.mxu0 0.0
        %2225 = vmatpush.msra.mxu0 0.0
        %2226 = vmatpush.msra.mxu0 0.0
        %2227 = vmatpush.msra.mxu0 0.0
        %2228 = vmatpush.msra.mxu0 0.0
        %2229 = vmatpush.msra.mxu0 0.0
        %2230 = vmatpush.msra.mxu0 %v2182
        %2231 = vmatmul.f32.gmra.mxu0 %v2213
        %v2232 = vpop.f32.mrf.mxu0
        %v2233 = vadd.f32 0.0, %v2232
        %2234 = vdwg.mxu0
        %v2236 = vsel %vm1441, %v2064, 0
        %2238 = vmatpush.msra.mxu0 0.0
        %2239 = vmatpush.msra.mxu0 0.0
        %2240 = vmatpush.msra.mxu0 0.0
        %2241 = vmatpush.msra.mxu0 0.0
        %2242 = vmatpush.msra.mxu0 0.0
        %2243 = vmatpush.msra.mxu0 0.0
        %2244 = vmatpush.msra.mxu0 0.0
        %2245 = vmatpush.msra.mxu0 0.0
        %2246 = vmatpush.msra.mxu0 0.0
        %2247 = vmatpush.msra.mxu0 0.0
        %2248 = vmatpush.msra.mxu0 0.0
        %2249 = vmatpush.msra.mxu0 0.0
        %2250 = vmatpush.msra.mxu0 0.0
        %2251 = vmatpush.msra.mxu0 0.0
        %2252 = vmatpush.msra.mxu0 0.0
        %2253 = vmatpush.msra.mxu0 %v2183
        %2254 = vmatmul.f32.gmra.mxu0 %v2236
        %v2255 = vpop.f32.mrf.mxu0
        %v2256 = vadd.f32 0.0, %v2255
        %2257 = vdwg.mxu0
        %v2259 = vsel %vm1441, %v2087, 0
        %2261 = vmatpush.msra.mxu0 0.0
        %2262 = vmatpush.msra.mxu0 0.0
        %2263 = vmatpush.msra.mxu0 0.0
        %2264 = vmatpush.msra.mxu0 0.0
        %2265 = vmatpush.msra.mxu0 0.0
        %2266 = vmatpush.msra.mxu0 0.0
        %2267 = vmatpush.msra.mxu0 0.0
        %2268 = vmatpush.msra.mxu0 0.0
        %2269 = vmatpush.msra.mxu0 0.0
        %2270 = vmatpush.msra.mxu0 0.0
        %2271 = vmatpush.msra.mxu0 0.0
        %2272 = vmatpush.msra.mxu0 0.0
        %2273 = vmatpush.msra.mxu0 0.0
        %2274 = vmatpush.msra.mxu0 0.0
        %2275 = vmatpush.msra.mxu0 0.0
        %2276 = vmatpush.msra.mxu0 %v2184
        %2277 = vmatmul.f32.gmra.mxu0 %v2259
        %v2278 = vpop.f32.mrf.mxu0
        %v2279 = vadd.f32 0.0, %v2278
        %2280 = vdwg.mxu0
        %v2282 = vsel %vm1441, %v2110, 0
        %2284 = vmatpush.msra.mxu0 0.0
        %2285 = vmatpush.msra.mxu0 0.0
        %2286 = vmatpush.msra.mxu0 0.0
        %2287 = vmatpush.msra.mxu0 0.0
        %2288 = vmatpush.msra.mxu0 0.0
        %2289 = vmatpush.msra.mxu0 0.0
        %2290 = vmatpush.msra.mxu0 0.0
        %2291 = vmatpush.msra.mxu0 0.0
        %2292 = vmatpush.msra.mxu0 0.0
        %2293 = vmatpush.msra.mxu0 0.0
        %2294 = vmatpush.msra.mxu0 0.0
        %2295 = vmatpush.msra.mxu0 0.0
        %2296 = vmatpush.msra.mxu0 0.0
        %2297 = vmatpush.msra.mxu0 0.0
        %2298 = vmatpush.msra.mxu0 0.0
        %2299 = vmatpush.msra.mxu0 %v2185
        %2300 = vmatmul.f32.gmra.mxu0 %v2282
        %v2301 = vpop.f32.mrf.mxu0
        %v2302 = vadd.f32 0.0, %v2301
        %2303 = vdwg.mxu0
        %v2305 = vsel %vm1441, %v2133, 0
        %2307 = vmatpush.msra.mxu0 0.0
        %2308 = vmatpush.msra.mxu0 0.0
        %2309 = vmatpush.msra.mxu0 0.0
        %2310 = vmatpush.msra.mxu0 0.0
        %2311 = vmatpush.msra.mxu0 0.0
        %2312 = vmatpush.msra.mxu0 0.0
        %2313 = vmatpush.msra.mxu0 0.0
        %2314 = vmatpush.msra.mxu0 0.0
        %2315 = vmatpush.msra.mxu0 0.0
        %2316 = vmatpush.msra.mxu0 0.0
        %2317 = vmatpush.msra.mxu0 0.0
        %2318 = vmatpush.msra.mxu0 0.0
        %2319 = vmatpush.msra.mxu0 0.0
        %2320 = vmatpush.msra.mxu0 0.0
        %2321 = vmatpush.msra.mxu0 0.0
        %2322 = vmatpush.msra.mxu0 %v2186
        %2323 = vmatmul.f32.gmra.mxu0 %v2305
        %v2324 = vpop.f32.mrf.mxu0
        %v2325 = vadd.f32 0.0, %v2324
        %2326 = vdwg.mxu0
        %v2328 = vsel %vm1441, %v2156, 0
        %2330 = vmatpush.msra.mxu0 0.0
        %2331 = vmatpush.msra.mxu0 0.0
        %2332 = vmatpush.msra.mxu0 0.0
        %2333 = vmatpush.msra.mxu0 0.0
        %2334 = vmatpush.msra.mxu0 0.0
        %2335 = vmatpush.msra.mxu0 0.0
        %2336 = vmatpush.msra.mxu0 0.0
        %2337 = vmatpush.msra.mxu0 0.0
        %2338 = vmatpush.msra.mxu0 0.0
        %2339 = vmatpush.msra.mxu0 0.0
        %2340 = vmatpush.msra.mxu0 0.0
        %2341 = vmatpush.msra.mxu0 0.0
        %2342 = vmatpush.msra.mxu0 0.0
        %2343 = vmatpush.msra.mxu0 0.0
        %2344 = vmatpush.msra.mxu0 0.0
        %2345 = vmatpush.msra.mxu0 %v2187
        %2346 = vmatmul.f32.gmra.mxu0 %v2328
        %v2347 = vpop.f32.mrf.mxu0
        %v2348 = vadd.f32 0.0, %v2347
        %2349 = vdwg.mxu0
        %v2351 = vsel %vm1441, %v2179, 0
        %2353 = vmatpush.msra.mxu0 0.0
        %2354 = vmatpush.msra.mxu0 0.0
        %2355 = vmatpush.msra.mxu0 0.0
        %2356 = vmatpush.msra.mxu0 0.0
        %2357 = vmatpush.msra.mxu0 0.0
        %2358 = vmatpush.msra.mxu0 0.0
        %2359 = vmatpush.msra.mxu0 0.0
        %2360 = vmatpush.msra.mxu0 0.0
        %2361 = vmatpush.msra.mxu0 0.0
        %2362 = vmatpush.msra.mxu0 0.0
        %2363 = vmatpush.msra.mxu0 0.0
        %2364 = vmatpush.msra.mxu0 0.0
        %2365 = vmatpush.msra.mxu0 0.0
        %2366 = vmatpush.msra.mxu0 0.0
        %2367 = vmatpush.msra.mxu0 0.0
        %2368 = vmatpush.msra.mxu0 %v2188
        %2369 = vmatmul.f32.gmra.mxu0 %v2351
        %v2370 = vpop.f32.mrf.mxu0
        %v2371 = vadd.f32 0.0, %v2370
        %2372 = vdwg.mxu0
        %v2373 = vadd.f32 %v2210, %v2233
        %v2374 = vadd.f32 %v2302, %v2325
        %v2375 = vadd.f32 %v2373, %v2256
        %v2376 = vadd.f32 %v2374, %v2348
        %v2377 = vadd.f32 %v2375, %v2279
        %v2378 = vadd.f32 %v2376, %v2371
        %v2379 = vld [vmem:[%s697] sm:$0x1]
        %v2381 = vperm.slane %v2379, 0
        %v2383 = vadd.f32 %v2377, %v2381
        %v2384 = vadd.f32 %v2378, %v2381
        %v2385 = vld [vmem:[%s701] sm:$0x3f]
        %v2386 = vsel %vm802, %v2383, 0.0
        %2387 = vadd.xlane.f32.xlu0 %v2386
        %v2388 = vpop.xlane.xlu0 %2387
        %v2389 = vsel %vm802, %v2384, 0.0
        %2390 = vadd.xlane.f32.xlu0 %v2389
        %v2391 = vpop.xlane.xlu0 %2390
        %v2392 = vrcp.pop 32.0
        %v2393 = vmul.f32 32.0, %v2392
        %v2394 = vsub.f32 1.0, %v2393
        %v2395 = vmul.f32 %v2392, %v2394
        %v2396 = vadd.f32 %v2392, %v2395
        %vm2397 = vweird.f32 %v2392
        %v2398 = vsel %vm2397, %v2392, %v2396
        %v2399 = vmul.f32 %v2388, %v2398
        %v2400 = vmul.f32 %v2391, %v2398
        %v2401 = vsub.f32 %v2383, %v2399
        %v2402 = vsub.f32 %v2384, %v2400
        %v2403 = vmul.f32 %v2401, %v2401
        %v2404 = vmul.f32 %v2402, %v2402
        %v2405 = vsel %vm802, %v2403, 0.0
        %2406 = vadd.xlane.f32.xlu0 %v2405
        %v2407 = vpop.xlane.xlu0 %2406
        %v2408 = vsel %vm802, %v2404, 0.0
        %2409 = vadd.xlane.f32.xlu0 %v2408
        %v2410 = vpop.xlane.xlu0 %2409
        %v2411 = vmul.f32 %v2407, %v2398
        %v2412 = vmul.f32 %v2410, %v2398
        %v2413 = vadd.f32 %v2411, 1e-05
        %v2414 = vadd.f32 %v2412, 1e-05
        %v2415 = vrsqrt.pop %v2413
        %v2416 = vmul.f32 %v2415, %v2413
        %v2417 = vmul.f32 %v2416, %v2415
        %v2418 = vmul.f32 0.5, %v2417
        %v2419 = vsub.f32 1.5, %v2418
        %v2420 = vmul.f32 %v2415, %v2419
        %vm2421 = vweird.f32 %v2413
        %vm2422 = vweird.f32 %v2415
        %vm2423 = vmor %vm2421, %vm2422
        %v2424 = vsel %vm2423, %v2415, %v2420
        %v2425 = vrsqrt.pop %v2414
        %v2426 = vmul.f32 %v2425, %v2414
        %v2427 = vmul.f32 %v2426, %v2425
        %v2428 = vmul.f32 0.5, %v2427
        %v2429 = vsub.f32 1.5, %v2428
        %v2430 = vmul.f32 %v2425, %v2429
        %vm2431 = vweird.f32 %v2414
        %vm2432 = vweird.f32 %v2425
        %vm2433 = vmor %vm2431, %vm2432
        %v2434 = vsel %vm2433, %v2425, %v2430
        %v2435 = vmul.f32 %v2401, %v2424
        %v2436 = vmul.f32 %v2402, %v2434
        %v2437 = vperm.slane %v2385, 0
        %v2438 = vmul.f32 %v2435, %v2437
        %v2439 = vmul.f32 %v2436, %v2437
        %v2440 = vperm.slane %v2385, 1
        %v2441 = vadd.f32 %v2438, %v2440
        %v2442 = vadd.f32 %v2439, %v2440
        %v2443 = vadd.f32 %v727, %v2441
        %v2444 = vadd.f32 %v728, %v2442
        %v2445 = vsel %vm802, %v2443, 0.0
        %2446 = vadd.xlane.f32.xlu0 %v2445
        %v2447 = vpop.xlane.xlu0 %2446
        %v2448 = vsel %vm802, %v2444, 0.0
        %2449 = vadd.xlane.f32.xlu0 %v2448
        %v2450 = vpop.xlane.xlu0 %2449
        %v2451 = vmul.f32 %v2447, %v2398
        %v2452 = vmul.f32 %v2450, %v2398
        %v2453 = vsub.f32 %v2443, %v2451
        %v2454 = vsub.f32 %v2444, %v2452
        %v2455 = vmul.f32 %v2453, %v2453
        %v2456 = vmul.f32 %v2454, %v2454
        %v2457 = vsel %vm802, %v2455, 0.0
        %2458 = vadd.xlane.f32.xlu0 %v2457
        %v2459 = vpop.xlane.xlu0 %2458
        %v2460 = vsel %vm802, %v2456, 0.0
        %2461 = vadd.xlane.f32.xlu0 %v2460
        %v2462 = vpop.xlane.xlu0 %2461
        %v2463 = vmul.f32 %v2459, %v2398
        %v2464 = vmul.f32 %v2462, %v2398
        %v2465 = vadd.f32 %v2463, 1e-05
        %v2466 = vadd.f32 %v2464, 1e-05
        %v2467 = vrsqrt.pop %v2465
        %v2468 = vmul.f32 %v2467, %v2465
        %v2469 = vmul.f32 %v2468, %v2467
        %v2470 = vmul.f32 0.5, %v2469
        %v2471 = vsub.f32 1.5, %v2470
        %v2472 = vmul.f32 %v2467, %v2471
        %vm2473 = vweird.f32 %v2465
        %vm2474 = vweird.f32 %v2467
        %vm2475 = vmor %vm2473, %vm2474
        %v2476 = vsel %vm2475, %v2467, %v2472
        %v2477 = vrsqrt.pop %v2466
        %v2478 = vmul.f32 %v2477, %v2466
        %v2479 = vmul.f32 %v2478, %v2477
        %v2480 = vmul.f32 0.5, %v2479
        %v2481 = vsub.f32 1.5, %v2480
        %v2482 = vmul.f32 %v2477, %v2481
        %vm2483 = vweird.f32 %v2466
        %vm2484 = vweird.f32 %v2477
        %vm2485 = vmor %vm2483, %vm2484
        %v2486 = vsel %vm2485, %v2477, %v2482
        %v2487 = vmul.f32 %v2453, %v2476
        %v2488 = vmul.f32 %v2454, %v2486
        %v2489 = vperm.slane %v2385, 2
        %v2490 = vmul.f32 %v2487, %v2489
        %v2491 = vmul.f32 %v2488, %v2489
        %v2492 = vperm.slane %v2385, 3
        %v2493 = vadd.f32 %v2490, %v2492
        %v2494 = vadd.f32 %v2491, %v2492
        %v2495 = vld [vmem:[%s706] sm:$0xff]
        %v2496 = vld [vmem:[%s706 + $0x8] sm:$0xff]
        %v2497 = vld [vmem:[%s706 + $0x10] sm:$0xff]
        %v2498 = vld [vmem:[%s706 + $0x18] sm:$0xff]
        %v2499 = vld [vmem:[%s709] sm:$0x1]
        %v2501 = vperm.slane %v2499, 0
        %v2504 = vsel %vm802, %v2493, 0
        %v2507 = vsel %vm802, %v2494, 0
        %2509 = vmatpush.msra.mxu0 0.0
        %2510 = vmatpush.msra.mxu0 0.0
        %2511 = vmatpush.msra.mxu0 0.0
        %2512 = vmatpush.msra.mxu0 0.0
        %2513 = vmatpush.msra.mxu0 0.0
        %2514 = vmatpush.msra.mxu0 0.0
        %2515 = vmatpush.msra.mxu0 0.0
        %2516 = vmatpush.msra.mxu0 0.0
        %2517 = vmatpush.msra.mxu0 0.0
        %2518 = vmatpush.msra.mxu0 0.0
        %2519 = vmatpush.msra.mxu0 0.0
        %2520 = vmatpush.msra.mxu0 0.0
        %2521 = vmatpush.msra.mxu0 %v2498
        %2522 = vmatpush.msra.mxu0 %v2497
        %2523 = vmatpush.msra.mxu0 %v2496
        %2524 = vmatpush.msra.mxu0 %v2495
        %2525 = vmatmul.f32.gmra.mxu0 %v2504
        %v2526 = vpop.f32.mrf.mxu0
        %v2527 = vadd.f32 %v2501, %v2526
        %2528 = vmatmul.f32.gmra.mxu0 %v2507
        %v2529 = vpop.f32.mrf.mxu0
        %v2530 = vadd.f32 %v2501, %v2529
        %2531 = vdwg.mxu0
        %v2532 = vmax.f32 %v2527, 0.0
        %v2533 = vmax.f32 %v2530, 0.0
        %v2534 = vand.u32 2147483647, %v2527
        %v2535 = vand.u32 2147483647, %v2530
        %v2536 = vsub.f32 0.0, %v2534
        %v2537 = vsub.f32 0.0, %v2535
        %v2538 = vmul.f32 %v2536, 1.442695
        %v2539 = vpow.pop %v2538
        %v2540 = vmul.f32 %v2537, 1.442695
        %v2541 = vpow.pop %v2540
        %v2542 = vadd.f32 %v2539, 1.0
        %v2543 = vadd.f32 %v2541, 1.0
        %v2544 = vlog2.pop %v2542
        %v2545 = vmul.f32 %v2544, 0.6931472
        %v2546 = vlog2.pop %v2543
        %v2547 = vmul.f32 %v2546, 0.6931472
        %v2548 = vadd.f32 %v2532, %v2545
        %v2549 = vadd.f32 %v2533, %v2547
        %v2550 = vtanh.pop %v2548
        %v2551 = vtanh.pop %v2549
        %v2552 = vmul.f32 %v2527, %v2550
        %v2553 = vmul.f32 %v2530, %v2551
        %v2554 = vld [vmem:[%s714] sm:$0xff]
        %v2555 = vld [vmem:[%s714 + $0x8] sm:$0xff]
        %v2556 = vld [vmem:[%s714 + $0x10] sm:$0xff]
        %v2557 = vld [vmem:[%s714 + $0x18] sm:$0xff]
        %v2558 = vld [vmem:[%s714 + $0x20] sm:$0xff]
        %v2559 = vld [vmem:[%s714 + $0x28] sm:$0xff]
        %v2560 = vld [vmem:[%s714 + $0x30] sm:$0xff]
        %v2561 = vld [vmem:[%s714 + $0x38] sm:$0xff]
        %v2562 = vld [vmem:[%s714 + $0x40] sm:$0xff]
        %v2563 = vld [vmem:[%s714 + $0x48] sm:$0xff]
        %v2564 = vld [vmem:[%s714 + $0x50] sm:$0xff]
        %v2565 = vld [vmem:[%s714 + $0x58] sm:$0xff]
        %v2566 = vld [vmem:[%s717] sm:$0x1]
        %v2568 = vperm.slane %v2566, 0
        %vm2570 = vcmask 785408
        %v2572 = vsel %vm2570, %v2552, 0
        %v2575 = vsel %vm2570, %v2553, 0
        %2577 = vmatpush.msra.mxu0 0.0
        %2578 = vmatpush.msra.mxu0 0.0
        %2579 = vmatpush.msra.mxu0 0.0
        %2580 = vmatpush.msra.mxu0 0.0
        %2581 = vmatpush.msra.mxu0 %v2565
        %2582 = vmatpush.msra.mxu0 %v2564
        %2583 = vmatpush.msra.mxu0 %v2563
        %2584 = vmatpush.msra.mxu0 %v2562
        %2585 = vmatpush.msra.mxu0 %v2561
        %2586 = vmatpush.msra.mxu0 %v2560
        %2587 = vmatpush.msra.mxu0 %v2559
        %2588 = vmatpush.msra.mxu0 %v2558
        %2589 = vmatpush.msra.mxu0 %v2557
        %2590 = vmatpush.msra.mxu0 %v2556
        %2591 = vmatpush.msra.mxu0 %v2555
        %2592 = vmatpush.msra.mxu0 %v2554
        %2593 = vmatmul.f32.gmra.mxu0 %v2572
        %v2594 = vpop.f32.mrf.mxu0
        %v2595 = vadd.f32 %v2568, %v2594
        %2596 = vmatmul.f32.gmra.mxu0 %v2575
        %v2597 = vpop.f32.mrf.mxu0
        %v2598 = vadd.f32 %v2568, %v2597
        %2599 = vdwg.mxu0
        %v2600 = vadd.f32 %v2443, %v2595
        %v2601 = vadd.f32 %v2444, %v2598
        %v2602 = vsel %vm802, %v2600, 0.0
        %2603 = vadd.xlane.f32.xlu0 %v2602
        %v2604 = vpop.xlane.xlu0 %2603
        %v2605 = vsel %vm802, %v2601, 0.0
        %2606 = vadd.xlane.f32.xlu0 %v2605
        %v2607 = vpop.xlane.xlu0 %2606
        %v2608 = vmul.f32 %v2604, %v2398
        %v2609 = vmul.f32 %v2607, %v2398
        %v2610 = vsub.f32 %v2600, %v2608
        %v2611 = vsub.f32 %v2601, %v2609
        %v2612 = vmul.f32 %v2610, %v2610
        %v2613 = vmul.f32 %v2611, %v2611
        %v2614 = vsel %vm802, %v2612, 0.0
        %2615 = vadd.xlane.f32.xlu0 %v2614
        %v2616 = vpop.xlane.xlu0 %2615
        %v2617 = vsel %vm802, %v2613, 0.0
        %2618 = vadd.xlane.f32.xlu0 %v2617
        %v2619 = vpop.xlane.xlu0 %2618
        %v2620 = vmul.f32 %v2616, %v2398
        %v2621 = vmul.f32 %v2619, %v2398
        %v2622 = vadd.f32 %v2620, 1e-05
        %v2623 = vadd.f32 %v2621, 1e-05
        %v2624 = vrsqrt.pop %v2622
        %v2625 = vmul.f32 %v2624, %v2622
        %v2626 = vmul.f32 %v2625, %v2624
        %v2627 = vmul.f32 0.5, %v2626
        %v2628 = vsub.f32 1.5, %v2627
        %v2629 = vmul.f32 %v2624, %v2628
        %vm2630 = vweird.f32 %v2622
        %vm2631 = vweird.f32 %v2624
        %vm2632 = vmor %vm2630, %vm2631
        %v2633 = vsel %vm2632, %v2624, %v2629
        %v2634 = vrsqrt.pop %v2623
        %v2635 = vmul.f32 %v2634, %v2623
        %v2636 = vmul.f32 %v2635, %v2634
        %v2637 = vmul.f32 0.5, %v2636
        %v2638 = vsub.f32 1.5, %v2637
        %v2639 = vmul.f32 %v2634, %v2638
        %vm2640 = vweird.f32 %v2623
        %vm2641 = vweird.f32 %v2634
        %vm2642 = vmor %vm2640, %vm2641
        %v2643 = vsel %vm2642, %v2634, %v2639
        %v2644 = vmul.f32 %v2610, %v2633
        %v2645 = vmul.f32 %v2611, %v2643
        %v2646 = vperm.slane %v2385, 4
        %v2647 = vmul.f32 %v2644, %v2646
        %v2648 = vmul.f32 %v2645, %v2646
        %v2649 = vperm.slane %v2385, 5
        %v2650 = vadd.f32 %v2647, %v2649
        %v2651 = vadd.f32 %v2648, %v2649
        %v2652 = vadd.f32 %v2650, %v727
        %v2653 = vadd.f32 %v2651, %v728
        %2654 = vst.msk [vmem:[#allocation2] sm:$0xff] %vm802, %v2652
        %2655 = vst.msk [vmem:[#allocation2 + $0x8] sm:$0xff] %vm802, %v2653
        // Predicated region
        $region89: #{tpu_custom_call.1} parent=83 // pred_check
          %p2656 = pneg %p442
        $region90: #{tpu_custom_call.1} parent=83 // pred_check_branch
          %2658 = sbr.rel (%p2656) target = $region92
        $region91: #{tpu_custom_call.1} parent=83 // pred_region
          %2660 = vsyncadd [#allocation3], 0
          %s2661 = sshll.u32 [#allocation2], 4
          %s2662 = int_to_ptr.vmem [resolvable:$true] %s2661
          %s2663 = sshll.u32 %s16, 4
          %s2664 = int_to_ptr.hbm [resolvable:$true] %s2663
          %2669 = dma.vmem_to_hbm [thread:$0]  %s2662, 256, %s2664, [#allocation3], 128, 128, 8
        $region92: #{tpu_custom_call.1} parent=83 // pred_fallthru
          _
        // Predicated region
        $region93: #{tpu_custom_call.1} parent=83 // pred_check
          %p2670 = pneg %p442
        $region94: #{tpu_custom_call.1} parent=83 // pred_check_branch
          %2672 = sbr.rel (%p2670) target = $region96
        $region95: #{tpu_custom_call.1} parent=83 // pred_region
          %2674 = dma.done [#allocation3], 256
        $region96: #{tpu_custom_call.1} parent=83 // pred_fallthru
          _
      $region84: #{tpu_custom_call.1} parent=5 // pred_fallthru
        _
      %p2675 = scmp.le.s32.totalorder 2, %s23
      // Predicated region
      $region97: #{tpu_custom_call.1} parent=5 // pred_check
        %p2676 = pneg %p2675
      $region98: #{tpu_custom_call.1} parent=5 // pred_check_branch
        %2678 = sbr.rel (%p2676) target = $region100
      $region99: #{tpu_custom_call.1} parent=5 // pred_region
        %s2679 = ssub.s32 %s23, 2
      $region100: #{tpu_custom_call.1} parent=5 // pred_fallthru
        _
    $region6: #{tpu_custom_call.1} parent=1 // loop_footer
      %s27 = sadd.s32 1, %s23
    $region7: #{tpu_custom_call.1} parent=1 // loop_footer_branch
      %22 = sbr.rel target = $region3
    $region8: #{tpu_custom_call.1} parent=1 // loop_exit
      _
    %2680 = vsyncpa [#allocation3], 1
    %s2681 = scalar_lea.sflag [#allocation3], 1
    %2682 = vsyncpa %s2681, 1

</llo_original>
